<compile_context>
chip_gen: v7x
topology: tpu7x:2x2x1
jax: 0.10.0
libtpu: 0.0.40
codegen_flags: <defaults>
</compile_context>

<pallas_src>
import functools
import math

import jax
import jax.numpy as jnp
from jax.experimental import pallas as pl
from jax.experimental.pallas import tpu as pltpu

# ---- scaled-down BertConfig (same structure as the reference module) --------
VOCAB = 256          # vocab_size          (8000 in the reference config)
HIDDEN = 128         # hidden_size         (512)
NUM_LAYERS = 2       # num_hidden_layers   (6)
NUM_HEADS = 2        # num_attention_heads (8)
HEAD_DIM = HIDDEN // NUM_HEADS
INTER = 256          # intermediate_size   (2048)
MAX_POS = 64         # max_position_embeddings
NUM_CLASSES = 8      # num_classes for the classifier head
LN_EPS = 1e-12
# hidden_dropout_prob / attention_probs_dropout_prob are identity in eval mode.


# ----------------------------- fused encoder kernel --------------------------

def _layernorm(x, gamma, beta):
    mu = jnp.mean(x, axis=-1, keepdims=True)
    xc = x - mu
    var = jnp.mean(xc * xc, axis=-1, keepdims=True)
    return xc * jax.lax.rsqrt(var + LN_EPS) * gamma + beta


def _encoder_kernel(emb_ref, bias_ref, embln_ref,
                    wqkv_ref, bqkv_ref, wo_ref, bo_ref, ln1_ref,
                    w1_ref, b1_ref, w2_ref, b2_ref, ln2_ref,
                    wp_ref, bp_ref, wc_ref, bc_ref, onehot_ref,
                    logits_ref, loss_ref, h_ref, *, batch, seq):
    layer = pl.program_id(0)

    # --- embedding LayerNorm (no zero-residual), only on the first step ---
    @pl.when(layer == 0)
    def _():
        ln = embln_ref[...]
        h_ref[...] = _layernorm(emb_ref[...], ln[0:1, :], ln[1:2, :])

    h = h_ref[...]                                    # (B*S, H) f32, VMEM-resident
    h_bf = h.astype(jnp.bfloat16)

    # --- fused QKV projection: one MXU pass with N = 3*H ---
    qkv = jnp.dot(h_bf, wqkv_ref[0],
                  preferred_element_type=jnp.float32) + bqkv_ref[0]
    q = qkv[:, 0 * HIDDEN:1 * HIDDEN]
    k = qkv[:, 1 * HIDDEN:2 * HIDDEN]
    v = qkv[:, 2 * HIDDEN:3 * HIDDEN]

    # --- multi-head self-attention: all batches per head via batched einsum ---
    bias = bias_ref[...][:, None, :]                  # (B, 1, S) additive mask
    scale = 1.0 / math.sqrt(HEAD_DIM)
    ctx_heads = []
    for hd in range(NUM_HEADS):                       # static unroll (2 heads)
        sl = slice(hd * HEAD_DIM, (hd + 1) * HEAD_DIM)
        qh = q[:, sl].reshape(batch, seq, HEAD_DIM).astype(jnp.bfloat16)
        kh = k[:, sl].reshape(batch, seq, HEAD_DIM).astype(jnp.bfloat16)
        vh = v[:, sl].reshape(batch, seq, HEAD_DIM).astype(jnp.bfloat16)
        s = jnp.einsum('bqd,bkd->bqk', qh, kh,
                       preferred_element_type=jnp.float32) * scale + bias
        m = jnp.max(s, axis=-1, keepdims=True)
        p = jnp.exp(s - m)
        p = p * pl.reciprocal(jnp.sum(p, axis=-1, keepdims=True), approx=False)
        ctx = jnp.einsum('bqk,bkd->bqd', p.astype(jnp.bfloat16), vh,
                         preferred_element_type=jnp.float32)
        ctx_heads.append(ctx.reshape(batch * seq, HEAD_DIM))
    ctx = jnp.concatenate(ctx_heads, axis=-1)         # (B*S, H)

    # --- attention output projection + residual + LayerNorm ---
    attn_out = jnp.dot(ctx.astype(jnp.bfloat16), wo_ref[0],
                       preferred_element_type=jnp.float32) + bo_ref[0]
    ln1 = ln1_ref[0]
    h1 = _layernorm(attn_out + h, ln1[0:1, :], ln1[1:2, :])

    # --- feed-forward + residual + LayerNorm ---
    hi = jnp.dot(h1.astype(jnp.bfloat16), w1_ref[0],
                 preferred_element_type=jnp.float32) + b1_ref[0]
    # TODO(synk): HF "gelu" is erf-based; using tanh-approx GELU in-kernel.
    hi = 0.5 * hi * (1.0 + jnp.tanh(0.7978845608028654
                                    * (hi + 0.044715 * hi * hi * hi)))
    ffn_out = jnp.dot(hi.astype(jnp.bfloat16), w2_ref[0],
                      preferred_element_type=jnp.float32) + b2_ref[0]
    ln2 = ln2_ref[0]
    h2 = _layernorm(ffn_out + h1, ln2[0:1, :], ln2[1:2, :])
    h_ref[...] = h2                                   # persists to next layer

    # --- pooler + classifier + mean CrossEntropyLoss, fused into last step ---
    @pl.when(layer == pl.num_programs(0) - 1)
    def _():
        cls = jnp.concatenate(
            [h2[b * seq:b * seq + 1, :] for b in range(batch)], axis=0)  # (B,H)
        pooled = jnp.tanh(jnp.dot(cls.astype(jnp.bfloat16), wp_ref[...],
                                  preferred_element_type=jnp.float32)
                          + bp_ref[...])
        logits = jnp.dot(pooled, wc_ref[...],
                         preferred_element_type=jnp.float32) + bc_ref[...]
        logits_ref[...] = logits.astype(logits_ref.dtype)
        mx = jnp.max(logits, axis=-1, keepdims=True)
        lse = mx + jnp.log(jnp.sum(jnp.exp(logits - mx), axis=-1, keepdims=True))
        nll = lse - jnp.sum(onehot_ref[...] * logits, axis=-1, keepdims=True)
        loss_ref[...] = jnp.sum(nll, axis=0, keepdims=True) * (1.0 / batch)


# ----------------------------- parameters ------------------------------------

def init_params(key):
    keys = iter(jax.random.split(key, 64))

    def dense(din, dout):
        return (jax.random.normal(next(keys), (din, dout), jnp.float32) * 0.02,
                jnp.zeros((dout,), jnp.float32))

    def ln():
        return (jnp.ones((HIDDEN,), jnp.float32),
                jnp.zeros((HIDDEN,), jnp.float32))

    p = {
        "word_emb": jax.random.normal(next(keys), (VOCAB, HIDDEN), jnp.float32) * 0.02,
        "pos_emb": jax.random.normal(next(keys), (MAX_POS, HIDDEN), jnp.float32) * 0.02,
        "type_emb": jax.random.normal(next(keys), (2, HIDDEN), jnp.float32) * 0.02,
        "emb_ln": ln(),
        "layers": [],
        "pooler": dense(HIDDEN, HIDDEN),
        "cls": dense(HIDDEN, NUM_CLASSES),
    }
    for _ in range(NUM_LAYERS):
        p["layers"].append({
            "q": dense(HIDDEN, HIDDEN),
            "k": dense(HIDDEN, HIDDEN),
            "v": dense(HIDDEN, HIDDEN),
            "attn_out": dense(HIDDEN, HIDDEN),
            "attn_ln": ln(),
            "ffn_in": dense(HIDDEN, INTER),
            "ffn_out": dense(INTER, HIDDEN),
            "ffn_ln": ln(),
        })
    return p


# ----------------------------- forward pass -----------------------------------

def bert_classifier_forward(params, input_ids, attention_mask, labels):
    B, S = input_ids.shape
    M = B * S

    # --- embeddings (gathers are plain-JAX glue) ---
    we = params["word_emb"][input_ids]                        # (B,S,H)
    pe = params["pos_emb"][jnp.arange(S)][None]               # (1,S,H)
    te = params["type_emb"][0][None, None]                    # (1,1,H) token_type=0
    emb = (we + pe + te).reshape(M, HIDDEN)
    mask_bias = (1.0 - attention_mask.astype(jnp.float32)) * -10000.0   # (B,S)
    emb_ln = jnp.stack(params["emb_ln"], axis=0)                        # (2,H)

    # --- stack per-layer weights on a leading layer axis; bf16 for matmuls ---
    L = params["layers"]
    bf16 = lambda x: x.astype(jnp.bfloat16)
    wqkv = bf16(jnp.stack([jnp.concatenate(
        [l["q"][0], l["k"][0], l["v"][0]], axis=1) for l in L]))        # (L,H,3H)
    bqkv = jnp.stack([jnp.concatenate(
        [l["q"][1], l["k"][1], l["v"][1]])[None, :] for l in L])        # (L,1,3H)
    wo = bf16(jnp.stack([l["attn_out"][0] for l in L]))                 # (L,H,H)
    bo = jnp.stack([l["attn_out"][1][None, :] for l in L])              # (L,1,H)
    ln1 = jnp.stack([jnp.stack(l["attn_ln"], axis=0) for l in L])       # (L,2,H)
    w1 = bf16(jnp.stack([l["ffn_in"][0] for l in L]))                   # (L,H,I)
    b1 = jnp.stack([l["ffn_in"][1][None, :] for l in L])                # (L,1,I)
    w2 = bf16(jnp.stack([l["ffn_out"][0] for l in L]))                  # (L,I,H)
    b2 = jnp.stack([l["ffn_out"][1][None, :] for l in L])               # (L,1,H)
    ln2 = jnp.stack([jnp.stack(l["ffn_ln"], axis=0) for l in L])        # (L,2,H)

    wp = bf16(params["pooler"][0])
    bp = params["pooler"][1][None, :]
    wc = params["cls"][0]
    bc = params["cls"][1][None, :]
    onehot = jax.nn.one_hot(labels, NUM_CLASSES, dtype=jnp.float32)

    const = lambda bs: pl.BlockSpec(bs, lambda l: (0, 0))
    per_layer = lambda bs: pl.BlockSpec(bs, lambda l: (l, 0, 0))

    kernel = functools.partial(_encoder_kernel, batch=B, seq=S)
    logits, loss = pl.pallas_call(
        kernel,
        out_shape=(jax.ShapeDtypeStruct((B, NUM_CLASSES), jnp.float32),
                   jax.ShapeDtypeStruct((1, 1), jnp.float32)),
        grid_spec=pltpu.PrefetchScalarGridSpec(
            num_scalar_prefetch=0,
            grid=(NUM_LAYERS,),
            in_specs=[
                const((M, HIDDEN)),                   # emb
                const((B, S)),                        # attention-mask bias
                const((2, HIDDEN)),                   # embedding LN (gamma,beta)
                per_layer((1, HIDDEN, 3 * HIDDEN)),   # wqkv
                per_layer((1, 1, 3 * HIDDEN)),        # bqkv
                per_layer((1, HIDDEN, HIDDEN)),       # wo
                per_layer((1, 1, HIDDEN)),            # bo
                per_layer((1, 2, HIDDEN)),            # ln1 (gamma,beta)
                per_layer((1, HIDDEN, INTER)),        # w1
                per_layer((1, 1, INTER)),             # b1
                per_layer((1, INTER, HIDDEN)),        # w2
                per_layer((1, 1, HIDDEN)),            # b2
                per_layer((1, 2, HIDDEN)),            # ln2 (gamma,beta)
                const((HIDDEN, HIDDEN)),              # pooler W
                const((1, HIDDEN)),                   # pooler b
                const((HIDDEN, NUM_CLASSES)),         # classifier W
                const((1, NUM_CLASSES)),              # classifier b
                const((B, NUM_CLASSES)),              # one-hot labels
            ],
            out_specs=[const((B, NUM_CLASSES)),       # logits (written last step)
                       const((1, 1))],                # loss   (written last step)
            scratch_shapes=[pltpu.VMEM((M, HIDDEN), jnp.float32)],  # resident h
        ),
        compiler_params=pltpu.CompilerParams(
            dimension_semantics=("arbitrary",)),      # sequential layer loop
    )(emb, mask_bias, emb_ln,
      wqkv, bqkv, wo, bo, ln1, w1, b1, w2, b2, ln2,
      wp, bp, wc, bc, onehot)
    return logits, loss[0, 0]


# ----------------------------- main -------------------------------------------

if __name__ == "__main__":
    key = jax.random.PRNGKey(0)
    pkey, ikey = jax.random.split(key)
    params = init_params(pkey)

    B, S = 2, 16
    input_ids = jax.random.randint(ikey, (B, S), 0, VOCAB, dtype=jnp.int32)
    attention_mask = jnp.array([[1] * S, [1] * (S - 4) + [0] * 4], dtype=jnp.int32)
    labels = jnp.array([1, 3], dtype=jnp.int32)

    fwd = jax.jit(bert_classifier_forward)
    logits, loss = fwd(params, input_ids, attention_mask, labels)
    jax.block_until_ready((logits, loss))
    assert logits.shape == (B, NUM_CLASSES)
    assert loss.shape == ()
    print("KERNEL_OK")
</pallas_src>

<mosaic_0001>
module attributes {stable_mosaic.version = 11 : i64} {
  func.func @_encoder_kernel(%arg0: i32, %arg1: memref<32x128xf32, #tpu.memory_space<vmem>>, %arg2: memref<2x16xf32, #tpu.memory_space<vmem>>, %arg3: memref<2x128xf32, #tpu.memory_space<vmem>>, %arg4: memref<1x128x384xbf16, #tpu.memory_space<vmem>>, %arg5: memref<1x1x384xf32, #tpu.memory_space<vmem>>, %arg6: memref<1x128x128xbf16, #tpu.memory_space<vmem>>, %arg7: memref<1x1x128xf32, #tpu.memory_space<vmem>>, %arg8: memref<1x2x128xf32, #tpu.memory_space<vmem>>, %arg9: memref<1x128x256xbf16, #tpu.memory_space<vmem>>, %arg10: memref<1x1x256xf32, #tpu.memory_space<vmem>>, %arg11: memref<1x256x128xbf16, #tpu.memory_space<vmem>>, %arg12: memref<1x1x128xf32, #tpu.memory_space<vmem>>, %arg13: memref<1x2x128xf32, #tpu.memory_space<vmem>>, %arg14: memref<128x128xbf16, #tpu.memory_space<vmem>>, %arg15: memref<1x128xf32, #tpu.memory_space<vmem>>, %arg16: memref<128x8xf32, #tpu.memory_space<vmem>>, %arg17: memref<1x8xf32, #tpu.memory_space<vmem>>, %arg18: memref<2x8xf32, #tpu.memory_space<vmem>>, %arg19: memref<2x8xf32, #tpu.memory_space<vmem>>, %arg20: memref<1x1xf32, #tpu.memory_space<vmem>>, %arg21: memref<32x128xf32, #tpu.memory_space<vmem>>) attributes {dimension_semantics = [#tpu.dimension_semantics<arbitrary>], iteration_bounds = array<i64: 2>, scalar_prefetch = 0 : i64, scratch_operands = 1 : i64, tpu.core_type = #tpu.core_type<tc>, window_params = [{pipeline_mode = #tpu.pipeline_mode<synchronous>, transform_indices = @transform_0, window_bounds = array<i64: 32, 128>}, {pipeline_mode = #tpu.pipeline_mode<synchronous>, transform_indices = @transform_1, window_bounds = array<i64: 2, 16>}, {pipeline_mode = #tpu.pipeline_mode<synchronous>, transform_indices = @transform_2, window_bounds = array<i64: 2, 128>}, {transform_indices = @transform_3, window_bounds = array<i64: 1, 128, 384>}, {transform_indices = @transform_4, window_bounds = array<i64: 1, 1, 384>}, {transform_indices = @transform_5, window_bounds = array<i64: 1, 128, 128>}, {transform_indices = @transform_6, window_bounds = array<i64: 1, 1, 128>}, {transform_indices = @transform_7, window_bounds = array<i64: 1, 2, 128>}, {transform_indices = @transform_8, window_bounds = array<i64: 1, 128, 256>}, {transform_indices = @transform_9, window_bounds = array<i64: 1, 1, 256>}, {transform_indices = @transform_10, window_bounds = array<i64: 1, 256, 128>}, {transform_indices = @transform_11, window_bounds = array<i64: 1, 1, 128>}, {transform_indices = @transform_12, window_bounds = array<i64: 1, 2, 128>}, {pipeline_mode = #tpu.pipeline_mode<synchronous>, transform_indices = @transform_13, window_bounds = array<i64: 128, 128>}, {pipeline_mode = #tpu.pipeline_mode<synchronous>, transform_indices = @transform_14, window_bounds = array<i64: 1, 128>}, {pipeline_mode = #tpu.pipeline_mode<synchronous>, transform_indices = @transform_15, window_bounds = array<i64: 128, 8>}, {pipeline_mode = #tpu.pipeline_mode<synchronous>, transform_indices = @transform_16, window_bounds = array<i64: 1, 8>}, {pipeline_mode = #tpu.pipeline_mode<synchronous>, transform_indices = @transform_17, window_bounds = array<i64: 2, 8>}, {pipeline_mode = #tpu.pipeline_mode<synchronous>, transform_indices = @transform_18, window_bounds = array<i64: 2, 8>}, {pipeline_mode = #tpu.pipeline_mode<synchronous>, transform_indices = @transform_19, window_bounds = array<i64: 1, 1>}]} {
    %c0_i32 = arith.constant 0 : i32
    %0 = arith.cmpi eq, %arg0, %c0_i32 : i32
    %1 = arith.extui %0 : i1 to i32
    %c0_i32_0 = arith.constant 0 : i32
    %2 = arith.cmpi ne, %1, %c0_i32_0 : i32
    scf.if %2 {
      %c0_64 = arith.constant 0 : index
      %c0_65 = arith.constant 0 : index
      %163 = vector.load %arg3[%c0_64, %c0_65] : memref<2x128xf32, #tpu.memory_space<vmem>>, vector<2x128xf32>
      %c0_66 = arith.constant 0 : index
      %c0_67 = arith.constant 0 : index
      %164 = vector.load %arg1[%c0_66, %c0_67] : memref<32x128xf32, #tpu.memory_space<vmem>>, vector<32x128xf32>
      %165 = vector.extract_strided_slice %163 {offsets = [0, 0], sizes = [1, 128], strides = [1, 1]} : vector<2x128xf32> to vector<1x128xf32>
      %166 = vector.extract_strided_slice %163 {offsets = [1, 0], sizes = [1, 128], strides = [1, 1]} : vector<2x128xf32> to vector<1x128xf32>
      %cst_68 = arith.constant dense<0.000000e+00> : vector<32xf32>
      %167 = vector.multi_reduction <add>, %164, %cst_68 [1] : vector<32x128xf32> to vector<32xf32>
      %168 = vector.shape_cast %167 : vector<32xf32> to vector<32x1xf32>
      %cst_69 = arith.constant 1.280000e+02 : f32
      %169 = vector.broadcast %cst_69 : f32 to vector<32x1xf32>
      %170 = arith.divf %168, %169 : vector<32x1xf32>
      %171 = vector.broadcast %170 : vector<32x1xf32> to vector<32x128xf32>
      %172 = arith.subf %164, %171 : vector<32x128xf32>
      %173 = arith.mulf %172, %172 : vector<32x128xf32>
      %cst_70 = arith.constant dense<0.000000e+00> : vector<32xf32>
      %174 = vector.multi_reduction <add>, %173, %cst_70 [1] : vector<32x128xf32> to vector<32xf32>
      %175 = vector.shape_cast %174 : vector<32xf32> to vector<32x1xf32>
      %cst_71 = arith.constant 1.280000e+02 : f32
      %176 = vector.broadcast %cst_71 : f32 to vector<32x1xf32>
      %177 = arith.divf %175, %176 : vector<32x1xf32>
      %cst_72 = arith.constant 9.99999996E-13 : f32
      %178 = vector.broadcast %cst_72 : f32 to vector<32x1xf32>
      %179 = arith.addf %177, %178 : vector<32x1xf32>
      %180 = math.rsqrt %179 : vector<32x1xf32>
      %181 = vector.broadcast %180 : vector<32x1xf32> to vector<32x128xf32>
      %182 = arith.mulf %172, %181 : vector<32x128xf32>
      %183 = vector.broadcast %165 : vector<1x128xf32> to vector<32x128xf32>
      %184 = arith.mulf %182, %183 : vector<32x128xf32>
      %185 = vector.broadcast %166 : vector<1x128xf32> to vector<32x128xf32>
      %186 = arith.addf %184, %185 : vector<32x128xf32>
      %c0_73 = arith.constant 0 : index
      %c0_74 = arith.constant 0 : index
      %187 = vector.load %arg21[%c0_73, %c0_74] : memref<32x128xf32, #tpu.memory_space<vmem>>, vector<32x128xf32>
      tpu.vector_store %arg21[%c0_73, %c0_74], %186 {strides = array<i32>} : memref<32x128xf32, #tpu.memory_space<vmem>>, vector<32x128xf32>,
    } else {
    }
    %c0 = arith.constant 0 : index
    %c0_1 = arith.constant 0 : index
    %3 = vector.load %arg21[%c0, %c0_1] : memref<32x128xf32, #tpu.memory_space<vmem>>, vector<32x128xf32>
    %4 = arith.truncf %3 : vector<32x128xf32> to vector<32x128xbf16>
    %c0_2 = arith.constant 0 : index
    %c0_3 = arith.constant 0 : index
    %c0_4 = arith.constant 0 : index
    %5 = vector.load %arg4[%c0_2, %c0_3, %c0_4] : memref<1x128x384xbf16, #tpu.memory_space<vmem>>, vector<1x128x384xbf16>
    %6 = vector.shape_cast %5 : vector<1x128x384xbf16> to vector<128x384xbf16>
    %cst = arith.constant dense<0.000000e+00> : vector<32x384xf32>
    %7 = tpu.matmul %4, %6, %cst {dimension_numbers = #tpu.dot_dimension_numbers<[1], [0], [0], [1], [0, 0, 1, 1], [], []>} : vector<32x128xbf16>, vector<128x384xbf16>, vector<32x384xf32> -> vector<32x384xf32>
    %c0_5 = arith.constant 0 : index
    %c0_6 = arith.constant 0 : index
    %c0_7 = arith.constant 0 : index
    %8 = vector.load %arg5[%c0_5, %c0_6, %c0_7] : memref<1x1x384xf32, #tpu.memory_space<vmem>>, vector<1x1x384xf32>
    %9 = vector.shape_cast %8 : vector<1x1x384xf32> to vector<1x384xf32>
    %10 = vector.broadcast %9 : vector<1x384xf32> to vector<32x384xf32>
    %11 = arith.addf %7, %10 : vector<32x384xf32>
    %12 = vector.extract_strided_slice %11 {offsets = [0, 0], sizes = [32, 128], strides = [1, 1]} : vector<32x384xf32> to vector<32x128xf32>
    %13 = vector.extract_strided_slice %11 {offsets = [0, 128], sizes = [32, 128], strides = [1, 1]} : vector<32x384xf32> to vector<32x128xf32>
    %14 = vector.extract_strided_slice %11 {offsets = [0, 256], sizes = [32, 128], strides = [1, 1]} : vector<32x384xf32> to vector<32x128xf32>
    %c0_8 = arith.constant 0 : index
    %c0_9 = arith.constant 0 : index
    %15 = vector.load %arg2[%c0_8, %c0_9] : memref<2x16xf32, #tpu.memory_space<vmem>>, vector<2x16xf32>
    %16 = vector.shape_cast %15 : vector<2x16xf32> to vector<2x1x16xf32>
    %17 = vector.extract_strided_slice %12 {offsets = [0, 0], sizes = [32, 64], strides = [1, 1]} : vector<32x128xf32> to vector<32x64xf32>
    %18 = vector.shape_cast %17 : vector<32x64xf32> to vector<2x16x64xf32>
    %19 = arith.truncf %18 : vector<2x16x64xf32> to vector<2x16x64xbf16>
    %20 = vector.extract_strided_slice %13 {offsets = [0, 0], sizes = [32, 64], strides = [1, 1]} : vector<32x128xf32> to vector<32x64xf32>
    %21 = vector.shape_cast %20 : vector<32x64xf32> to vector<2x16x64xf32>
    %22 = arith.truncf %21 : vector<2x16x64xf32> to vector<2x16x64xbf16>
    %23 = vector.extract_strided_slice %14 {offsets = [0, 0], sizes = [32, 64], strides = [1, 1]} : vector<32x128xf32> to vector<32x64xf32>
    %24 = vector.shape_cast %23 : vector<32x64xf32> to vector<2x16x64xf32>
    %25 = arith.truncf %24 : vector<2x16x64xf32> to vector<2x16x64xbf16>
    "tpu.trace_start"() <{level = 10 : i32, message = "bqd,bkd->bqk"}> : () -> ()
    %cst_10 = arith.constant dense<0.000000e+00> : vector<2x16x16xf32>
    %26 = tpu.matmul %19, %22, %cst_10 {dimension_numbers = #tpu.dot_dimension_numbers<[2], [2], [1], [1], [0, 0, 0, 1, 1, 1], [0], [0]>} : vector<2x16x64xbf16>, vector<2x16x64xbf16>, vector<2x16x16xf32> -> vector<2x16x16xf32>
    "tpu.trace_stop"() : () -> ()
    %cst_11 = arith.constant 1.250000e-01 : f32
    %27 = vector.broadcast %cst_11 : f32 to vector<2x16x16xf32>
    %28 = arith.mulf %26, %27 : vector<2x16x16xf32>
    %29 = vector.broadcast %16 : vector<2x1x16xf32> to vector<2x16x16xf32>
    %30 = arith.addf %28, %29 : vector<2x16x16xf32>
    %cst_12 = arith.constant dense<0xFF800000> : vector<2x16xf32>
    %31 = vector.multi_reduction <maximumf>, %30, %cst_12 [2] : vector<2x16x16xf32> to vector<2x16xf32>
    %32 = vector.shape_cast %31 : vector<2x16xf32> to vector<2x16x1xf32>
    %33 = vector.broadcast %32 : vector<2x16x1xf32> to vector<2x16x16xf32>
    %34 = arith.subf %30, %33 : vector<2x16x16xf32>
    %35 = math.exp %34 : vector<2x16x16xf32>
    %cst_13 = arith.constant dense<0.000000e+00> : vector<2x16xf32>
    %36 = vector.multi_reduction <add>, %35, %cst_13 [2] : vector<2x16x16xf32> to vector<2x16xf32>
    %37 = vector.shape_cast %36 : vector<2x16xf32> to vector<2x16x1xf32>
    %38 = tpu.reciprocal %37 : vector<2x16x1xf32> -> vector<2x16x1xf32>
    %39 = vector.broadcast %38 : vector<2x16x1xf32> to vector<2x16x16xf32>
    %40 = arith.mulf %35, %39 : vector<2x16x16xf32>
    %41 = arith.truncf %40 : vector<2x16x16xf32> to vector<2x16x16xbf16>
    "tpu.trace_start"() <{level = 10 : i32, message = "bqk,bkd->bqd"}> : () -> ()
    %cst_14 = arith.constant dense<0.000000e+00> : vector<2x16x64xf32>
    %42 = tpu.matmul %41, %25, %cst_14 {dimension_numbers = #tpu.dot_dimension_numbers<[2], [1], [1], [2], [0, 0, 0, 1, 1, 2], [0], [0]>} : vector<2x16x16xbf16>, vector<2x16x64xbf16>, vector<2x16x64xf32> -> vector<2x16x64xf32>
    "tpu.trace_stop"() : () -> ()
    %43 = vector.shape_cast %42 : vector<2x16x64xf32> to vector<32x64xf32>
    %44 = vector.extract_strided_slice %12 {offsets = [0, 64], sizes = [32, 64], strides = [1, 1]} : vector<32x128xf32> to vector<32x64xf32>
    %45 = vector.shape_cast %44 : vector<32x64xf32> to vector<2x16x64xf32>
    %46 = arith.truncf %45 : vector<2x16x64xf32> to vector<2x16x64xbf16>
    %47 = vector.extract_strided_slice %13 {offsets = [0, 64], sizes = [32, 64], strides = [1, 1]} : vector<32x128xf32> to vector<32x64xf32>
    %48 = vector.shape_cast %47 : vector<32x64xf32> to vector<2x16x64xf32>
    %49 = arith.truncf %48 : vector<2x16x64xf32> to vector<2x16x64xbf16>
    %50 = vector.extract_strided_slice %14 {offsets = [0, 64], sizes = [32, 64], strides = [1, 1]} : vector<32x128xf32> to vector<32x64xf32>
    %51 = vector.shape_cast %50 : vector<32x64xf32> to vector<2x16x64xf32>
    %52 = arith.truncf %51 : vector<2x16x64xf32> to vector<2x16x64xbf16>
    "tpu.trace_start"() <{level = 10 : i32, message = "bqd,bkd->bqk"}> : () -> ()
    %cst_15 = arith.constant dense<0.000000e+00> : vector<2x16x16xf32>
    %53 = tpu.matmul %46, %49, %cst_15 {dimension_numbers = #tpu.dot_dimension_numbers<[2], [2], [1], [1], [0, 0, 0, 1, 1, 1], [0], [0]>} : vector<2x16x64xbf16>, vector<2x16x64xbf16>, vector<2x16x16xf32> -> vector<2x16x16xf32>
    "tpu.trace_stop"() : () -> ()
    %cst_16 = arith.constant 1.250000e-01 : f32
    %54 = vector.broadcast %cst_16 : f32 to vector<2x16x16xf32>
    %55 = arith.mulf %53, %54 : vector<2x16x16xf32>
    %56 = vector.broadcast %16 : vector<2x1x16xf32> to vector<2x16x16xf32>
    %57 = arith.addf %55, %56 : vector<2x16x16xf32>
    %cst_17 = arith.constant dense<0xFF800000> : vector<2x16xf32>
    %58 = vector.multi_reduction <maximumf>, %57, %cst_17 [2] : vector<2x16x16xf32> to vector<2x16xf32>
    %59 = vector.shape_cast %58 : vector<2x16xf32> to vector<2x16x1xf32>
    %60 = vector.broadcast %59 : vector<2x16x1xf32> to vector<2x16x16xf32>
    %61 = arith.subf %57, %60 : vector<2x16x16xf32>
    %62 = math.exp %61 : vector<2x16x16xf32>
    %cst_18 = arith.constant dense<0.000000e+00> : vector<2x16xf32>
    %63 = vector.multi_reduction <add>, %62, %cst_18 [2] : vector<2x16x16xf32> to vector<2x16xf32>
    %64 = vector.shape_cast %63 : vector<2x16xf32> to vector<2x16x1xf32>
    %65 = tpu.reciprocal %64 : vector<2x16x1xf32> -> vector<2x16x1xf32>
    %66 = vector.broadcast %65 : vector<2x16x1xf32> to vector<2x16x16xf32>
    %67 = arith.mulf %62, %66 : vector<2x16x16xf32>
    %68 = arith.truncf %67 : vector<2x16x16xf32> to vector<2x16x16xbf16>
    "tpu.trace_start"() <{level = 10 : i32, message = "bqk,bkd->bqd"}> : () -> ()
    %cst_19 = arith.constant dense<0.000000e+00> : vector<2x16x64xf32>
    %69 = tpu.matmul %68, %52, %cst_19 {dimension_numbers = #tpu.dot_dimension_numbers<[2], [1], [1], [2], [0, 0, 0, 1, 1, 2], [0], [0]>} : vector<2x16x16xbf16>, vector<2x16x64xbf16>, vector<2x16x64xf32> -> vector<2x16x64xf32>
    "tpu.trace_stop"() : () -> ()
    %70 = vector.shape_cast %69 : vector<2x16x64xf32> to vector<32x64xf32>
    %71 = tpu.concatenate %43, %70 in 1 : vector<32x64xf32>, vector<32x64xf32> -> vector<32x128xf32>
    %72 = arith.truncf %71 : vector<32x128xf32> to vector<32x128xbf16>
    %c0_20 = arith.constant 0 : index
    %c0_21 = arith.constant 0 : index
    %c0_22 = arith.constant 0 : index
    %73 = vector.load %arg6[%c0_20, %c0_21, %c0_22] : memref<1x128x128xbf16, #tpu.memory_space<vmem>>, vector<1x128x128xbf16>
    %74 = vector.shape_cast %73 : vector<1x128x128xbf16> to vector<128x128xbf16>
    %cst_23 = arith.constant dense<0.000000e+00> : vector<32x128xf32>
    %75 = tpu.matmul %72, %74, %cst_23 {dimension_numbers = #tpu.dot_dimension_numbers<[1], [0], [0], [1], [0, 0, 1, 1], [], []>} : vector<32x128xbf16>, vector<128x128xbf16>, vector<32x128xf32> -> vector<32x128xf32>
    %c0_24 = arith.constant 0 : index
    %c0_25 = arith.constant 0 : index
    %c0_26 = arith.constant 0 : index
    %76 = vector.load %arg7[%c0_24, %c0_25, %c0_26] : memref<1x1x128xf32, #tpu.memory_space<vmem>>, vector<1x1x128xf32>
    %77 = vector.shape_cast %76 : vector<1x1x128xf32> to vector<1x128xf32>
    %78 = vector.broadcast %77 : vector<1x128xf32> to vector<32x128xf32>
    %79 = arith.addf %75, %78 : vector<32x128xf32>
    %c0_27 = arith.constant 0 : index
    %c0_28 = arith.constant 0 : index
    %c0_29 = arith.constant 0 : index
    %80 = vector.load %arg8[%c0_27, %c0_28, %c0_29] : memref<1x2x128xf32, #tpu.memory_space<vmem>>, vector<1x2x128xf32>
    %81 = vector.shape_cast %80 : vector<1x2x128xf32> to vector<2x128xf32>
    %82 = arith.addf %79, %3 : vector<32x128xf32>
    %83 = vector.extract_strided_slice %81 {offsets = [0, 0], sizes = [1, 128], strides = [1, 1]} : vector<2x128xf32> to vector<1x128xf32>
    %84 = vector.extract_strided_slice %81 {offsets = [1, 0], sizes = [1, 128], strides = [1, 1]} : vector<2x128xf32> to vector<1x128xf32>
    %cst_30 = arith.constant dense<0.000000e+00> : vector<32xf32>
    %85 = vector.multi_reduction <add>, %82, %cst_30 [1] : vector<32x128xf32> to vector<32xf32>
    %86 = vector.shape_cast %85 : vector<32xf32> to vector<32x1xf32>
    %cst_31 = arith.constant 1.280000e+02 : f32
    %87 = vector.broadcast %cst_31 : f32 to vector<32x1xf32>
    %88 = arith.divf %86, %87 : vector<32x1xf32>
    %89 = vector.broadcast %88 : vector<32x1xf32> to vector<32x128xf32>
    %90 = arith.subf %82, %89 : vector<32x128xf32>
    %91 = arith.mulf %90, %90 : vector<32x128xf32>
    %cst_32 = arith.constant dense<0.000000e+00> : vector<32xf32>
    %92 = vector.multi_reduction <add>, %91, %cst_32 [1] : vector<32x128xf32> to vector<32xf32>
    %93 = vector.shape_cast %92 : vector<32xf32> to vector<32x1xf32>
    %cst_33 = arith.constant 1.280000e+02 : f32
    %94 = vector.broadcast %cst_33 : f32 to vector<32x1xf32>
    %95 = arith.divf %93, %94 : vector<32x1xf32>
    %cst_34 = arith.constant 9.99999996E-13 : f32
    %96 = vector.broadcast %cst_34 : f32 to vector<32x1xf32>
    %97 = arith.addf %95, %96 : vector<32x1xf32>
    %98 = math.rsqrt %97 : vector<32x1xf32>
    %99 = vector.broadcast %98 : vector<32x1xf32> to vector<32x128xf32>
    %100 = arith.mulf %90, %99 : vector<32x128xf32>
    %101 = vector.broadcast %83 : vector<1x128xf32> to vector<32x128xf32>
    %102 = arith.mulf %100, %101 : vector<32x128xf32>
    %103 = vector.broadcast %84 : vector<1x128xf32> to vector<32x128xf32>
    %104 = arith.addf %102, %103 : vector<32x128xf32>
    %105 = arith.truncf %104 : vector<32x128xf32> to vector<32x128xbf16>
    %c0_35 = arith.constant 0 : index
    %c0_36 = arith.constant 0 : index
    %c0_37 = arith.constant 0 : index
    %106 = vector.load %arg9[%c0_35, %c0_36, %c0_37] : memref<1x128x256xbf16, #tpu.memory_space<vmem>>, vector<1x128x256xbf16>
    %107 = vector.shape_cast %106 : vector<1x128x256xbf16> to vector<128x256xbf16>
    %cst_38 = arith.constant dense<0.000000e+00> : vector<32x256xf32>
    %108 = tpu.matmul %105, %107, %cst_38 {dimension_numbers = #tpu.dot_dimension_numbers<[1], [0], [0], [1], [0, 0, 1, 1], [], []>} : vector<32x128xbf16>, vector<128x256xbf16>, vector<32x256xf32> -> vector<32x256xf32>
    %c0_39 = arith.constant 0 : index
    %c0_40 = arith.constant 0 : index
    %c0_41 = arith.constant 0 : index
    %109 = vector.load %arg10[%c0_39, %c0_40, %c0_41] : memref<1x1x256xf32, #tpu.memory_space<vmem>>, vector<1x1x256xf32>
    %110 = vector.shape_cast %109 : vector<1x1x256xf32> to vector<1x256xf32>
    %111 = vector.broadcast %110 : vector<1x256xf32> to vector<32x256xf32>
    %112 = arith.addf %108, %111 : vector<32x256xf32>
    %cst_42 = arith.constant 5.000000e-01 : f32
    %113 = vector.broadcast %cst_42 : f32 to vector<32x256xf32>
    %114 = arith.mulf %113, %112 : vector<32x256xf32>
    %cst_43 = arith.constant 4.471500e-02 : f32
    %115 = vector.broadcast %cst_43 : f32 to vector<32x256xf32>
    %116 = arith.mulf %115, %112 : vector<32x256xf32>
    %117 = arith.mulf %116, %112 : vector<32x256xf32>
    %118 = arith.mulf %117, %112 : vector<32x256xf32>
    %119 = arith.addf %112, %118 : vector<32x256xf32>
    %cst_44 = arith.constant 0.797884583 : f32
    %120 = vector.broadcast %cst_44 : f32 to vector<32x256xf32>
    %121 = arith.mulf %120, %119 : vector<32x256xf32>
    %122 = math.tanh %121 : vector<32x256xf32>
    %cst_45 = arith.constant 1.000000e+00 : f32
    %123 = vector.broadcast %cst_45 : f32 to vector<32x256xf32>
    %124 = arith.addf %123, %122 : vector<32x256xf32>
    %125 = arith.mulf %114, %124 : vector<32x256xf32>
    %126 = arith.truncf %125 : vector<32x256xf32> to vector<32x256xbf16>
    %c0_46 = arith.constant 0 : index
    %c0_47 = arith.constant 0 : index
    %c0_48 = arith.constant 0 : index
    %127 = vector.load %arg11[%c0_46, %c0_47, %c0_48] : memref<1x256x128xbf16, #tpu.memory_space<vmem>>, vector<1x256x128xbf16>
    %128 = vector.shape_cast %127 : vector<1x256x128xbf16> to vector<256x128xbf16>
    %cst_49 = arith.constant dense<0.000000e+00> : vector<32x128xf32>
    %129 = tpu.matmul %126, %128, %cst_49 {dimension_numbers = #tpu.dot_dimension_numbers<[1], [0], [0], [1], [0, 0, 1, 1], [], []>} : vector<32x256xbf16>, vector<256x128xbf16>, vector<32x128xf32> -> vector<32x128xf32>
    %c0_50 = arith.constant 0 : index
    %c0_51 = arith.constant 0 : index
    %c0_52 = arith.constant 0 : index
    %130 = vector.load %arg12[%c0_50, %c0_51, %c0_52] : memref<1x1x128xf32, #tpu.memory_space<vmem>>, vector<1x1x128xf32>
    %131 = vector.shape_cast %130 : vector<1x1x128xf32> to vector<1x128xf32>
    %132 = vector.broadcast %131 : vector<1x128xf32> to vector<32x128xf32>
    %133 = arith.addf %129, %132 : vector<32x128xf32>
    %c0_53 = arith.constant 0 : index
    %c0_54 = arith.constant 0 : index
    %c0_55 = arith.constant 0 : index
    %134 = vector.load %arg13[%c0_53, %c0_54, %c0_55] : memref<1x2x128xf32, #tpu.memory_space<vmem>>, vector<1x2x128xf32>
    %135 = vector.shape_cast %134 : vector<1x2x128xf32> to vector<2x128xf32>
    %136 = arith.addf %133, %104 : vector<32x128xf32>
    %137 = vector.extract_strided_slice %135 {offsets = [0, 0], sizes = [1, 128], strides = [1, 1]} : vector<2x128xf32> to vector<1x128xf32>
    %138 = vector.extract_strided_slice %135 {offsets = [1, 0], sizes = [1, 128], strides = [1, 1]} : vector<2x128xf32> to vector<1x128xf32>
    %cst_56 = arith.constant dense<0.000000e+00> : vector<32xf32>
    %139 = vector.multi_reduction <add>, %136, %cst_56 [1] : vector<32x128xf32> to vector<32xf32>
    %140 = vector.shape_cast %139 : vector<32xf32> to vector<32x1xf32>
    %cst_57 = arith.constant 1.280000e+02 : f32
    %141 = vector.broadcast %cst_57 : f32 to vector<32x1xf32>
    %142 = arith.divf %140, %141 : vector<32x1xf32>
    %143 = vector.broadcast %142 : vector<32x1xf32> to vector<32x128xf32>
    %144 = arith.subf %136, %143 : vector<32x128xf32>
    %145 = arith.mulf %144, %144 : vector<32x128xf32>
    %cst_58 = arith.constant dense<0.000000e+00> : vector<32xf32>
    %146 = vector.multi_reduction <add>, %145, %cst_58 [1] : vector<32x128xf32> to vector<32xf32>
    %147 = vector.shape_cast %146 : vector<32xf32> to vector<32x1xf32>
    %cst_59 = arith.constant 1.280000e+02 : f32
    %148 = vector.broadcast %cst_59 : f32 to vector<32x1xf32>
    %149 = arith.divf %147, %148 : vector<32x1xf32>
    %cst_60 = arith.constant 9.99999996E-13 : f32
    %150 = vector.broadcast %cst_60 : f32 to vector<32x1xf32>
    %151 = arith.addf %149, %150 : vector<32x1xf32>
    %152 = math.rsqrt %151 : vector<32x1xf32>
    %153 = vector.broadcast %152 : vector<32x1xf32> to vector<32x128xf32>
    %154 = arith.mulf %144, %153 : vector<32x128xf32>
    %155 = vector.broadcast %137 : vector<1x128xf32> to vector<32x128xf32>
    %156 = arith.mulf %154, %155 : vector<32x128xf32>
    %157 = vector.broadcast %138 : vector<1x128xf32> to vector<32x128xf32>
    %158 = arith.addf %156, %157 : vector<32x128xf32>
    %c0_61 = arith.constant 0 : index
    %c0_62 = arith.constant 0 : index
    %159 = vector.load %arg21[%c0_61, %c0_62] : memref<32x128xf32, #tpu.memory_space<vmem>>, vector<32x128xf32>
    tpu.vector_store %arg21[%c0_61, %c0_62], %158 {strides = array<i32>} : memref<32x128xf32, #tpu.memory_space<vmem>>, vector<32x128xf32>,
    %c1_i32 = arith.constant 1 : i32
    %160 = arith.cmpi eq, %arg0, %c1_i32 : i32
    %161 = arith.extui %160 : i1 to i32
    %c0_i32_63 = arith.constant 0 : i32
    %162 = arith.cmpi ne, %161, %c0_i32_63 : i32
    scf.if %162 {
      %163 = vector.extract_strided_slice %158 {offsets = [0, 0], sizes = [1, 128], strides = [1, 1]} : vector<32x128xf32> to vector<1x128xf32>
      %164 = vector.extract_strided_slice %158 {offsets = [16, 0], sizes = [1, 128], strides = [1, 1]} : vector<32x128xf32> to vector<1x128xf32>
      %165 = tpu.concatenate %163, %164 in 0 : vector<1x128xf32>, vector<1x128xf32> -> vector<2x128xf32>
      %166 = arith.truncf %165 : vector<2x128xf32> to vector<2x128xbf16>
      %c0_64 = arith.constant 0 : index
      %c0_65 = arith.constant 0 : index
      %167 = vector.load %arg14[%c0_64, %c0_65] : memref<128x128xbf16, #tpu.memory_space<vmem>>, vector<128x128xbf16>
      %cst_66 = arith.constant dense<0.000000e+00> : vector<2x128xf32>
      %168 = tpu.matmul %166, %167, %cst_66 {dimension_numbers = #tpu.dot_dimension_numbers<[1], [0], [0], [1], [0, 0, 1, 1], [], []>} : vector<2x128xbf16>, vector<128x128xbf16>, vector<2x128xf32> -> vector<2x128xf32>
      %c0_67 = arith.constant 0 : index
      %c0_68 = arith.constant 0 : index
      %169 = vector.load %arg15[%c0_67, %c0_68] : memref<1x128xf32, #tpu.memory_space<vmem>>, vector<1x128xf32>
      %170 = vector.broadcast %169 : vector<1x128xf32> to vector<2x128xf32>
      %171 = arith.addf %168, %170 : vector<2x128xf32>
      %172 = math.tanh %171 : vector<2x128xf32>
      %c0_69 = arith.constant 0 : index
      %c0_70 = arith.constant 0 : index
      %173 = vector.load %arg16[%c0_69, %c0_70] : memref<128x8xf32, #tpu.memory_space<vmem>>, vector<128x8xf32>
      %cst_71 = arith.constant dense<0.000000e+00> : vector<2x8xf32>
      %174 = tpu.matmul %172, %173, %cst_71 {dimension_numbers = #tpu.dot_dimension_numbers<[1], [0], [0], [1], [0, 0, 1, 1], [], []>} : vector<2x128xf32>, vector<128x8xf32>, vector<2x8xf32> -> vector<2x8xf32>
      %c0_72 = arith.constant 0 : index
      %c0_73 = arith.constant 0 : index
      %175 = vector.load %arg17[%c0_72, %c0_73] : memref<1x8xf32, #tpu.memory_space<vmem>>, vector<1x8xf32>
      %176 = vector.broadcast %175 : vector<1x8xf32> to vector<2x8xf32>
      %177 = arith.addf %174, %176 : vector<2x8xf32>
      %c0_74 = arith.constant 0 : index
      %c0_75 = arith.constant 0 : index
      %178 = vector.load %arg19[%c0_74, %c0_75] : memref<2x8xf32, #tpu.memory_space<vmem>>, vector<2x8xf32>
      tpu.vector_store %arg19[%c0_74, %c0_75], %177 {strides = array<i32>} : memref<2x8xf32, #tpu.memory_space<vmem>>, vector<2x8xf32>,
      %cst_76 = arith.constant dense<0xFF800000> : vector<2xf32>
      %179 = vector.multi_reduction <maximumf>, %177, %cst_76 [1] : vector<2x8xf32> to vector<2xf32>
      %180 = vector.shape_cast %179 : vector<2xf32> to vector<2x1xf32>
      %181 = vector.broadcast %180 : vector<2x1xf32> to vector<2x8xf32>
      %182 = arith.subf %177, %181 : vector<2x8xf32>
      %183 = math.exp %182 : vector<2x8xf32>
      %cst_77 = arith.constant dense<0.000000e+00> : vector<2xf32>
      %184 = vector.multi_reduction <add>, %183, %cst_77 [1] : vector<2x8xf32> to vector<2xf32>
      %185 = vector.shape_cast %184 : vector<2xf32> to vector<2x1xf32>
      %186 = math.log %185 : vector<2x1xf32>
      %187 = arith.addf %180, %186 : vector<2x1xf32>
      %c0_78 = arith.constant 0 : index
      %c0_79 = arith.constant 0 : index
      %188 = vector.load %arg18[%c0_78, %c0_79] : memref<2x8xf32, #tpu.memory_space<vmem>>, vector<2x8xf32>
      %189 = arith.mulf %188, %177 : vector<2x8xf32>
      %cst_80 = arith.constant dense<0.000000e+00> : vector<2xf32>
      %190 = vector.multi_reduction <add>, %189, %cst_80 [1] : vector<2x8xf32> to vector<2xf32>
      %191 = vector.shape_cast %190 : vector<2xf32> to vector<2x1xf32>
      %192 = arith.subf %187, %191 : vector<2x1xf32>
      %cst_81 = arith.constant dense<0.000000e+00> : vector<1xf32>
      %193 = vector.multi_reduction <add>, %192, %cst_81 [0] : vector<2x1xf32> to vector<1xf32>
      %194 = vector.shape_cast %193 : vector<1xf32> to vector<1x1xf32>
      %cst_82 = arith.constant 5.000000e-01 : f32
      %195 = vector.broadcast %cst_82 : f32 to vector<1x1xf32>
      %196 = arith.mulf %194, %195 : vector<1x1xf32>
      %c0_83 = arith.constant 0 : index
      %c0_84 = arith.constant 0 : index
      %197 = vector.load %arg20[%c0_83, %c0_84] : memref<1x1xf32, #tpu.memory_space<vmem>>, vector<1x1xf32>
      tpu.vector_store %arg20[%c0_83, %c0_84], %196 {strides = array<i32>} : memref<1x1xf32, #tpu.memory_space<vmem>>, vector<1x1xf32>,
    } else {
    }
    return
  }
  func.func @transform_0(%arg0: i32) -> (i32, i32) {
    %c0_i32 = arith.constant 0 : i32
    %c0_i32_0 = arith.constant 0 : i32
    %c0_i32_1 = arith.constant 0 : i32
    return %c0_i32, %c0_i32_0 : i32, i32
  }
  func.func @transform_1(%arg0: i32) -> (i32, i32) {
    %c0_i32 = arith.constant 0 : i32
    %c0_i32_0 = arith.constant 0 : i32
    %c0_i32_1 = arith.constant 0 : i32
    return %c0_i32, %c0_i32_0 : i32, i32
  }
  func.func @transform_2(%arg0: i32) -> (i32, i32) {
    %c0_i32 = arith.constant 0 : i32
    %c0_i32_0 = arith.constant 0 : i32
    %c0_i32_1 = arith.constant 0 : i32
    return %c0_i32, %c0_i32_0 : i32, i32
  }
  func.func @transform_3(%arg0: i32) -> (i32, i32, i32) {
    %c0_i32 = arith.constant 0 : i32
    %c0_i32_0 = arith.constant 0 : i32
    %c0_i32_1 = arith.constant 0 : i32
    return %arg0, %c0_i32, %c0_i32_0 : i32, i32, i32
  }
  func.func @transform_4(%arg0: i32) -> (i32, i32, i32) {
    %c0_i32 = arith.constant 0 : i32
    %c0_i32_0 = arith.constant 0 : i32
    %c0_i32_1 = arith.constant 0 : i32
    return %arg0, %c0_i32, %c0_i32_0 : i32, i32, i32
  }
  func.func @transform_5(%arg0: i32) -> (i32, i32, i32) {
    %c0_i32 = arith.constant 0 : i32
    %c0_i32_0 = arith.constant 0 : i32
    %c0_i32_1 = arith.constant 0 : i32
    return %arg0, %c0_i32, %c0_i32_0 : i32, i32, i32
  }
  func.func @transform_6(%arg0: i32) -> (i32, i32, i32) {
    %c0_i32 = arith.constant 0 : i32
    %c0_i32_0 = arith.constant 0 : i32
    %c0_i32_1 = arith.constant 0 : i32
    return %arg0, %c0_i32, %c0_i32_0 : i32, i32, i32
  }
  func.func @transform_7(%arg0: i32) -> (i32, i32, i32) {
    %c0_i32 = arith.constant 0 : i32
    %c0_i32_0 = arith.constant 0 : i32
    %c0_i32_1 = arith.constant 0 : i32
    return %arg0, %c0_i32, %c0_i32_0 : i32, i32, i32
  }
  func.func @transform_8(%arg0: i32) -> (i32, i32, i32) {
    %c0_i32 = arith.constant 0 : i32
    %c0_i32_0 = arith.constant 0 : i32
    %c0_i32_1 = arith.constant 0 : i32
    return %arg0, %c0_i32, %c0_i32_0 : i32, i32, i32
  }
  func.func @transform_9(%arg0: i32) -> (i32, i32, i32) {
    %c0_i32 = arith.constant 0 : i32
    %c0_i32_0 = arith.constant 0 : i32
    %c0_i32_1 = arith.constant 0 : i32
    return %arg0, %c0_i32, %c0_i32_0 : i32, i32, i32
  }
  func.func @transform_10(%arg0: i32) -> (i32, i32, i32) {
    %c0_i32 = arith.constant 0 : i32
    %c0_i32_0 = arith.constant 0 : i32
    %c0_i32_1 = arith.constant 0 : i32
    return %arg0, %c0_i32, %c0_i32_0 : i32, i32, i32
  }
  func.func @transform_11(%arg0: i32) -> (i32, i32, i32) {
    %c0_i32 = arith.constant 0 : i32
    %c0_i32_0 = arith.constant 0 : i32
    %c0_i32_1 = arith.constant 0 : i32
    return %arg0, %c0_i32, %c0_i32_0 : i32, i32, i32
  }
  func.func @transform_12(%arg0: i32) -> (i32, i32, i32) {
    %c0_i32 = arith.constant 0 : i32
    %c0_i32_0 = arith.constant 0 : i32
    %c0_i32_1 = arith.constant 0 : i32
    return %arg0, %c0_i32, %c0_i32_0 : i32, i32, i32
  }
  func.func @transform_13(%arg0: i32) -> (i32, i32) {
    %c0_i32 = arith.constant 0 : i32
    %c0_i32_0 = arith.constant 0 : i32
    %c0_i32_1 = arith.constant 0 : i32
    return %c0_i32, %c0_i32_0 : i32, i32
  }
  func.func @transform_14(%arg0: i32) -> (i32, i32) {
    %c0_i32 = arith.constant 0 : i32
    %c0_i32_0 = arith.constant 0 : i32
    %c0_i32_1 = arith.constant 0 : i32
    return %c0_i32, %c0_i32_0 : i32, i32
  }
  func.func @transform_15(%arg0: i32) -> (i32, i32) {
    %c0_i32 = arith.constant 0 : i32
    %c0_i32_0 = arith.constant 0 : i32
    %c0_i32_1 = arith.constant 0 : i32
    return %c0_i32, %c0_i32_0 : i32, i32
  }
  func.func @transform_16(%arg0: i32) -> (i32, i32) {
    %c0_i32 = arith.constant 0 : i32
    %c0_i32_0 = arith.constant 0 : i32
    %c0_i32_1 = arith.constant 0 : i32
    return %c0_i32, %c0_i32_0 : i32, i32
  }
  func.func @transform_17(%arg0: i32) -> (i32, i32) {
    %c0_i32 = arith.constant 0 : i32
    %c0_i32_0 = arith.constant 0 : i32
    %c0_i32_1 = arith.constant 0 : i32
    return %c0_i32, %c0_i32_0 : i32, i32
  }
  func.func @transform_18(%arg0: i32) -> (i32, i32) {
    %c0_i32 = arith.constant 0 : i32
    %c0_i32_0 = arith.constant 0 : i32
    %c0_i32_1 = arith.constant 0 : i32
    return %c0_i32, %c0_i32_0 : i32, i32
  }
  func.func @transform_19(%arg0: i32) -> (i32, i32) {
    %c0_i32 = arith.constant 0 : i32
    %c0_i32_0 = arith.constant 0 : i32
    %c0_i32_1 = arith.constant 0 : i32
    return %c0_i32, %c0_i32_0 : i32, i32
  }
}

</mosaic_0001>

<llo_original>
// kernel: bert_classifier_forward.1
$region0: #{bert_classifier_forward.1}
  #allocation0 [shape = 'u32[]', space=smem, size = 0x4, offset = 0x4, fixed_abs, tag = 'smem constant byte address 0x4 - core index']
  #allocation1 [shape = 'u32[144,128]{1,0:T(1,128)}', space=vmem, size = 0x12000, scoped, tag = 'internal scratch']
  #allocation2 [shape = 'f32[32,128]{1,0:T(8,128)}', space=vmem, size = 0x4000, scoped, tag = 'scratch operand']
  %s0 = inlined_call_operand.vmem [shape: f32[32,128], index: 0, kind: input, shape index: {}]
  %s1 = inlined_call_operand.vmem [shape: f32[2,16], index: 1, kind: input, shape index: {}]
  %s2 = inlined_call_operand.vmem [shape: f32[2,128], index: 2, kind: input, shape index: {}]
  %s3 = inlined_call_operand.vmem [shape: bf16[2,128,384], index: 3, kind: input, shape index: {}]
  %s4 = inlined_call_operand.vmem [shape: f32[2,1,384], index: 4, kind: input, shape index: {}]
  %s5 = inlined_call_operand.vmem [shape: bf16[2,128,128], index: 5, kind: input, shape index: {}]
  %s6 = inlined_call_operand.vmem [shape: f32[2,1,128], index: 6, kind: input, shape index: {}]
  %s7 = inlined_call_operand.vmem [shape: f32[2,2,128], index: 7, kind: input, shape index: {}]
  %s8 = inlined_call_operand.vmem [shape: bf16[2,128,256], index: 8, kind: input, shape index: {}]
  %s9 = inlined_call_operand.vmem [shape: f32[2,1,256], index: 9, kind: input, shape index: {}]
  %s10 = inlined_call_operand.vmem [shape: bf16[2,256,128], index: 10, kind: input, shape index: {}]
  %s11 = inlined_call_operand.vmem [shape: f32[2,1,128], index: 11, kind: input, shape index: {}]
  %s12 = inlined_call_operand.vmem [shape: f32[2,2,128], index: 12, kind: input, shape index: {}]
  %s13 = inlined_call_operand.vmem [shape: bf16[128,128], index: 13, kind: input, shape index: {}]
  %s14 = inlined_call_operand.vmem [shape: f32[1,128], index: 14, kind: input, shape index: {}]
  %s15 = inlined_call_operand.vmem [shape: f32[128,8], index: 15, kind: input, shape index: {}]
  %s16 = inlined_call_operand.vmem [shape: f32[1,8], index: 16, kind: input, shape index: {}]
  %s17 = inlined_call_operand.vmem [shape: f32[2,8], index: 17, kind: input, shape index: {}]
  %s18 = inlined_call_operand.hbm [shape: f32[2,8], index: 18, kind: output, shape index: {0}]
  %s19 = inlined_call_operand.hbm [shape: f32[1,1], index: 19, kind: output, shape index: {1}]
  %20 = xla_tuple %s18, %s19
  %s21 = sld [smem:[#allocation0]]
  $region121: #{bert_classifier_forward.1} parent=0
    _
  %s23 = ssub.s32 1, %s21
  %s24 = scalar_select 0, %s23, %s21
  $region1: #{bert_classifier_forward.1} parent=0
    #allocation3 [shape = 'u8[1024]{0}', space=vmem, size = 0x400, scoped, tag = 'output window, operand 0, single buffered']
    #allocation4 [shape = 's32[2]{0}', space=sflag, size = 0x8, scoped, tag = 'scoped memory for bert_classifier_forward.1']
    #allocation5 [shape = 'u8[512]{0}', space=vmem, size = 0x400, scoped, tag = 'output window, operand 1, single buffered']
    #allocation6 [shape = 's32[1]{0}', space=sflag, size = 0x4, scoped, tag = 'scoped memory for bert_classifier_forward.1']
    %25 = vsyncpa [#allocation4], 0
    %26 = vsyncpa [#allocation6], 0
    loop: start=0, step=1, limit=4
    $region2: #{bert_classifier_forward.1} parent=1 // loop_pre_header
      _
    $region3: #{bert_classifier_forward.1} parent=1 // loop_header
      %s28 = sphi 0, %s32
      %p29 = scmp.ge.s32.totalorder %s28, 4
      %s36 = sphi 0, %s36
      %s38 = sphi 0, %s36
      %s39 = sphi 0, %s38
      %s53 = sphi 0, %s39
      %s57 = sphi 0, %s57
      %s59 = sphi 0, %s57
      %s60 = sphi 0, %s59
      %s74 = sphi 0, %s60
      %s78 = sphi 0, %s78
      %s80 = sphi 0, %s78
      %s81 = sphi 0, %s80
      %s95 = sphi 0, %s81
      %s101 = sphi 0, %s103
      %s104 = sphi 0, %s101
      %s105 = sphi 0, %s104
      %s121 = sphi 0, %s105
      %s127 = sphi 0, %s129
      %s130 = sphi 0, %s127
      %s131 = sphi 0, %s130
      %s147 = sphi 0, %s131
      %s153 = sphi 0, %s155
      %s156 = sphi 0, %s153
      %s157 = sphi 0, %s156
      %s173 = sphi 0, %s157
      %s179 = sphi 0, %s181
      %s182 = sphi 0, %s179
      %s183 = sphi 0, %s182
      %s199 = sphi 0, %s183
      %s205 = sphi 0, %s207
      %s208 = sphi 0, %s205
      %s209 = sphi 0, %s208
      %s225 = sphi 0, %s209
      %s231 = sphi 0, %s233
      %s234 = sphi 0, %s231
      %s235 = sphi 0, %s234
      %s251 = sphi 0, %s235
      %s257 = sphi 0, %s259
      %s260 = sphi 0, %s257
      %s261 = sphi 0, %s260
      %s277 = sphi 0, %s261
      %s283 = sphi 0, %s285
      %s286 = sphi 0, %s283
      %s287 = sphi 0, %s286
      %s303 = sphi 0, %s287
      %s309 = sphi 0, %s311
      %s312 = sphi 0, %s309
      %s313 = sphi 0, %s312
      %s329 = sphi 0, %s313
      %s335 = sphi 0, %s337
      %s338 = sphi 0, %s335
      %s339 = sphi 0, %s338
      %s355 = sphi 0, %s339
      %s359 = sphi 0, %s359
      %s361 = sphi 0, %s359
      %s362 = sphi 0, %s361
      %s376 = sphi 0, %s362
      %s380 = sphi 0, %s380
      %s382 = sphi 0, %s380
      %s383 = sphi 0, %s382
      %s397 = sphi 0, %s383
      %s401 = sphi 0, %s401
      %s403 = sphi 0, %s401
      %s404 = sphi 0, %s403
      %s418 = sphi 0, %s404
      %s422 = sphi 0, %s422
      %s424 = sphi 0, %s422
      %s425 = sphi 0, %s424
      %s439 = sphi 0, %s425
      %s443 = sphi 0, %s443
      %s445 = sphi 0, %s443
      %s446 = sphi 0, %s445
      %s460 = sphi 0, %s446
      %s464 = sphi 0, %s464
      %s466 = sphi 0, %s464
      %s467 = sphi 0, %s466
      %s481 = sphi 0, %s467
      %s485 = sphi 0, %s485
      %s487 = sphi 0, %s485
      %s488 = sphi 0, %s487
      %s502 = sphi 0, %s488
    $region4: #{bert_classifier_forward.1} parent=1 // loop_header_branch
      %31 = sbr.rel (%p29) target = $region8
    $region5: #{bert_classifier_forward.1} parent=1 // loop_body
      %s33 = ssub.s32 %s28, 1
      %s34 = ssub.s32 %s28, 2
      %s35 = sadd.s32 %s28, 1
      %s37 = sadd.s32 %s36, 1
      %p40 = scmp.eq.s32.totalorder %s28, 1
      %p41 = scmp.ne.s32.totalorder %s36, %s38
      %p42 = scmp.eq.s32.totalorder %s28, 0
      %p43 = por %p41, %p42
      %p44 = scmp.ne.s32.totalorder %s36, %s38
      %p45 = scmp.eq.s32.totalorder %s33, 1
      %p46 = por %p44, %p45
      %p47 = scmp.ne.s32.totalorder %s38, %s39
      %p48 = scmp.eq.s32.totalorder %s33, 0
      %p49 = por %p47, %p48
      %p50 = scmp.ne.s32.totalorder %s38, %s39
      %p51 = scmp.eq.s32.totalorder %s34, 1
      %p52 = por %p50, %p51
      %p54 = scmp.ne.s32.totalorder %s39, %s53
      %p55 = scmp.eq.s32.totalorder %s34, 0
      %p56 = por %p54, %p55
      %s58 = sadd.s32 %s57, 1
      %p61 = scmp.eq.s32.totalorder %s28, 1
      %p62 = scmp.ne.s32.totalorder %s57, %s59
      %p63 = scmp.eq.s32.totalorder %s28, 0
      %p64 = por %p62, %p63
      %p65 = scmp.ne.s32.totalorder %s57, %s59
      %p66 = scmp.eq.s32.totalorder %s33, 1
      %p67 = por %p65, %p66
      %p68 = scmp.ne.s32.totalorder %s59, %s60
      %p69 = scmp.eq.s32.totalorder %s33, 0
      %p70 = por %p68, %p69
      %p71 = scmp.ne.s32.totalorder %s59, %s60
      %p72 = scmp.eq.s32.totalorder %s34, 1
      %p73 = por %p71, %p72
      %p75 = scmp.ne.s32.totalorder %s60, %s74
      %p76 = scmp.eq.s32.totalorder %s34, 0
      %p77 = por %p75, %p76
      %s79 = sadd.s32 %s78, 1
      %p82 = scmp.eq.s32.totalorder %s28, 1
      %p83 = scmp.ne.s32.totalorder %s78, %s80
      %p84 = scmp.eq.s32.totalorder %s28, 0
      %p85 = por %p83, %p84
      %p86 = scmp.ne.s32.totalorder %s78, %s80
      %p87 = scmp.eq.s32.totalorder %s33, 1
      %p88 = por %p86, %p87
      %p89 = scmp.ne.s32.totalorder %s80, %s81
      %p90 = scmp.eq.s32.totalorder %s33, 0
      %p91 = por %p89, %p90
      %p92 = scmp.ne.s32.totalorder %s80, %s81
      %p93 = scmp.eq.s32.totalorder %s34, 1
      %p94 = por %p92, %p93
      %p96 = scmp.ne.s32.totalorder %s81, %s95
      %p97 = scmp.eq.s32.totalorder %s34, 0
      %p98 = por %p96, %p97
      %s99 = ssub.s32 %s28, %s35
      %p100 = scmp.eq.s32.totalorder %s99, 0
      %s102 = sadd.s32 %s101, 1
      %s103 = scalar_select %p100, %s101, %s102
      %p106 = pneg %p100
      %p107 = scmp.eq.s32.totalorder %s28, 1
      %p108 = por %p106, %p107
      %p109 = scmp.ne.s32.totalorder %s101, %s104
      %p110 = scmp.eq.s32.totalorder %s28, 0
      %p111 = por %p109, %p110
      %p112 = scmp.ne.s32.totalorder %s101, %s104
      %p113 = scmp.eq.s32.totalorder %s33, 1
      %p114 = por %p112, %p113
      %p115 = scmp.ne.s32.totalorder %s104, %s105
      %p116 = scmp.eq.s32.totalorder %s33, 0
      %p117 = por %p115, %p116
      %p118 = scmp.ne.s32.totalorder %s104, %s105
      %p119 = scmp.eq.s32.totalorder %s34, 1
      %p120 = por %p118, %p119
      %p122 = scmp.ne.s32.totalorder %s105, %s121
      %p123 = scmp.eq.s32.totalorder %s34, 0
      %p124 = por %p122, %p123
      %s125 = ssub.s32 %s28, %s35
      %p126 = scmp.eq.s32.totalorder %s125, 0
      %s128 = sadd.s32 %s127, 1
      %s129 = scalar_select %p126, %s127, %s128
      %p132 = pneg %p126
      %p133 = scmp.eq.s32.totalorder %s28, 1
      %p134 = por %p132, %p133
      %p135 = scmp.ne.s32.totalorder %s127, %s130
      %p136 = scmp.eq.s32.totalorder %s28, 0
      %p137 = por %p135, %p136
      %p138 = scmp.ne.s32.totalorder %s127, %s130
      %p139 = scmp.eq.s32.totalorder %s33, 1
      %p140 = por %p138, %p139
      %p141 = scmp.ne.s32.totalorder %s130, %s131
      %p142 = scmp.eq.s32.totalorder %s33, 0
      %p143 = por %p141, %p142
      %p144 = scmp.ne.s32.totalorder %s130, %s131
      %p145 = scmp.eq.s32.totalorder %s34, 1
      %p146 = por %p144, %p145
      %p148 = scmp.ne.s32.totalorder %s131, %s147
      %p149 = scmp.eq.s32.totalorder %s34, 0
      %p150 = por %p148, %p149
      %s151 = ssub.s32 %s28, %s35
      %p152 = scmp.eq.s32.totalorder %s151, 0
      %s154 = sadd.s32 %s153, 1
      %s155 = scalar_select %p152, %s153, %s154
      %p158 = pneg %p152
      %p159 = scmp.eq.s32.totalorder %s28, 1
      %p160 = por %p158, %p159
      %p161 = scmp.ne.s32.totalorder %s153, %s156
      %p162 = scmp.eq.s32.totalorder %s28, 0
      %p163 = por %p161, %p162
      %p164 = scmp.ne.s32.totalorder %s153, %s156
      %p165 = scmp.eq.s32.totalorder %s33, 1
      %p166 = por %p164, %p165
      %p167 = scmp.ne.s32.totalorder %s156, %s157
      %p168 = scmp.eq.s32.totalorder %s33, 0
      %p169 = por %p167, %p168
      %p170 = scmp.ne.s32.totalorder %s156, %s157
      %p171 = scmp.eq.s32.totalorder %s34, 1
      %p172 = por %p170, %p171
      %p174 = scmp.ne.s32.totalorder %s157, %s173
      %p175 = scmp.eq.s32.totalorder %s34, 0
      %p176 = por %p174, %p175
      %s177 = ssub.s32 %s28, %s35
      %p178 = scmp.eq.s32.totalorder %s177, 0
      %s180 = sadd.s32 %s179, 1
      %s181 = scalar_select %p178, %s179, %s180
      %p184 = pneg %p178
      %p185 = scmp.eq.s32.totalorder %s28, 1
      %p186 = por %p184, %p185
      %p187 = scmp.ne.s32.totalorder %s179, %s182
      %p188 = scmp.eq.s32.totalorder %s28, 0
      %p189 = por %p187, %p188
      %p190 = scmp.ne.s32.totalorder %s179, %s182
      %p191 = scmp.eq.s32.totalorder %s33, 1
      %p192 = por %p190, %p191
      %p193 = scmp.ne.s32.totalorder %s182, %s183
      %p194 = scmp.eq.s32.totalorder %s33, 0
      %p195 = por %p193, %p194
      %p196 = scmp.ne.s32.totalorder %s182, %s183
      %p197 = scmp.eq.s32.totalorder %s34, 1
      %p198 = por %p196, %p197
      %p200 = scmp.ne.s32.totalorder %s183, %s199
      %p201 = scmp.eq.s32.totalorder %s34, 0
      %p202 = por %p200, %p201
      %s203 = ssub.s32 %s28, %s35
      %p204 = scmp.eq.s32.totalorder %s203, 0
      %s206 = sadd.s32 %s205, 1
      %s207 = scalar_select %p204, %s205, %s206
      %p210 = pneg %p204
      %p211 = scmp.eq.s32.totalorder %s28, 1
      %p212 = por %p210, %p211
      %p213 = scmp.ne.s32.totalorder %s205, %s208
      %p214 = scmp.eq.s32.totalorder %s28, 0
      %p215 = por %p213, %p214
      %p216 = scmp.ne.s32.totalorder %s205, %s208
      %p217 = scmp.eq.s32.totalorder %s33, 1
      %p218 = por %p216, %p217
      %p219 = scmp.ne.s32.totalorder %s208, %s209
      %p220 = scmp.eq.s32.totalorder %s33, 0
      %p221 = por %p219, %p220
      %p222 = scmp.ne.s32.totalorder %s208, %s209
      %p223 = scmp.eq.s32.totalorder %s34, 1
      %p224 = por %p222, %p223
      %p226 = scmp.ne.s32.totalorder %s209, %s225
      %p227 = scmp.eq.s32.totalorder %s34, 0
      %p228 = por %p226, %p227
      %s229 = ssub.s32 %s28, %s35
      %p230 = scmp.eq.s32.totalorder %s229, 0
      %s232 = sadd.s32 %s231, 1
      %s233 = scalar_select %p230, %s231, %s232
      %p236 = pneg %p230
      %p237 = scmp.eq.s32.totalorder %s28, 1
      %p238 = por %p236, %p237
      %p239 = scmp.ne.s32.totalorder %s231, %s234
      %p240 = scmp.eq.s32.totalorder %s28, 0
      %p241 = por %p239, %p240
      %p242 = scmp.ne.s32.totalorder %s231, %s234
      %p243 = scmp.eq.s32.totalorder %s33, 1
      %p244 = por %p242, %p243
      %p245 = scmp.ne.s32.totalorder %s234, %s235
      %p246 = scmp.eq.s32.totalorder %s33, 0
      %p247 = por %p245, %p246
      %p248 = scmp.ne.s32.totalorder %s234, %s235
      %p249 = scmp.eq.s32.totalorder %s34, 1
      %p250 = por %p248, %p249
      %p252 = scmp.ne.s32.totalorder %s235, %s251
      %p253 = scmp.eq.s32.totalorder %s34, 0
      %p254 = por %p252, %p253
      %s255 = ssub.s32 %s28, %s35
      %p256 = scmp.eq.s32.totalorder %s255, 0
      %s258 = sadd.s32 %s257, 1
      %s259 = scalar_select %p256, %s257, %s258
      %p262 = pneg %p256
      %p263 = scmp.eq.s32.totalorder %s28, 1
      %p264 = por %p262, %p263
      %p265 = scmp.ne.s32.totalorder %s257, %s260
      %p266 = scmp.eq.s32.totalorder %s28, 0
      %p267 = por %p265, %p266
      %p268 = scmp.ne.s32.totalorder %s257, %s260
      %p269 = scmp.eq.s32.totalorder %s33, 1
      %p270 = por %p268, %p269
      %p271 = scmp.ne.s32.totalorder %s260, %s261
      %p272 = scmp.eq.s32.totalorder %s33, 0
      %p273 = por %p271, %p272
      %p274 = scmp.ne.s32.totalorder %s260, %s261
      %p275 = scmp.eq.s32.totalorder %s34, 1
      %p276 = por %p274, %p275
      %p278 = scmp.ne.s32.totalorder %s261, %s277
      %p279 = scmp.eq.s32.totalorder %s34, 0
      %p280 = por %p278, %p279
      %s281 = ssub.s32 %s28, %s35
      %p282 = scmp.eq.s32.totalorder %s281, 0
      %s284 = sadd.s32 %s283, 1
      %s285 = scalar_select %p282, %s283, %s284
      %p288 = pneg %p282
      %p289 = scmp.eq.s32.totalorder %s28, 1
      %p290 = por %p288, %p289
      %p291 = scmp.ne.s32.totalorder %s283, %s286
      %p292 = scmp.eq.s32.totalorder %s28, 0
      %p293 = por %p291, %p292
      %p294 = scmp.ne.s32.totalorder %s283, %s286
      %p295 = scmp.eq.s32.totalorder %s33, 1
      %p296 = por %p294, %p295
      %p297 = scmp.ne.s32.totalorder %s286, %s287
      %p298 = scmp.eq.s32.totalorder %s33, 0
      %p299 = por %p297, %p298
      %p300 = scmp.ne.s32.totalorder %s286, %s287
      %p301 = scmp.eq.s32.totalorder %s34, 1
      %p302 = por %p300, %p301
      %p304 = scmp.ne.s32.totalorder %s287, %s303
      %p305 = scmp.eq.s32.totalorder %s34, 0
      %p306 = por %p304, %p305
      %s307 = ssub.s32 %s28, %s35
      %p308 = scmp.eq.s32.totalorder %s307, 0
      %s310 = sadd.s32 %s309, 1
      %s311 = scalar_select %p308, %s309, %s310
      %p314 = pneg %p308
      %p315 = scmp.eq.s32.totalorder %s28, 1
      %p316 = por %p314, %p315
      %p317 = scmp.ne.s32.totalorder %s309, %s312
      %p318 = scmp.eq.s32.totalorder %s28, 0
      %p319 = por %p317, %p318
      %p320 = scmp.ne.s32.totalorder %s309, %s312
      %p321 = scmp.eq.s32.totalorder %s33, 1
      %p322 = por %p320, %p321
      %p323 = scmp.ne.s32.totalorder %s312, %s313
      %p324 = scmp.eq.s32.totalorder %s33, 0
      %p325 = por %p323, %p324
      %p326 = scmp.ne.s32.totalorder %s312, %s313
      %p327 = scmp.eq.s32.totalorder %s34, 1
      %p328 = por %p326, %p327
      %p330 = scmp.ne.s32.totalorder %s313, %s329
      %p331 = scmp.eq.s32.totalorder %s34, 0
      %p332 = por %p330, %p331
      %s333 = ssub.s32 %s28, %s35
      %p334 = scmp.eq.s32.totalorder %s333, 0
      %s336 = sadd.s32 %s335, 1
      %s337 = scalar_select %p334, %s335, %s336
      %p340 = pneg %p334
      %p341 = scmp.eq.s32.totalorder %s28, 1
      %p342 = por %p340, %p341
      %p343 = scmp.ne.s32.totalorder %s335, %s338
      %p344 = scmp.eq.s32.totalorder %s28, 0
      %p345 = por %p343, %p344
      %p346 = scmp.ne.s32.totalorder %s335, %s338
      %p347 = scmp.eq.s32.totalorder %s33, 1
      %p348 = por %p346, %p347
      %p349 = scmp.ne.s32.totalorder %s338, %s339
      %p350 = scmp.eq.s32.totalorder %s33, 0
      %p351 = por %p349, %p350
      %p352 = scmp.ne.s32.totalorder %s338, %s339
      %p353 = scmp.eq.s32.totalorder %s34, 1
      %p354 = por %p352, %p353
      %p356 = scmp.ne.s32.totalorder %s339, %s355
      %p357 = scmp.eq.s32.totalorder %s34, 0
      %p358 = por %p356, %p357
      %s360 = sadd.s32 %s359, 1
      %p363 = scmp.eq.s32.totalorder %s28, 1
      %p364 = scmp.ne.s32.totalorder %s359, %s361
      %p365 = scmp.eq.s32.totalorder %s28, 0
      %p366 = por %p364, %p365
      %p367 = scmp.ne.s32.totalorder %s359, %s361
      %p368 = scmp.eq.s32.totalorder %s33, 1
      %p369 = por %p367, %p368
      %p370 = scmp.ne.s32.totalorder %s361, %s362
      %p371 = scmp.eq.s32.totalorder %s33, 0
      %p372 = por %p370, %p371
      %p373 = scmp.ne.s32.totalorder %s361, %s362
      %p374 = scmp.eq.s32.totalorder %s34, 1
      %p375 = por %p373, %p374
      %p377 = scmp.ne.s32.totalorder %s362, %s376
      %p378 = scmp.eq.s32.totalorder %s34, 0
      %p379 = por %p377, %p378
      %s381 = sadd.s32 %s380, 1
      %p384 = scmp.eq.s32.totalorder %s28, 1
      %p385 = scmp.ne.s32.totalorder %s380, %s382
      %p386 = scmp.eq.s32.totalorder %s28, 0
      %p387 = por %p385, %p386
      %p388 = scmp.ne.s32.totalorder %s380, %s382
      %p389 = scmp.eq.s32.totalorder %s33, 1
      %p390 = por %p388, %p389
      %p391 = scmp.ne.s32.totalorder %s382, %s383
      %p392 = scmp.eq.s32.totalorder %s33, 0
      %p393 = por %p391, %p392
      %p394 = scmp.ne.s32.totalorder %s382, %s383
      %p395 = scmp.eq.s32.totalorder %s34, 1
      %p396 = por %p394, %p395
      %p398 = scmp.ne.s32.totalorder %s383, %s397
      %p399 = scmp.eq.s32.totalorder %s34, 0
      %p400 = por %p398, %p399
      %s402 = sadd.s32 %s401, 1
      %p405 = scmp.eq.s32.totalorder %s28, 1
      %p406 = scmp.ne.s32.totalorder %s401, %s403
      %p407 = scmp.eq.s32.totalorder %s28, 0
      %p408 = por %p406, %p407
      %p409 = scmp.ne.s32.totalorder %s401, %s403
      %p410 = scmp.eq.s32.totalorder %s33, 1
      %p411 = por %p409, %p410
      %p412 = scmp.ne.s32.totalorder %s403, %s404
      %p413 = scmp.eq.s32.totalorder %s33, 0
      %p414 = por %p412, %p413
      %p415 = scmp.ne.s32.totalorder %s403, %s404
      %p416 = scmp.eq.s32.totalorder %s34, 1
      %p417 = por %p415, %p416
      %p419 = scmp.ne.s32.totalorder %s404, %s418
      %p420 = scmp.eq.s32.totalorder %s34, 0
      %p421 = por %p419, %p420
      %s423 = sadd.s32 %s422, 1
      %p426 = scmp.eq.s32.totalorder %s28, 1
      %p427 = scmp.ne.s32.totalorder %s422, %s424
      %p428 = scmp.eq.s32.totalorder %s28, 0
      %p429 = por %p427, %p428
      %p430 = scmp.ne.s32.totalorder %s422, %s424
      %p431 = scmp.eq.s32.totalorder %s33, 1
      %p432 = por %p430, %p431
      %p433 = scmp.ne.s32.totalorder %s424, %s425
      %p434 = scmp.eq.s32.totalorder %s33, 0
      %p435 = por %p433, %p434
      %p436 = scmp.ne.s32.totalorder %s424, %s425
      %p437 = scmp.eq.s32.totalorder %s34, 1
      %p438 = por %p436, %p437
      %p440 = scmp.ne.s32.totalorder %s425, %s439
      %p441 = scmp.eq.s32.totalorder %s34, 0
      %p442 = por %p440, %p441
      %s444 = sadd.s32 %s443, 1
      %p447 = scmp.eq.s32.totalorder %s28, 1
      %p448 = scmp.ne.s32.totalorder %s443, %s445
      %p449 = scmp.eq.s32.totalorder %s28, 0
      %p450 = por %p448, %p449
      %p451 = scmp.ne.s32.totalorder %s443, %s445
      %p452 = scmp.eq.s32.totalorder %s33, 1
      %p453 = por %p451, %p452
      %p454 = scmp.ne.s32.totalorder %s445, %s446
      %p455 = scmp.eq.s32.totalorder %s33, 0
      %p456 = por %p454, %p455
      %p457 = scmp.ne.s32.totalorder %s445, %s446
      %p458 = scmp.eq.s32.totalorder %s34, 1
      %p459 = por %p457, %p458
      %p461 = scmp.ne.s32.totalorder %s446, %s460
      %p462 = scmp.eq.s32.totalorder %s34, 0
      %p463 = por %p461, %p462
      %s465 = sadd.s32 %s464, 1
      %p468 = scmp.eq.s32.totalorder %s28, 1
      %p469 = scmp.ne.s32.totalorder %s464, %s466
      %p470 = scmp.eq.s32.totalorder %s28, 0
      %p471 = por %p469, %p470
      %p472 = scmp.ne.s32.totalorder %s464, %s466
      %p473 = scmp.eq.s32.totalorder %s33, 1
      %p474 = por %p472, %p473
      %p475 = scmp.ne.s32.totalorder %s466, %s467
      %p476 = scmp.eq.s32.totalorder %s33, 0
      %p477 = por %p475, %p476
      %p478 = scmp.ne.s32.totalorder %s466, %s467
      %p479 = scmp.eq.s32.totalorder %s34, 1
      %p480 = por %p478, %p479
      %p482 = scmp.ne.s32.totalorder %s467, %s481
      %p483 = scmp.eq.s32.totalorder %s34, 0
      %p484 = por %p482, %p483
      %s486 = sadd.s32 %s485, 1
      %p489 = scmp.eq.s32.totalorder %s28, 1
      %p490 = scmp.ne.s32.totalorder %s485, %s487
      %p491 = scmp.eq.s32.totalorder %s28, 0
      %p492 = por %p490, %p491
      %p493 = scmp.ne.s32.totalorder %s485, %s487
      %p494 = scmp.eq.s32.totalorder %s33, 1
      %p495 = por %p493, %p494
      %p496 = scmp.ne.s32.totalorder %s487, %s488
      %p497 = scmp.eq.s32.totalorder %s33, 0
      %p498 = por %p496, %p497
      %p499 = scmp.ne.s32.totalorder %s487, %s488
      %p500 = scmp.eq.s32.totalorder %s34, 1
      %p501 = por %p499, %p500
      %p503 = scmp.ne.s32.totalorder %s488, %s502
      %p504 = scmp.eq.s32.totalorder %s34, 0
      %p505 = por %p503, %p504
      %p506 = scmp.le.s32.totalorder 1, %s28
      %p507 = scmp.lt.s32.totalorder %s28, 3
      %p508 = pnand %p506, %p507
      %p509 = pneg %p508
      // Predicated region
      $region9: #{bert_classifier_forward.1} parent=5 // pred_check
        _
      $region10: #{bert_classifier_forward.1} parent=5 // pred_check_branch
        %511 = sbr.rel (%p508) target = $region12
      $region11: #{bert_classifier_forward.1} parent=5 // pred_region
        %s512 = ssub.s32 %s28, 1
        // Predicated region
        $region13: #{bert_classifier_forward.1} parent=11 // pred_check
          %p513 = pneg %p49
        $region14: #{bert_classifier_forward.1} parent=11 // pred_check_branch
          %515 = sbr.rel (%p513) target = $region16
        $region15: #{bert_classifier_forward.1} parent=11 // pred_region
          _
        $region16: #{bert_classifier_forward.1} parent=11 // pred_fallthru
          _
        // Predicated region
        $region17: #{bert_classifier_forward.1} parent=11 // pred_check
          %p516 = pneg %p70
        $region18: #{bert_classifier_forward.1} parent=11 // pred_check_branch
          %518 = sbr.rel (%p516) target = $region20
        $region19: #{bert_classifier_forward.1} parent=11 // pred_region
          _
        $region20: #{bert_classifier_forward.1} parent=11 // pred_fallthru
          _
        // Predicated region
        $region21: #{bert_classifier_forward.1} parent=11 // pred_check
          %p519 = pneg %p91
        $region22: #{bert_classifier_forward.1} parent=11 // pred_check_branch
          %521 = sbr.rel (%p519) target = $region24
        $region23: #{bert_classifier_forward.1} parent=11 // pred_region
          _
        $region24: #{bert_classifier_forward.1} parent=11 // pred_fallthru
          _
        // Predicated region
        $region25: #{bert_classifier_forward.1} parent=11 // pred_check
          %p522 = pneg %p372
        $region26: #{bert_classifier_forward.1} parent=11 // pred_check_branch
          %524 = sbr.rel (%p522) target = $region28
        $region27: #{bert_classifier_forward.1} parent=11 // pred_region
          _
        $region28: #{bert_classifier_forward.1} parent=11 // pred_fallthru
          _
        // Predicated region
        $region29: #{bert_classifier_forward.1} parent=11 // pred_check
          %p525 = pneg %p393
        $region30: #{bert_classifier_forward.1} parent=11 // pred_check_branch
          %527 = sbr.rel (%p525) target = $region32
        $region31: #{bert_classifier_forward.1} parent=11 // pred_region
          _
        $region32: #{bert_classifier_forward.1} parent=11 // pred_fallthru
          _
        // Predicated region
        $region33: #{bert_classifier_forward.1} parent=11 // pred_check
          %p528 = pneg %p414
        $region34: #{bert_classifier_forward.1} parent=11 // pred_check_branch
          %530 = sbr.rel (%p528) target = $region36
        $region35: #{bert_classifier_forward.1} parent=11 // pred_region
          _
        $region36: #{bert_classifier_forward.1} parent=11 // pred_fallthru
          _
        // Predicated region
        $region37: #{bert_classifier_forward.1} parent=11 // pred_check
          %p531 = pneg %p435
        $region38: #{bert_classifier_forward.1} parent=11 // pred_check_branch
          %533 = sbr.rel (%p531) target = $region40
        $region39: #{bert_classifier_forward.1} parent=11 // pred_region
          _
        $region40: #{bert_classifier_forward.1} parent=11 // pred_fallthru
          _
        // Predicated region
        $region41: #{bert_classifier_forward.1} parent=11 // pred_check
          %p534 = pneg %p456
        $region42: #{bert_classifier_forward.1} parent=11 // pred_check_branch
          %536 = sbr.rel (%p534) target = $region44
        $region43: #{bert_classifier_forward.1} parent=11 // pred_region
          _
        $region44: #{bert_classifier_forward.1} parent=11 // pred_fallthru
          _
      $region12: #{bert_classifier_forward.1} parent=5 // pred_fallthru
        _
      %p537 = scmp.lt.s32.totalorder %s28, 2
      // Predicated region
      $region45: #{bert_classifier_forward.1} parent=5 // pred_check
        %p538 = pneg %p537
      $region46: #{bert_classifier_forward.1} parent=5 // pred_check_branch
        %540 = sbr.rel (%p538) target = $region48
      $region47: #{bert_classifier_forward.1} parent=5 // pred_region
        // Predicated region
        $region49: #{bert_classifier_forward.1} parent=47 // pred_check
          %p541 = pneg %p111
        $region50: #{bert_classifier_forward.1} parent=47 // pred_check_branch
          %543 = sbr.rel (%p541) target = $region52
        $region51: #{bert_classifier_forward.1} parent=47 // pred_region
          %p544 = scmp.lt.s32.totalorder %s28, 1
          %s545 = scalar_select %p544, %s28, 1
          %s546 = smul.addr %s545, 48
          %s547 = smul.addr %s546, 4
          %s548 = scalar_lea.vmem %s3, %s547
        $region52: #{bert_classifier_forward.1} parent=47 // pred_fallthru
          _
        // Predicated region
        $region53: #{bert_classifier_forward.1} parent=47 // pred_check
          %p549 = pneg %p137
        $region54: #{bert_classifier_forward.1} parent=47 // pred_check_branch
          %551 = sbr.rel (%p549) target = $region56
        $region55: #{bert_classifier_forward.1} parent=47 // pred_region
          %p552 = scmp.lt.s32.totalorder %s28, 1
          %s553 = scalar_select %p552, %s28, 1
          %s554 = smul.addr %s553, 3
          %s555 = scalar_lea.vmem %s4, %s554
        $region56: #{bert_classifier_forward.1} parent=47 // pred_fallthru
          _
        // Predicated region
        $region57: #{bert_classifier_forward.1} parent=47 // pred_check
          %p556 = pneg %p163
        $region58: #{bert_classifier_forward.1} parent=47 // pred_check_branch
          %558 = sbr.rel (%p556) target = $region60
        $region59: #{bert_classifier_forward.1} parent=47 // pred_region
          %p559 = scmp.lt.s32.totalorder %s28, 1
          %s560 = scalar_select %p559, %s28, 1
          %s561 = smul.addr %s560, 16
          %s562 = smul.addr %s561, 4
          %s563 = scalar_lea.vmem %s5, %s562
        $region60: #{bert_classifier_forward.1} parent=47 // pred_fallthru
          _
        // Predicated region
        $region61: #{bert_classifier_forward.1} parent=47 // pred_check
          %p564 = pneg %p189
        $region62: #{bert_classifier_forward.1} parent=47 // pred_check_branch
          %566 = sbr.rel (%p564) target = $region64
        $region63: #{bert_classifier_forward.1} parent=47 // pred_region
          %p567 = scmp.lt.s32.totalorder %s28, 1
          %s568 = scalar_select %p567, %s28, 1
          %s569 = scalar_lea.vmem %s6, %s568
        $region64: #{bert_classifier_forward.1} parent=47 // pred_fallthru
          _
        // Predicated region
        $region65: #{bert_classifier_forward.1} parent=47 // pred_check
          %p570 = pneg %p215
        $region66: #{bert_classifier_forward.1} parent=47 // pred_check_branch
          %572 = sbr.rel (%p570) target = $region68
        $region67: #{bert_classifier_forward.1} parent=47 // pred_region
          %p573 = scmp.lt.s32.totalorder %s28, 1
          %s574 = scalar_select %p573, %s28, 1
          %s575 = smul.addr %s574, 2
          %s576 = scalar_lea.vmem %s7, %s575
        $region68: #{bert_classifier_forward.1} parent=47 // pred_fallthru
          _
        // Predicated region
        $region69: #{bert_classifier_forward.1} parent=47 // pred_check
          %p577 = pneg %p241
        $region70: #{bert_classifier_forward.1} parent=47 // pred_check_branch
          %579 = sbr.rel (%p577) target = $region72
        $region71: #{bert_classifier_forward.1} parent=47 // pred_region
          %p580 = scmp.lt.s32.totalorder %s28, 1
          %s581 = scalar_select %p580, %s28, 1
          %s582 = smul.addr %s581, 32
          %s583 = smul.addr %s582, 4
          %s584 = scalar_lea.vmem %s8, %s583
        $region72: #{bert_classifier_forward.1} parent=47 // pred_fallthru
          _
        // Predicated region
        $region73: #{bert_classifier_forward.1} parent=47 // pred_check
          %p585 = pneg %p267
        $region74: #{bert_classifier_forward.1} parent=47 // pred_check_branch
          %587 = sbr.rel (%p585) target = $region76
        $region75: #{bert_classifier_forward.1} parent=47 // pred_region
          %p588 = scmp.lt.s32.totalorder %s28, 1
          %s589 = scalar_select %p588, %s28, 1
          %s590 = smul.addr %s589, 2
          %s591 = scalar_lea.vmem %s9, %s590
        $region76: #{bert_classifier_forward.1} parent=47 // pred_fallthru
          _
        // Predicated region
        $region77: #{bert_classifier_forward.1} parent=47 // pred_check
          %p592 = pneg %p293
        $region78: #{bert_classifier_forward.1} parent=47 // pred_check_branch
          %594 = sbr.rel (%p592) target = $region80
        $region79: #{bert_classifier_forward.1} parent=47 // pred_region
          %p595 = scmp.lt.s32.totalorder %s28, 1
          %s596 = scalar_select %p595, %s28, 1
          %s597 = smul.addr %s596, 32
          %s598 = smul.addr %s597, 4
          %s599 = scalar_lea.vmem %s10, %s598
        $region80: #{bert_classifier_forward.1} parent=47 // pred_fallthru
          _
        // Predicated region
        $region81: #{bert_classifier_forward.1} parent=47 // pred_check
          %p600 = pneg %p319
        $region82: #{bert_classifier_forward.1} parent=47 // pred_check_branch
          %602 = sbr.rel (%p600) target = $region84
        $region83: #{bert_classifier_forward.1} parent=47 // pred_region
          %p603 = scmp.lt.s32.totalorder %s28, 1
          %s604 = scalar_select %p603, %s28, 1
          %s605 = scalar_lea.vmem %s11, %s604
        $region84: #{bert_classifier_forward.1} parent=47 // pred_fallthru
          _
        // Predicated region
        $region85: #{bert_classifier_forward.1} parent=47 // pred_check
          %p606 = pneg %p345
        $region86: #{bert_classifier_forward.1} parent=47 // pred_check_branch
          %608 = sbr.rel (%p606) target = $region88
        $region87: #{bert_classifier_forward.1} parent=47 // pred_region
          %p609 = scmp.lt.s32.totalorder %s28, 1
          %s610 = scalar_select %p609, %s28, 1
          %s611 = smul.addr %s610, 2
          %s612 = scalar_lea.vmem %s12, %s611
        $region88: #{bert_classifier_forward.1} parent=47 // pred_fallthru
          _
      $region48: #{bert_classifier_forward.1} parent=5 // pred_fallthru
        _
      %p613 = scmp.le.s32.totalorder 1, %s28
      %p614 = scmp.lt.s32.totalorder %s28, 3
      %p615 = pnand %p613, %p614
      %p616 = pneg %p615
      // Predicated region
      $region89: #{bert_classifier_forward.1} parent=5 // pred_check
        _
      $region90: #{bert_classifier_forward.1} parent=5 // pred_check_branch
        %618 = sbr.rel (%p615) target = $region92
      $region91: #{bert_classifier_forward.1} parent=5 // pred_region
        %s619 = ssub.s32 %s28, 1
        %p620 = pneg %p49
        %p621 = pneg %p46
        %p622 = pneg %p70
        %p623 = pneg %p67
        %p624 = pneg %p91
        %p625 = pneg %p88
        %p626 = scmp.lt.s32.totalorder %s33, 1
        %s627 = scalar_select %p626, %s33, 1
        %s628 = smul.addr %s627, 48
        %s629 = smul.addr %s628, 4
        %s630 = scalar_lea.vmem %s3, %s629
        %p631 = pneg %p117
        %p632 = pneg %p114
        %p633 = scmp.lt.s32.totalorder %s33, 1
        %s634 = scalar_select %p633, %s33, 1
        %s635 = smul.addr %s634, 3
        %s636 = scalar_lea.vmem %s4, %s635
        %p637 = pneg %p143
        %p638 = pneg %p140
        %p639 = scmp.lt.s32.totalorder %s33, 1
        %s640 = scalar_select %p639, %s33, 1
        %s641 = smul.addr %s640, 16
        %s642 = smul.addr %s641, 4
        %s643 = scalar_lea.vmem %s5, %s642
        %p644 = pneg %p169
        %p645 = pneg %p166
        %p646 = scmp.lt.s32.totalorder %s33, 1
        %s647 = scalar_select %p646, %s33, 1
        %s648 = scalar_lea.vmem %s6, %s647
        %p649 = pneg %p195
        %p650 = pneg %p192
        %p651 = scmp.lt.s32.totalorder %s33, 1
        %s652 = scalar_select %p651, %s33, 1
        %s653 = smul.addr %s652, 2
        %s654 = scalar_lea.vmem %s7, %s653
        %p655 = pneg %p221
        %p656 = pneg %p218
        %p657 = scmp.lt.s32.totalorder %s33, 1
        %s658 = scalar_select %p657, %s33, 1
        %s659 = smul.addr %s658, 32
        %s660 = smul.addr %s659, 4
        %s661 = scalar_lea.vmem %s8, %s660
        %p662 = pneg %p247
        %p663 = pneg %p244
        %p664 = scmp.lt.s32.totalorder %s33, 1
        %s665 = scalar_select %p664, %s33, 1
        %s666 = smul.addr %s665, 2
        %s667 = scalar_lea.vmem %s9, %s666
        %p668 = pneg %p273
        %p669 = pneg %p270
        %p670 = scmp.lt.s32.totalorder %s33, 1
        %s671 = scalar_select %p670, %s33, 1
        %s672 = smul.addr %s671, 32
        %s673 = smul.addr %s672, 4
        %s674 = scalar_lea.vmem %s10, %s673
        %p675 = pneg %p299
        %p676 = pneg %p296
        %p677 = scmp.lt.s32.totalorder %s33, 1
        %s678 = scalar_select %p677, %s33, 1
        %s679 = scalar_lea.vmem %s11, %s678
        %p680 = pneg %p325
        %p681 = pneg %p322
        %p682 = scmp.lt.s32.totalorder %s33, 1
        %s683 = scalar_select %p682, %s33, 1
        %s684 = smul.addr %s683, 2
        %s685 = scalar_lea.vmem %s12, %s684
        %p686 = pneg %p351
        %p687 = pneg %p348
        %p688 = pneg %p372
        %p689 = pneg %p369
        %p690 = pneg %p393
        %p691 = pneg %p390
        %p692 = pneg %p414
        %p693 = pneg %p411
        %p694 = pneg %p435
        %p695 = pneg %p432
        %p696 = pneg %p456
        %p697 = pneg %p453
        %p698 = pneg %p477
        %p699 = pneg %p474
        %p700 = pneg %p498
        %p701 = pneg %p495
        %p702 = scmp.lt.s32.totalorder %s33, 1
        %s703 = scalar_select %p702, %s33, 1
        %s704 = smul.addr %s703, 48
        %s705 = smul.addr %s704, 4
        %s706 = scalar_lea.vmem %s3, %s705
        %p707 = scmp.lt.s32.totalorder %s33, 1
        %s708 = scalar_select %p707, %s33, 1
        %s709 = smul.addr %s708, 3
        %s710 = scalar_lea.vmem %s4, %s709
        %p711 = scmp.lt.s32.totalorder %s33, 1
        %s712 = scalar_select %p711, %s33, 1
        %s713 = smul.addr %s712, 16
        %s714 = smul.addr %s713, 4
        %s715 = scalar_lea.vmem %s5, %s714
        %p716 = scmp.lt.s32.totalorder %s33, 1
        %s717 = scalar_select %p716, %s33, 1
        %s718 = scalar_lea.vmem %s6, %s717
        %p719 = scmp.lt.s32.totalorder %s33, 1
        %s720 = scalar_select %p719, %s33, 1
        %s721 = smul.addr %s720, 2
        %s722 = scalar_lea.vmem %s7, %s721
        %p723 = scmp.lt.s32.totalorder %s33, 1
        %s724 = scalar_select %p723, %s33, 1
        %s725 = smul.addr %s724, 32
        %s726 = smul.addr %s725, 4
        %s727 = scalar_lea.vmem %s8, %s726
        %p728 = scmp.lt.s32.totalorder %s33, 1
        %s729 = scalar_select %p728, %s33, 1
        %s730 = smul.addr %s729, 2
        %s731 = scalar_lea.vmem %s9, %s730
        %p732 = scmp.lt.s32.totalorder %s33, 1
        %s733 = scalar_select %p732, %s33, 1
        %s734 = smul.addr %s733, 32
        %s735 = smul.addr %s734, 4
        %s736 = scalar_lea.vmem %s10, %s735
        %p737 = scmp.lt.s32.totalorder %s33, 1
        %s738 = scalar_select %p737, %s33, 1
        %s739 = scalar_lea.vmem %s11, %s738
        %p740 = scmp.lt.s32.totalorder %s33, 1
        %s741 = scalar_select %p740, %s33, 1
        %s742 = smul.addr %s741, 2
        %s743 = scalar_lea.vmem %s12, %s742
        %p745 = scmp.eq.s32.totalorder %s33, 0
        // Predicated region
        $region93: #{bert_classifier_forward.1} parent=91 // pred_check
          %p746 = pneg %p745
        $region94: #{bert_classifier_forward.1} parent=91 // pred_check_branch
          %748 = sbr.rel (%p746) target = $region96
        $region95: #{bert_classifier_forward.1} parent=91 // pred_region
          %v749 = vld [vmem:[%s2] sm:$0x3]
          %v750 = vld [vmem:[%s0] sm:$0xff]
          %v751 = vld [vmem:[%s0 + $0x8] sm:$0xff]
          %v752 = vld [vmem:[%s0 + $0x10] sm:$0xff]
          %v753 = vld [vmem:[%s0 + $0x18] sm:$0xff]
          %754 = vadd.xlane.f32.xlu0 %v750
          %v755 = vpop.xlane.xlu0 %754
          %756 = vadd.xlane.f32.xlu0 %v751
          %v757 = vpop.xlane.xlu0 %756
          %758 = vadd.xlane.f32.xlu0 %v752
          %v759 = vpop.xlane.xlu0 %758
          %760 = vadd.xlane.f32.xlu0 %v753
          %v761 = vpop.xlane.xlu0 %760
          %v762 = vrcp.pop 128.0
          %v763 = vmul.f32 %v755, %v762
          %v764 = vmul.f32 %v757, %v762
          %v765 = vmul.f32 %v759, %v762
          %v766 = vmul.f32 %v761, %v762
          %v767 = vsub.f32 %v750, %v763
          %v768 = vsub.f32 %v751, %v764
          %v769 = vsub.f32 %v752, %v765
          %v770 = vsub.f32 %v753, %v766
          %v771 = vmul.f32 %v767, %v767
          %v772 = vmul.f32 %v768, %v768
          %v773 = vmul.f32 %v769, %v769
          %v774 = vmul.f32 %v770, %v770
          %775 = vadd.xlane.f32.xlu0 %v771
          %v776 = vpop.xlane.xlu0 %775
          %777 = vadd.xlane.f32.xlu0 %v772
          %v778 = vpop.xlane.xlu0 %777
          %779 = vadd.xlane.f32.xlu0 %v773
          %v780 = vpop.xlane.xlu0 %779
          %781 = vadd.xlane.f32.xlu0 %v774
          %v782 = vpop.xlane.xlu0 %781
          %v783 = vmul.f32 %v776, %v762
          %v784 = vmul.f32 %v778, %v762
          %v785 = vmul.f32 %v780, %v762
          %v786 = vmul.f32 %v782, %v762
          %v787 = vadd.f32 %v783, 1e-12
          %v788 = vadd.f32 %v784, 1e-12
          %v789 = vadd.f32 %v785, 1e-12
          %v790 = vadd.f32 %v786, 1e-12
          %v791 = vrsqrt.pop %v787
          %v792 = vrsqrt.pop %v788
          %v793 = vrsqrt.pop %v789
          %v794 = vrsqrt.pop %v790
          %v795 = vmul.f32 %v767, %v791
          %v796 = vmul.f32 %v768, %v792
          %v797 = vmul.f32 %v769, %v793
          %v798 = vmul.f32 %v770, %v794
          %v799 = vlaneseq
          %v800 = vshrl.u32 %v799, 7
          %v801 = vsub.s32 0, %v800
          %v802 = vrot.slane %v749, %v801
          %v803 = vmul.f32 %v795, %v802
          %v804 = vmul.f32 %v796, %v802
          %v805 = vmul.f32 %v797, %v802
          %v806 = vmul.f32 %v798, %v802
          %v807 = vlaneseq
          %v808 = vshrl.u32 %v807, 7
          %v809 = vsub.s32 1, %v808
          %v810 = vrot.slane %v749, %v809
          %v811 = vadd.f32 %v803, %v810
          %v812 = vadd.f32 %v804, %v810
          %v813 = vadd.f32 %v805, %v810
          %v814 = vadd.f32 %v806, %v810
          %815 = vst [vmem:[#allocation2] sm:$0xff] %v811
          %816 = vst [vmem:[#allocation2 + $0x8] sm:$0xff] %v812
          %817 = vst [vmem:[#allocation2 + $0x10] sm:$0xff] %v813
          %818 = vst [vmem:[#allocation2 + $0x18] sm:$0xff] %v814
        $region96: #{bert_classifier_forward.1} parent=91 // pred_fallthru
          _
        %v819 = vld [vmem:[#allocation2] sm:$0xff]
        %v820 = vld [vmem:[#allocation2 + $0x8] sm:$0xff]
        %v821 = vld [vmem:[#allocation2 + $0x10] sm:$0xff]
        %v822 = vld [vmem:[#allocation2 + $0x18] sm:$0xff]
        %v823 = vpack.c.bf16 %v820, %v819
        %v824 = vpack.c.bf16 %v822, %v821
        %v825 = vld [vmem:[%s706] sm:$0xff]
        %v826 = vld [vmem:[%s706 + $0x8] sm:$0xf]
        %v827 = vld [vmem:[%s706 + $0xc] sm:$0xff]
        %v828 = vld [vmem:[%s706 + $0x14] sm:$0xf]
        %v829 = vld [vmem:[%s706 + $0x18] sm:$0xff]
        %v830 = vld [vmem:[%s706 + $0x20] sm:$0xf]
        %v831 = vld [vmem:[%s706 + $0x24] sm:$0xff]
        %v832 = vld [vmem:[%s706 + $0x2c] sm:$0xf]
        %v833 = vld [vmem:[%s706 + $0x30] sm:$0xff]
        %v834 = vld [vmem:[%s706 + $0x38] sm:$0xf]
        %v835 = vld [vmem:[%s706 + $0x3c] sm:$0xff]
        %v836 = vld [vmem:[%s706 + $0x44] sm:$0xf]
        %v837 = vld [vmem:[%s706 + $0x48] sm:$0xff]
        %v838 = vld [vmem:[%s706 + $0x50] sm:$0xf]
        %v839 = vld [vmem:[%s706 + $0x54] sm:$0xff]
        %v840 = vld [vmem:[%s706 + $0x5c] sm:$0xf]
        %v841 = vld [vmem:[%s706 + $0x60] sm:$0xff]
        %v842 = vld [vmem:[%s706 + $0x68] sm:$0xf]
        %v843 = vld [vmem:[%s706 + $0x6c] sm:$0xff]
        %v844 = vld [vmem:[%s706 + $0x74] sm:$0xf]
        %v845 = vld [vmem:[%s706 + $0x78] sm:$0xff]
        %v846 = vld [vmem:[%s706 + $0x80] sm:$0xf]
        %v847 = vld [vmem:[%s706 + $0x84] sm:$0xff]
        %v848 = vld [vmem:[%s706 + $0x8c] sm:$0xf]
        %v849 = vld [vmem:[%s706 + $0x90] sm:$0xff]
        %v850 = vld [vmem:[%s706 + $0x98] sm:$0xf]
        %v851 = vld [vmem:[%s706 + $0x9c] sm:$0xff]
        %v852 = vld [vmem:[%s706 + $0xa4] sm:$0xf]
        %v853 = vld [vmem:[%s706 + $0xa8] sm:$0xff]
        %v854 = vld [vmem:[%s706 + $0xb0] sm:$0xf]
        %v855 = vld [vmem:[%s706 + $0xb4] sm:$0xff]
        %v856 = vld [vmem:[%s706 + $0xbc] sm:$0xf]
        %v857 = vld [vmem:[%s710] sm:$0x7]
        %v859 = vlaneseq
        %v860 = vshrl.u32 %v859, 7
        %v861 = vsub.s32 0, %v860
        %v862 = vrot.slane %v857, %v861
        %v863 = vlaneseq
        %v864 = vshrl.u32 %v863, 7
        %v865 = vsub.s32 1, %v864
        %v866 = vrot.slane %v857, %v865
        %v867 = vlaneseq
        %v868 = vshrl.u32 %v867, 7
        %v869 = vsub.s32 2, %v868
        %v870 = vrot.slane %v857, %v869
        %v906 = vunpack.c.l.b16 %v825
        %v907 = vunpack.c.h.b16 %v825
        %v908 = vunpack.c.l.b16 %v826
        %v909 = vunpack.c.l.b16 %v827
        %v910 = vunpack.c.h.b16 %v827
        %v911 = vunpack.c.l.b16 %v828
        %v912 = vunpack.c.l.b16 %v829
        %v913 = vunpack.c.h.b16 %v829
        %v914 = vunpack.c.l.b16 %v830
        %v915 = vunpack.c.l.b16 %v831
        %v916 = vunpack.c.h.b16 %v831
        %v917 = vunpack.c.l.b16 %v832
        %v918 = vunpack.c.l.b16 %v833
        %v919 = vunpack.c.h.b16 %v833
        %v920 = vunpack.c.l.b16 %v834
        %v921 = vunpack.c.l.b16 %v835
        %v922 = vunpack.c.h.b16 %v835
        %v923 = vunpack.c.l.b16 %v836
        %v924 = vunpack.c.l.b16 %v837
        %v925 = vunpack.c.h.b16 %v837
        %v926 = vunpack.c.l.b16 %v838
        %v927 = vunpack.c.l.b16 %v839
        %v928 = vunpack.c.h.b16 %v839
        %v929 = vunpack.c.l.b16 %v840
        %v930 = vunpack.c.l.b16 %v841
        %v931 = vunpack.c.h.b16 %v841
        %v932 = vunpack.c.l.b16 %v842
        %v933 = vunpack.c.l.b16 %v843
        %v934 = vunpack.c.h.b16 %v843
        %v935 = vunpack.c.l.b16 %v844
        %v936 = vunpack.c.l.b16 %v845
        %v937 = vunpack.c.h.b16 %v845
        %v938 = vunpack.c.l.b16 %v846
        %v939 = vunpack.c.l.b16 %v847
        %v940 = vunpack.c.h.b16 %v847
        %v941 = vunpack.c.l.b16 %v848
        %v942 = vunpack.c.l.b16 %v849
        %v943 = vunpack.c.h.b16 %v849
        %v944 = vunpack.c.l.b16 %v850
        %v945 = vunpack.c.l.b16 %v851
        %v946 = vunpack.c.h.b16 %v851
        %v947 = vunpack.c.l.b16 %v852
        %v948 = vunpack.c.l.b16 %v853
        %v949 = vunpack.c.h.b16 %v853
        %v950 = vunpack.c.l.b16 %v854
        %v951 = vunpack.c.l.b16 %v855
        %v952 = vunpack.c.h.b16 %v855
        %v953 = vunpack.c.l.b16 %v856
        %v954 = vpack.c.b16 %v909, %v906
        %v955 = vpack.c.b16 %v910, %v907
        %v956 = vpack.c.b16 %v911, %v908
        %v957 = vpack.c.b16 %v915, %v912
        %v958 = vpack.c.b16 %v916, %v913
        %v959 = vpack.c.b16 %v917, %v914
        %v960 = vpack.c.b16 %v921, %v918
        %v961 = vpack.c.b16 %v922, %v919
        %v962 = vpack.c.b16 %v923, %v920
        %v963 = vpack.c.b16 %v927, %v924
        %v964 = vpack.c.b16 %v928, %v925
        %v965 = vpack.c.b16 %v929, %v926
        %v966 = vpack.c.b16 %v933, %v930
        %v967 = vpack.c.b16 %v934, %v931
        %v968 = vpack.c.b16 %v935, %v932
        %v969 = vpack.c.b16 %v939, %v936
        %v970 = vpack.c.b16 %v940, %v937
        %v971 = vpack.c.b16 %v941, %v938
        %v972 = vpack.c.b16 %v945, %v942
        %v973 = vpack.c.b16 %v946, %v943
        %v974 = vpack.c.b16 %v947, %v944
        %v975 = vpack.c.b16 %v951, %v948
        %v976 = vpack.c.b16 %v952, %v949
        %v977 = vpack.c.b16 %v953, %v950
        %1002 = vmatprep.subr.bf16.mxu0 %v955
        %1003 = vmatpush1.bf16.msra.mxu0 %v954
        %1004 = vmatprep.subr.bf16.mxu0 %v958
        %1005 = vmatpush1.bf16.msra.mxu0 %v957
        %1006 = vmatprep.subr.bf16.mxu0 %v961
        %1007 = vmatpush1.bf16.msra.mxu0 %v960
        %1008 = vmatprep.subr.bf16.mxu0 %v964
        %1009 = vmatpush1.bf16.msra.mxu0 %v963
        %1010 = vmatprep.subr.bf16.mxu0 %v967
        %1011 = vmatpush1.bf16.msra.mxu0 %v966
        %1012 = vmatprep.subr.bf16.mxu0 %v970
        %1013 = vmatpush1.bf16.msra.mxu0 %v969
        %1014 = vmatprep.subr.bf16.mxu0 %v973
        %1015 = vmatpush1.bf16.msra.mxu0 %v972
        %1016 = vmatprep.subr.bf16.mxu0 %v976
        %1017 = vmatpush1.bf16.msra.mxu0 %v975
        %1018 = vmatprep.subr.bf16.mxu0 0
        %1019 = vmatpush1.bf16.msra.mxu0 0
        %1020 = vmatprep.subr.bf16.mxu0 0
        %1021 = vmatpush1.bf16.msra.mxu0 0
        %1022 = vmatprep.subr.bf16.mxu0 0
        %1023 = vmatpush1.bf16.msra.mxu0 0
        %1024 = vmatprep.subr.bf16.mxu0 0
        %1025 = vmatpush1.bf16.msra.mxu0 0
        %1026 = vmatprep.subr.bf16.mxu0 0
        %1027 = vmatpush1.bf16.msra.mxu0 0
        %1028 = vmatprep.subr.bf16.mxu0 0
        %1029 = vmatpush1.bf16.msra.mxu0 0
        %1030 = vmatprep.subr.bf16.mxu0 0
        %1031 = vmatpush1.bf16.msra.mxu0 0
        %1032 = vmatprep.subr.bf16.mxu0 0
        %1033 = vmatpush1.bf16.msra.mxu0 0
        %1034 = vmatprep.mubr.bf16.mxu0 0
        %1035 = vmatmul.mubr.bf16.gmra.mrb[0].mxu0 %v823
        %v1036 = vpop.f32.mrb[0].mxu0
        %v1037 = vadd.f32 %v862, %v1036
        %v1038 = vpop.f32.mrb[0].mxu0
        %v1039 = vadd.f32 %v866, %v1038
        %v1040 = vpop.f32.mrb[0].mxu0
        %v1041 = vadd.f32 %v862, %v1040
        %v1042 = vpop.f32.mrb[0].mxu0
        %v1043 = vadd.f32 %v866, %v1042
        %1044 = vmatprep.mubr.bf16.mxu0 0
        %1045 = vmatmul.mubr.bf16.gmra.mrb[0].mxu0 %v824
        %v1046 = vpop.f32.mrb[0].mxu0
        %v1047 = vadd.f32 %v862, %v1046
        %v1048 = vpop.f32.mrb[0].mxu0
        %v1049 = vadd.f32 %v866, %v1048
        %v1050 = vpop.f32.mrb[0].mxu0
        %v1051 = vadd.f32 %v862, %v1050
        %v1052 = vpop.f32.mrb[0].mxu0
        %v1053 = vadd.f32 %v866, %v1052
        %1054 = vdwg.mxu0
        %1055 = vmatprep.subr.bf16.mxu0 0
        %1056 = vmatpush1.bf16.msra.mxu0 %v956
        %1057 = vmatprep.subr.bf16.mxu0 0
        %1058 = vmatpush1.bf16.msra.mxu0 %v959
        %1059 = vmatprep.subr.bf16.mxu0 0
        %1060 = vmatpush1.bf16.msra.mxu0 %v962
        %1061 = vmatprep.subr.bf16.mxu0 0
        %1062 = vmatpush1.bf16.msra.mxu0 %v965
        %1063 = vmatprep.subr.bf16.mxu0 0
        %1064 = vmatpush1.bf16.msra.mxu0 %v968
        %1065 = vmatprep.subr.bf16.mxu0 0
        %1066 = vmatpush1.bf16.msra.mxu0 %v971
        %1067 = vmatprep.subr.bf16.mxu0 0
        %1068 = vmatpush1.bf16.msra.mxu0 %v974
        %1069 = vmatprep.subr.bf16.mxu0 0
        %1070 = vmatpush1.bf16.msra.mxu0 %v977
        %1071 = vmatprep.subr.bf16.mxu0 0
        %1072 = vmatpush1.bf16.msra.mxu0 0
        %1073 = vmatprep.subr.bf16.mxu0 0
        %1074 = vmatpush1.bf16.msra.mxu0 0
        %1075 = vmatprep.subr.bf16.mxu0 0
        %1076 = vmatpush1.bf16.msra.mxu0 0
        %1077 = vmatprep.subr.bf16.mxu0 0
        %1078 = vmatpush1.bf16.msra.mxu0 0
        %1079 = vmatprep.subr.bf16.mxu0 0
        %1080 = vmatpush1.bf16.msra.mxu0 0
        %1081 = vmatprep.subr.bf16.mxu0 0
        %1082 = vmatpush1.bf16.msra.mxu0 0
        %1083 = vmatprep.subr.bf16.mxu0 0
        %1084 = vmatpush1.bf16.msra.mxu0 0
        %1085 = vmatprep.subr.bf16.mxu0 0
        %1086 = vmatpush1.bf16.msra.mxu0 0
        %1087 = vmatprep.mubr.bf16.mxu0 0
        %1088 = vmatmul.mubr.bf16.gmra.mrb[0].mxu0 %v823
        %v1089 = vpop.f32.mrb[0].mxu0
        %v1090 = vadd.f32 %v870, %v1089
        %v1091 = vpop.f32.mrb[0].mxu0
        %v1092 = vpop.f32.mrb[0].mxu0
        %v1093 = vadd.f32 %v870, %v1092
        %v1094 = vpop.f32.mrb[0].mxu0
        %1095 = vmatprep.mubr.bf16.mxu0 0
        %1096 = vmatmul.mubr.bf16.gmra.mrb[0].mxu0 %v824
        %v1097 = vpop.f32.mrb[0].mxu0
        %v1098 = vadd.f32 %v870, %v1097
        %v1099 = vpop.f32.mrb[0].mxu0
        %v1100 = vpop.f32.mrb[0].mxu0
        %v1101 = vadd.f32 %v870, %v1100
        %v1102 = vpop.f32.mrb[0].mxu0
        %1103 = vdwg.mxu0
        %v1104 = vld [vmem:[%s1] sm:$0x3]
        %v1107 = vunpack.c.l.s4 1966171168
        %v1108 = vunpack.c.0.s8 %v1107
        %v1109 = vlaneseq
        %v1110 = vshrl.u32 %v1109, 7
        %v1111 = vsub.s32 %v1108, %v1110
        %v1112 = vrot.slane %v1104, %v1111
        %v1113 = vcombine.high %v1112, %v1112
        %v1115 = vunpack.c.l.s4 1966171168
        %v1116 = vunpack.c.0.s8 %v1115
        %v1117 = vlaneseq
        %v1118 = vshrl.u32 %v1117, 7
        %v1119 = vsub.s32 %v1116, %v1118
        %v1120 = vrot.slane %v1112, %v1119
        %v1122 = vunpack.c.l.s4 1966171168
        %v1123 = vunpack.c.0.s8 %v1122
        %v1124 = vlaneseq
        %v1125 = vshrl.u32 %v1124, 7
        %v1126 = vsub.s32 %v1123, %v1125
        %v1127 = vrot.slane %v1113, %v1126
        %v1128 = vpack.c.bf16 %v1041, %v1037
        %v1129 = vpack.c.bf16 %v1051, %v1047
        %v1130 = vpack.c.bf16 %v1043, %v1039
        %v1131 = vpack.c.bf16 %v1053, %v1049
        %v1132 = vpack.c.bf16 %v1093, %v1090
        %v1133 = vpack.c.bf16 %v1101, %v1098
        %vm1134 = vcmask 523264
        %v1136 = vsel %vm1134, %v1128, 0
        %v1139 = vsel %vm1134, %v1130, 0
        %1141 = vmatprep.subr.bf16.mxu0 0
        %1142 = vmatpush1.bf16.xpose.msra.mxu0 %v1139
        %1143 = vmatprep.subr.bf16.mxu0 0
        %1144 = vmatpush1.bf16.xpose.msra.mxu0 0
        %1145 = vmatprep.subr.bf16.mxu0 0
        %1146 = vmatpush1.bf16.xpose.msra.mxu0 0
        %1147 = vmatprep.subr.bf16.mxu0 0
        %1148 = vmatpush1.bf16.xpose.msra.mxu0 0
        %1149 = vmatprep.subr.bf16.mxu0 0
        %1150 = vmatpush1.bf16.xpose.msra.mxu0 0
        %1151 = vmatprep.subr.bf16.mxu0 0
        %1152 = vmatpush1.bf16.xpose.msra.mxu0 0
        %1153 = vmatprep.subr.bf16.mxu0 0
        %1154 = vmatpush1.bf16.xpose.msra.mxu0 0
        %1155 = vmatprep.subr.bf16.mxu0 0
        %1156 = vmatpush1.bf16.xpose.msra.mxu0 0
        %1157 = vmatprep.subr.bf16.mxu0 0
        %1158 = vmatpush1.bf16.xpose.msra.mxu0 0
        %1159 = vmatprep.subr.bf16.mxu0 0
        %1160 = vmatpush1.bf16.xpose.msra.mxu0 0
        %1161 = vmatprep.subr.bf16.mxu0 0
        %1162 = vmatpush1.bf16.xpose.msra.mxu0 0
        %1163 = vmatprep.subr.bf16.mxu0 0
        %1164 = vmatpush1.bf16.xpose.msra.mxu0 0
        %1165 = vmatprep.subr.bf16.mxu0 0
        %1166 = vmatpush1.bf16.xpose.msra.mxu0 0
        %1167 = vmatprep.subr.bf16.mxu0 0
        %1168 = vmatpush1.bf16.xpose.msra.mxu0 0
        %1169 = vmatprep.subr.bf16.mxu0 0
        %1170 = vmatpush1.bf16.xpose.msra.mxu0 0
        %1171 = vmatprep.subr.bf16.mxu0 0
        %1172 = vmatpush1.bf16.xpose.msra.mxu0 0
        %1173 = vmatprep.mubr.bf16.mxu0 0
        %1174 = vmatmul.mubr.bf16.gmra.mrb[0].mxu0 %v1136
        %v1175 = vpop.f32.mrb[0].mxu0
        %v1176 = vadd.f32 0.0, %v1175
        %v1177 = vpop.f32.mrb[0].mxu0
        %v1178 = vpop.f32.mrb[0].mxu0
        %v1179 = vadd.f32 0.0, %v1178
        %v1180 = vpop.f32.mrb[0].mxu0
        %1181 = vdwg.mxu0
        %v1183 = vsel %vm1134, %v1129, 0
        %v1186 = vsel %vm1134, %v1131, 0
        %1188 = vmatprep.subr.bf16.mxu0 0
        %1189 = vmatpush1.bf16.xpose.msra.mxu0 %v1186
        %1190 = vmatprep.subr.bf16.mxu0 0
        %1191 = vmatpush1.bf16.xpose.msra.mxu0 0
        %1192 = vmatprep.subr.bf16.mxu0 0
        %1193 = vmatpush1.bf16.xpose.msra.mxu0 0
        %1194 = vmatprep.subr.bf16.mxu0 0
        %1195 = vmatpush1.bf16.xpose.msra.mxu0 0
        %1196 = vmatprep.subr.bf16.mxu0 0
        %1197 = vmatpush1.bf16.xpose.msra.mxu0 0
        %1198 = vmatprep.subr.bf16.mxu0 0
        %1199 = vmatpush1.bf16.xpose.msra.mxu0 0
        %1200 = vmatprep.subr.bf16.mxu0 0
        %1201 = vmatpush1.bf16.xpose.msra.mxu0 0
        %1202 = vmatprep.subr.bf16.mxu0 0
        %1203 = vmatpush1.bf16.xpose.msra.mxu0 0
        %1204 = vmatprep.subr.bf16.mxu0 0
        %1205 = vmatpush1.bf16.xpose.msra.mxu0 0
        %1206 = vmatprep.subr.bf16.mxu0 0
        %1207 = vmatpush1.bf16.xpose.msra.mxu0 0
        %1208 = vmatprep.subr.bf16.mxu0 0
        %1209 = vmatpush1.bf16.xpose.msra.mxu0 0
        %1210 = vmatprep.subr.bf16.mxu0 0
        %1211 = vmatpush1.bf16.xpose.msra.mxu0 0
        %1212 = vmatprep.subr.bf16.mxu0 0
        %1213 = vmatpush1.bf16.xpose.msra.mxu0 0
        %1214 = vmatprep.subr.bf16.mxu0 0
        %1215 = vmatpush1.bf16.xpose.msra.mxu0 0
        %1216 = vmatprep.subr.bf16.mxu0 0
        %1217 = vmatpush1.bf16.xpose.msra.mxu0 0
        %1218 = vmatprep.subr.bf16.mxu0 0
        %1219 = vmatpush1.bf16.xpose.msra.mxu0 0
        %1220 = vmatprep.mubr.bf16.mxu0 0
        %1221 = vmatmul.mubr.bf16.gmra.mrb[0].mxu0 %v1183
        %v1222 = vpop.f32.mrb[0].mxu0
        %v1223 = vadd.f32 0.0, %v1222
        %v1224 = vpop.f32.mrb[0].mxu0
        %v1225 = vpop.f32.mrb[0].mxu0
        %v1226 = vadd.f32 0.0, %v1225
        %v1227 = vpop.f32.mrb[0].mxu0
        %1228 = vdwg.mxu0
        %v1229 = vmul.f32 %v1176, 0.125
        %v1230 = vmul.f32 %v1179, 0.125
        %v1231 = vmul.f32 %v1223, 0.125
        %v1232 = vmul.f32 %v1226, 0.125
        %v1233 = vlaneseq
        %v1234 = vshrl.u32 %v1233, 7
        %v1235 = vsub.s32 0, %v1234
        %v1236 = vrot.slane %v1120, %v1235
        %v1237 = vlaneseq
        %v1238 = vshrl.u32 %v1237, 7
        %v1239 = vsub.s32 0, %v1238
        %v1240 = vrot.slane %v1127, %v1239
        %v1243 = vadd.f32 %v1229, %v1236
        %v1244 = vadd.f32 %v1230, %v1236
        %v1245 = vadd.f32 %v1231, %v1240
        %v1246 = vadd.f32 %v1232, %v1240
        %vm1247 = vcmask 130048
        %v1248 = vsel %vm1247, %v1243, -inf
        %1249 = vmax.xlane.f32.xlu0 %v1248
        %v1250 = vpop.xlane.xlu0 %1249
        %v1251 = vsel %vm1247, %v1244, -inf
        %1252 = vmax.xlane.f32.xlu0 %v1251
        %v1253 = vpop.xlane.xlu0 %1252
        %v1254 = vsel %vm1247, %v1245, -inf
        %1255 = vmax.xlane.f32.xlu0 %v1254
        %v1256 = vpop.xlane.xlu0 %1255
        %v1257 = vsel %vm1247, %v1246, -inf
        %1258 = vmax.xlane.f32.xlu0 %v1257
        %v1259 = vpop.xlane.xlu0 %1258
        %v1260 = vsub.f32 %v1243, %v1250
        %v1261 = vsub.f32 %v1244, %v1253
        %v1262 = vsub.f32 %v1245, %v1256
        %v1263 = vsub.f32 %v1246, %v1259
        %v1264 = vmul.f32 %v1260, 1.442695
        %v1265 = vpow.pop %v1264
        %v1266 = vmul.f32 %v1261, 1.442695
        %v1267 = vpow.pop %v1266
        %v1268 = vmul.f32 %v1262, 1.442695
        %v1269 = vpow.pop %v1268
        %v1270 = vmul.f32 %v1263, 1.442695
        %v1271 = vpow.pop %v1270
        %v1272 = vsel %vm1247, %v1265, 0.0
        %1273 = vadd.xlane.f32.xlu0 %v1272
        %v1274 = vpop.xlane.xlu0 %1273
        %v1275 = vsel %vm1247, %v1267, 0.0
        %1276 = vadd.xlane.f32.xlu0 %v1275
        %v1277 = vpop.xlane.xlu0 %1276
        %v1278 = vsel %vm1247, %v1269, 0.0
        %1279 = vadd.xlane.f32.xlu0 %v1278
        %v1280 = vpop.xlane.xlu0 %1279
        %v1281 = vsel %vm1247, %v1271, 0.0
        %1282 = vadd.xlane.f32.xlu0 %v1281
        %v1283 = vpop.xlane.xlu0 %1282
        %v1284 = vrcp.pop %v1274
        %v1285 = vrcp.pop %v1277
        %v1286 = vrcp.pop %v1280
        %v1287 = vrcp.pop %v1283
        %v1288 = vmul.f32 %v1265, %v1284
        %v1289 = vmul.f32 %v1267, %v1285
        %v1290 = vmul.f32 %v1269, %v1286
        %v1291 = vmul.f32 %v1271, %v1287
        %v1292 = vpack.c.bf16 %v1289, %v1288
        %v1293 = vpack.c.bf16 %v1291, %v1290
        %v1295 = vsel %vm1247, %v1292, 0
        %1297 = vmatprep.subr.bf16.mxu0 0
        %1298 = vmatpush1.bf16.msra.mxu0 %v1132
        %1299 = vmatprep.subr.bf16.mxu0 0
        %1300 = vmatpush1.bf16.msra.mxu0 0
        %1301 = vmatprep.subr.bf16.mxu0 0
        %1302 = vmatpush1.bf16.msra.mxu0 0
        %1303 = vmatprep.subr.bf16.mxu0 0
        %1304 = vmatpush1.bf16.msra.mxu0 0
        %1305 = vmatprep.subr.bf16.mxu0 0
        %1306 = vmatpush1.bf16.msra.mxu0 0
        %1307 = vmatprep.subr.bf16.mxu0 0
        %1308 = vmatpush1.bf16.msra.mxu0 0
        %1309 = vmatprep.subr.bf16.mxu0 0
        %1310 = vmatpush1.bf16.msra.mxu0 0
        %1311 = vmatprep.subr.bf16.mxu0 0
        %1312 = vmatpush1.bf16.msra.mxu0 0
        %1313 = vmatprep.subr.bf16.mxu0 0
        %1314 = vmatpush1.bf16.msra.mxu0 0
        %1315 = vmatprep.subr.bf16.mxu0 0
        %1316 = vmatpush1.bf16.msra.mxu0 0
        %1317 = vmatprep.subr.bf16.mxu0 0
        %1318 = vmatpush1.bf16.msra.mxu0 0
        %1319 = vmatprep.subr.bf16.mxu0 0
        %1320 = vmatpush1.bf16.msra.mxu0 0
        %1321 = vmatprep.subr.bf16.mxu0 0
        %1322 = vmatpush1.bf16.msra.mxu0 0
        %1323 = vmatprep.subr.bf16.mxu0 0
        %1324 = vmatpush1.bf16.msra.mxu0 0
        %1325 = vmatprep.subr.bf16.mxu0 0
        %1326 = vmatpush1.bf16.msra.mxu0 0
        %1327 = vmatprep.subr.bf16.mxu0 0
        %1328 = vmatpush1.bf16.msra.mxu0 0
        %1329 = vmatprep.mubr.bf16.mxu0 0
        %1330 = vmatmul.mubr.bf16.gmra.mrb[0].mxu0 %v1295
        %v1331 = vpop.f32.mrb[0].mxu0
        %v1332 = vadd.f32 0.0, %v1331
        %v1333 = vpop.f32.mrb[0].mxu0
        %v1334 = vpop.f32.mrb[0].mxu0
        %v1335 = vadd.f32 0.0, %v1334
        %v1336 = vpop.f32.mrb[0].mxu0
        %1337 = vdwg.mxu0
        %v1339 = vsel %vm1247, %v1293, 0
        %1341 = vmatprep.subr.bf16.mxu0 0
        %1342 = vmatpush1.bf16.msra.mxu0 %v1133
        %1343 = vmatprep.subr.bf16.mxu0 0
        %1344 = vmatpush1.bf16.msra.mxu0 0
        %1345 = vmatprep.subr.bf16.mxu0 0
        %1346 = vmatpush1.bf16.msra.mxu0 0
        %1347 = vmatprep.subr.bf16.mxu0 0
        %1348 = vmatpush1.bf16.msra.mxu0 0
        %1349 = vmatprep.subr.bf16.mxu0 0
        %1350 = vmatpush1.bf16.msra.mxu0 0
        %1351 = vmatprep.subr.bf16.mxu0 0
        %1352 = vmatpush1.bf16.msra.mxu0 0
        %1353 = vmatprep.subr.bf16.mxu0 0
        %1354 = vmatpush1.bf16.msra.mxu0 0
        %1355 = vmatprep.subr.bf16.mxu0 0
        %1356 = vmatpush1.bf16.msra.mxu0 0
        %1357 = vmatprep.subr.bf16.mxu0 0
        %1358 = vmatpush1.bf16.msra.mxu0 0
        %1359 = vmatprep.subr.bf16.mxu0 0
        %1360 = vmatpush1.bf16.msra.mxu0 0
        %1361 = vmatprep.subr.bf16.mxu0 0
        %1362 = vmatpush1.bf16.msra.mxu0 0
        %1363 = vmatprep.subr.bf16.mxu0 0
        %1364 = vmatpush1.bf16.msra.mxu0 0
        %1365 = vmatprep.subr.bf16.mxu0 0
        %1366 = vmatpush1.bf16.msra.mxu0 0
        %1367 = vmatprep.subr.bf16.mxu0 0
        %1368 = vmatpush1.bf16.msra.mxu0 0
        %1369 = vmatprep.subr.bf16.mxu0 0
        %1370 = vmatpush1.bf16.msra.mxu0 0
        %1371 = vmatprep.subr.bf16.mxu0 0
        %1372 = vmatpush1.bf16.msra.mxu0 0
        %1373 = vmatprep.mubr.bf16.mxu0 0
        %1374 = vmatmul.mubr.bf16.gmra.mrb[0].mxu0 %v1339
        %v1375 = vpop.f32.mrb[0].mxu0
        %v1376 = vadd.f32 0.0, %v1375
        %v1377 = vpop.f32.mrb[0].mxu0
        %v1378 = vpop.f32.mrb[0].mxu0
        %v1379 = vadd.f32 0.0, %v1378
        %v1380 = vpop.f32.mrb[0].mxu0
        %1381 = vdwg.mxu0
        %1383 = vrot.lane.b32.xlu0 %v1128, 64
        %v1384 = vpop.permute.xlu0 %1383
        %1386 = vrot.lane.b32.xlu0 %v1130, 64
        %v1387 = vpop.permute.xlu0 %1386
        %v1389 = vsel %vm1134, %v1384, 0
        %v1392 = vsel %vm1134, %v1387, 0
        %1394 = vmatprep.subr.bf16.mxu0 0
        %1395 = vmatpush1.bf16.xpose.msra.mxu0 %v1392
        %1396 = vmatprep.subr.bf16.mxu0 0
        %1397 = vmatpush1.bf16.xpose.msra.mxu0 0
        %1398 = vmatprep.subr.bf16.mxu0 0
        %1399 = vmatpush1.bf16.xpose.msra.mxu0 0
        %1400 = vmatprep.subr.bf16.mxu0 0
        %1401 = vmatpush1.bf16.xpose.msra.mxu0 0
        %1402 = vmatprep.subr.bf16.mxu0 0
        %1403 = vmatpush1.bf16.xpose.msra.mxu0 0
        %1404 = vmatprep.subr.bf16.mxu0 0
        %1405 = vmatpush1.bf16.xpose.msra.mxu0 0
        %1406 = vmatprep.subr.bf16.mxu0 0
        %1407 = vmatpush1.bf16.xpose.msra.mxu0 0
        %1408 = vmatprep.subr.bf16.mxu0 0
        %1409 = vmatpush1.bf16.xpose.msra.mxu0 0
        %1410 = vmatprep.subr.bf16.mxu0 0
        %1411 = vmatpush1.bf16.xpose.msra.mxu0 0
        %1412 = vmatprep.subr.bf16.mxu0 0
        %1413 = vmatpush1.bf16.xpose.msra.mxu0 0
        %1414 = vmatprep.subr.bf16.mxu0 0
        %1415 = vmatpush1.bf16.xpose.msra.mxu0 0
        %1416 = vmatprep.subr.bf16.mxu0 0
        %1417 = vmatpush1.bf16.xpose.msra.mxu0 0
        %1418 = vmatprep.subr.bf16.mxu0 0
        %1419 = vmatpush1.bf16.xpose.msra.mxu0 0
        %1420 = vmatprep.subr.bf16.mxu0 0
        %1421 = vmatpush1.bf16.xpose.msra.mxu0 0
        %1422 = vmatprep.subr.bf16.mxu0 0
        %1423 = vmatpush1.bf16.xpose.msra.mxu0 0
        %1424 = vmatprep.subr.bf16.mxu0 0
        %1425 = vmatpush1.bf16.xpose.msra.mxu0 0
        %1426 = vmatprep.mubr.bf16.mxu0 0
        %1427 = vmatmul.mubr.bf16.gmra.mrb[0].mxu0 %v1389
        %v1428 = vpop.f32.mrb[0].mxu0
        %v1429 = vadd.f32 0.0, %v1428
        %v1430 = vpop.f32.mrb[0].mxu0
        %v1431 = vpop.f32.mrb[0].mxu0
        %v1432 = vadd.f32 0.0, %v1431
        %v1433 = vpop.f32.mrb[0].mxu0
        %1434 = vdwg.mxu0
        %1436 = vrot.lane.b32.xlu0 %v1129, 64
        %v1437 = vpop.permute.xlu0 %1436
        %1439 = vrot.lane.b32.xlu0 %v1131, 64
        %v1440 = vpop.permute.xlu0 %1439
        %v1442 = vsel %vm1134, %v1437, 0
        %v1445 = vsel %vm1134, %v1440, 0
        %1447 = vmatprep.subr.bf16.mxu0 0
        %1448 = vmatpush1.bf16.xpose.msra.mxu0 %v1445
        %1449 = vmatprep.subr.bf16.mxu0 0
        %1450 = vmatpush1.bf16.xpose.msra.mxu0 0
        %1451 = vmatprep.subr.bf16.mxu0 0
        %1452 = vmatpush1.bf16.xpose.msra.mxu0 0
        %1453 = vmatprep.subr.bf16.mxu0 0
        %1454 = vmatpush1.bf16.xpose.msra.mxu0 0
        %1455 = vmatprep.subr.bf16.mxu0 0
        %1456 = vmatpush1.bf16.xpose.msra.mxu0 0
        %1457 = vmatprep.subr.bf16.mxu0 0
        %1458 = vmatpush1.bf16.xpose.msra.mxu0 0
        %1459 = vmatprep.subr.bf16.mxu0 0
        %1460 = vmatpush1.bf16.xpose.msra.mxu0 0
        %1461 = vmatprep.subr.bf16.mxu0 0
        %1462 = vmatpush1.bf16.xpose.msra.mxu0 0
        %1463 = vmatprep.subr.bf16.mxu0 0
        %1464 = vmatpush1.bf16.xpose.msra.mxu0 0
        %1465 = vmatprep.subr.bf16.mxu0 0
        %1466 = vmatpush1.bf16.xpose.msra.mxu0 0
        %1467 = vmatprep.subr.bf16.mxu0 0
        %1468 = vmatpush1.bf16.xpose.msra.mxu0 0
        %1469 = vmatprep.subr.bf16.mxu0 0
        %1470 = vmatpush1.bf16.xpose.msra.mxu0 0
        %1471 = vmatprep.subr.bf16.mxu0 0
        %1472 = vmatpush1.bf16.xpose.msra.mxu0 0
        %1473 = vmatprep.subr.bf16.mxu0 0
        %1474 = vmatpush1.bf16.xpose.msra.mxu0 0
        %1475 = vmatprep.subr.bf16.mxu0 0
        %1476 = vmatpush1.bf16.xpose.msra.mxu0 0
        %1477 = vmatprep.subr.bf16.mxu0 0
        %1478 = vmatpush1.bf16.xpose.msra.mxu0 0
        %1479 = vmatprep.mubr.bf16.mxu0 0
        %1480 = vmatmul.mubr.bf16.gmra.mrb[0].mxu0 %v1442
        %v1481 = vpop.f32.mrb[0].mxu0
        %v1482 = vadd.f32 0.0, %v1481
        %v1483 = vpop.f32.mrb[0].mxu0
        %v1484 = vpop.f32.mrb[0].mxu0
        %v1485 = vadd.f32 0.0, %v1484
        %v1486 = vpop.f32.mrb[0].mxu0
        %1487 = vdwg.mxu0
        %v1488 = vmul.f32 %v1429, 0.125
        %v1489 = vmul.f32 %v1432, 0.125
        %v1490 = vmul.f32 %v1482, 0.125
        %v1491 = vmul.f32 %v1485, 0.125
        %v1492 = vadd.f32 %v1488, %v1236
        %v1493 = vadd.f32 %v1489, %v1236
        %v1494 = vadd.f32 %v1490, %v1240
        %v1495 = vadd.f32 %v1491, %v1240
        %v1496 = vsel %vm1247, %v1492, -inf
        %1497 = vmax.xlane.f32.xlu0 %v1496
        %v1498 = vpop.xlane.xlu0 %1497
        %v1499 = vsel %vm1247, %v1493, -inf
        %1500 = vmax.xlane.f32.xlu0 %v1499
        %v1501 = vpop.xlane.xlu0 %1500
        %v1502 = vsel %vm1247, %v1494, -inf
        %1503 = vmax.xlane.f32.xlu0 %v1502
        %v1504 = vpop.xlane.xlu0 %1503
        %v1505 = vsel %vm1247, %v1495, -inf
        %1506 = vmax.xlane.f32.xlu0 %v1505
        %v1507 = vpop.xlane.xlu0 %1506
        %v1508 = vsub.f32 %v1492, %v1498
        %v1509 = vsub.f32 %v1493, %v1501
        %v1510 = vsub.f32 %v1494, %v1504
        %v1511 = vsub.f32 %v1495, %v1507
        %v1512 = vmul.f32 %v1508, 1.442695
        %v1513 = vpow.pop %v1512
        %v1514 = vmul.f32 %v1509, 1.442695
        %v1515 = vpow.pop %v1514
        %v1516 = vmul.f32 %v1510, 1.442695
        %v1517 = vpow.pop %v1516
        %v1518 = vmul.f32 %v1511, 1.442695
        %v1519 = vpow.pop %v1518
        %v1520 = vsel %vm1247, %v1513, 0.0
        %1521 = vadd.xlane.f32.xlu0 %v1520
        %v1522 = vpop.xlane.xlu0 %1521
        %v1523 = vsel %vm1247, %v1515, 0.0
        %1524 = vadd.xlane.f32.xlu0 %v1523
        %v1525 = vpop.xlane.xlu0 %1524
        %v1526 = vsel %vm1247, %v1517, 0.0
        %1527 = vadd.xlane.f32.xlu0 %v1526
        %v1528 = vpop.xlane.xlu0 %1527
        %v1529 = vsel %vm1247, %v1519, 0.0
        %1530 = vadd.xlane.f32.xlu0 %v1529
        %v1531 = vpop.xlane.xlu0 %1530
        %v1532 = vrcp.pop %v1522
        %v1533 = vrcp.pop %v1525
        %v1534 = vrcp.pop %v1528
        %v1535 = vrcp.pop %v1531
        %v1536 = vmul.f32 %v1513, %v1532
        %v1537 = vmul.f32 %v1515, %v1533
        %v1538 = vmul.f32 %v1517, %v1534
        %v1539 = vmul.f32 %v1519, %v1535
        %v1540 = vpack.c.bf16 %v1537, %v1536
        %v1541 = vpack.c.bf16 %v1539, %v1538
        %1543 = vrot.lane.b32.xlu0 %v1132, 64
        %v1544 = vpop.permute.xlu0 %1543
        %v1547 = vsel %vm1247, %v1540, 0
        %1549 = vmatprep.subr.bf16.mxu0 0
        %1550 = vmatpush1.bf16.msra.mxu0 %v1544
        %1551 = vmatprep.subr.bf16.mxu0 0
        %1552 = vmatpush1.bf16.msra.mxu0 0
        %1553 = vmatprep.subr.bf16.mxu0 0
        %1554 = vmatpush1.bf16.msra.mxu0 0
        %1555 = vmatprep.subr.bf16.mxu0 0
        %1556 = vmatpush1.bf16.msra.mxu0 0
        %1557 = vmatprep.subr.bf16.mxu0 0
        %1558 = vmatpush1.bf16.msra.mxu0 0
        %1559 = vmatprep.subr.bf16.mxu0 0
        %1560 = vmatpush1.bf16.msra.mxu0 0
        %1561 = vmatprep.subr.bf16.mxu0 0
        %1562 = vmatpush1.bf16.msra.mxu0 0
        %1563 = vmatprep.subr.bf16.mxu0 0
        %1564 = vmatpush1.bf16.msra.mxu0 0
        %1565 = vmatprep.subr.bf16.mxu0 0
        %1566 = vmatpush1.bf16.msra.mxu0 0
        %1567 = vmatprep.subr.bf16.mxu0 0
        %1568 = vmatpush1.bf16.msra.mxu0 0
        %1569 = vmatprep.subr.bf16.mxu0 0
        %1570 = vmatpush1.bf16.msra.mxu0 0
        %1571 = vmatprep.subr.bf16.mxu0 0
        %1572 = vmatpush1.bf16.msra.mxu0 0
        %1573 = vmatprep.subr.bf16.mxu0 0
        %1574 = vmatpush1.bf16.msra.mxu0 0
        %1575 = vmatprep.subr.bf16.mxu0 0
        %1576 = vmatpush1.bf16.msra.mxu0 0
        %1577 = vmatprep.subr.bf16.mxu0 0
        %1578 = vmatpush1.bf16.msra.mxu0 0
        %1579 = vmatprep.subr.bf16.mxu0 0
        %1580 = vmatpush1.bf16.msra.mxu0 0
        %1581 = vmatprep.mubr.bf16.mxu0 0
        %1582 = vmatmul.mubr.bf16.gmra.mrb[0].mxu0 %v1547
        %v1583 = vpop.f32.mrb[0].mxu0
        %v1584 = vadd.f32 0.0, %v1583
        %v1585 = vpop.f32.mrb[0].mxu0
        %v1586 = vpop.f32.mrb[0].mxu0
        %v1587 = vadd.f32 0.0, %v1586
        %v1588 = vpop.f32.mrb[0].mxu0
        %1589 = vdwg.mxu0
        %1591 = vrot.lane.b32.xlu0 %v1133, 64
        %v1592 = vpop.permute.xlu0 %1591
        %v1595 = vsel %vm1247, %v1541, 0
        %1597 = vmatprep.subr.bf16.mxu0 0
        %1598 = vmatpush1.bf16.msra.mxu0 %v1592
        %1599 = vmatprep.subr.bf16.mxu0 0
        %1600 = vmatpush1.bf16.msra.mxu0 0
        %1601 = vmatprep.subr.bf16.mxu0 0
        %1602 = vmatpush1.bf16.msra.mxu0 0
        %1603 = vmatprep.subr.bf16.mxu0 0
        %1604 = vmatpush1.bf16.msra.mxu0 0
        %1605 = vmatprep.subr.bf16.mxu0 0
        %1606 = vmatpush1.bf16.msra.mxu0 0
        %1607 = vmatprep.subr.bf16.mxu0 0
        %1608 = vmatpush1.bf16.msra.mxu0 0
        %1609 = vmatprep.subr.bf16.mxu0 0
        %1610 = vmatpush1.bf16.msra.mxu0 0
        %1611 = vmatprep.subr.bf16.mxu0 0
        %1612 = vmatpush1.bf16.msra.mxu0 0
        %1613 = vmatprep.subr.bf16.mxu0 0
        %1614 = vmatpush1.bf16.msra.mxu0 0
        %1615 = vmatprep.subr.bf16.mxu0 0
        %1616 = vmatpush1.bf16.msra.mxu0 0
        %1617 = vmatprep.subr.bf16.mxu0 0
        %1618 = vmatpush1.bf16.msra.mxu0 0
        %1619 = vmatprep.subr.bf16.mxu0 0
        %1620 = vmatpush1.bf16.msra.mxu0 0
        %1621 = vmatprep.subr.bf16.mxu0 0
        %1622 = vmatpush1.bf16.msra.mxu0 0
        %1623 = vmatprep.subr.bf16.mxu0 0
        %1624 = vmatpush1.bf16.msra.mxu0 0
        %1625 = vmatprep.subr.bf16.mxu0 0
        %1626 = vmatpush1.bf16.msra.mxu0 0
        %1627 = vmatprep.subr.bf16.mxu0 0
        %1628 = vmatpush1.bf16.msra.mxu0 0
        %1629 = vmatprep.mubr.bf16.mxu0 0
        %1630 = vmatmul.mubr.bf16.gmra.mrb[0].mxu0 %v1595
        %v1631 = vpop.f32.mrb[0].mxu0
        %v1632 = vadd.f32 0.0, %v1631
        %v1633 = vpop.f32.mrb[0].mxu0
        %v1634 = vpop.f32.mrb[0].mxu0
        %v1635 = vadd.f32 0.0, %v1634
        %v1636 = vpop.f32.mrb[0].mxu0
        %1637 = vdwg.mxu0
        %1642 = vrot.lane.b32.xlu0 %v1584, 64
        %v1643 = vpop.permute.xlu0 %1642
        %1644 = vrot.lane.b32.xlu0 %v1587, 64
        %v1645 = vpop.permute.xlu0 %1644
        %1646 = vrot.lane.b32.xlu0 %v1632, 64
        %v1647 = vpop.permute.xlu0 %1646
        %1648 = vrot.lane.b32.xlu0 %v1635, 64
        %v1649 = vpop.permute.xlu0 %1648
        %v1654 = vsel %vm1134, %v1332, %v1643
        %v1655 = vsel %vm1134, %v1335, %v1645
        %v1656 = vsel %vm1134, %v1376, %v1647
        %v1657 = vsel %vm1134, %v1379, %v1649
        %v1658 = vpack.c.bf16 %v1655, %v1654
        %v1659 = vpack.c.bf16 %v1657, %v1656
        %v1660 = vld [vmem:[%s715] sm:$0xf]
        %v1661 = vld [vmem:[%s715 + $0x4] sm:$0xf]
        %v1662 = vld [vmem:[%s715 + $0x8] sm:$0xf]
        %v1663 = vld [vmem:[%s715 + $0xc] sm:$0xf]
        %v1664 = vld [vmem:[%s715 + $0x10] sm:$0xf]
        %v1665 = vld [vmem:[%s715 + $0x14] sm:$0xf]
        %v1666 = vld [vmem:[%s715 + $0x18] sm:$0xf]
        %v1667 = vld [vmem:[%s715 + $0x1c] sm:$0xf]
        %v1668 = vld [vmem:[%s715 + $0x20] sm:$0xf]
        %v1669 = vld [vmem:[%s715 + $0x24] sm:$0xf]
        %v1670 = vld [vmem:[%s715 + $0x28] sm:$0xf]
        %v1671 = vld [vmem:[%s715 + $0x2c] sm:$0xf]
        %v1672 = vld [vmem:[%s715 + $0x30] sm:$0xf]
        %v1673 = vld [vmem:[%s715 + $0x34] sm:$0xf]
        %v1674 = vld [vmem:[%s715 + $0x38] sm:$0xf]
        %v1675 = vld [vmem:[%s715 + $0x3c] sm:$0xf]
        %v1676 = vld [vmem:[%s718] sm:$0x1]
        %v1678 = vlaneseq
        %v1679 = vshrl.u32 %v1678, 7
        %v1680 = vsub.s32 0, %v1679
        %v1681 = vrot.slane %v1676, %v1680
        %v1699 = vunpack.c.l.b16 %v1660
        %v1700 = vunpack.c.l.b16 %v1661
        %v1701 = vunpack.c.l.b16 %v1662
        %v1702 = vunpack.c.l.b16 %v1663
        %v1703 = vunpack.c.l.b16 %v1664
        %v1704 = vunpack.c.l.b16 %v1665
        %v1705 = vunpack.c.l.b16 %v1666
        %v1706 = vunpack.c.l.b16 %v1667
        %v1707 = vunpack.c.l.b16 %v1668
        %v1708 = vunpack.c.l.b16 %v1669
        %v1709 = vunpack.c.l.b16 %v1670
        %v1710 = vunpack.c.l.b16 %v1671
        %v1711 = vunpack.c.l.b16 %v1672
        %v1712 = vunpack.c.l.b16 %v1673
        %v1713 = vunpack.c.l.b16 %v1674
        %v1714 = vunpack.c.l.b16 %v1675
        %v1715 = vpack.c.b16 %v1700, %v1699
        %v1716 = vpack.c.b16 %v1702, %v1701
        %v1717 = vpack.c.b16 %v1704, %v1703
        %v1718 = vpack.c.b16 %v1706, %v1705
        %v1719 = vpack.c.b16 %v1708, %v1707
        %v1720 = vpack.c.b16 %v1710, %v1709
        %v1721 = vpack.c.b16 %v1712, %v1711
        %v1722 = vpack.c.b16 %v1714, %v1713
        %1731 = vmatprep.subr.bf16.mxu0 0
        %1732 = vmatpush1.bf16.msra.mxu0 %v1715
        %1733 = vmatprep.subr.bf16.mxu0 0
        %1734 = vmatpush1.bf16.msra.mxu0 %v1716
        %1735 = vmatprep.subr.bf16.mxu0 0
        %1736 = vmatpush1.bf16.msra.mxu0 %v1717
        %1737 = vmatprep.subr.bf16.mxu0 0
        %1738 = vmatpush1.bf16.msra.mxu0 %v1718
        %1739 = vmatprep.subr.bf16.mxu0 0
        %1740 = vmatpush1.bf16.msra.mxu0 %v1719
        %1741 = vmatprep.subr.bf16.mxu0 0
        %1742 = vmatpush1.bf16.msra.mxu0 %v1720
        %1743 = vmatprep.subr.bf16.mxu0 0
        %1744 = vmatpush1.bf16.msra.mxu0 %v1721
        %1745 = vmatprep.subr.bf16.mxu0 0
        %1746 = vmatpush1.bf16.msra.mxu0 %v1722
        %1747 = vmatprep.subr.bf16.mxu0 0
        %1748 = vmatpush1.bf16.msra.mxu0 0
        %1749 = vmatprep.subr.bf16.mxu0 0
        %1750 = vmatpush1.bf16.msra.mxu0 0
        %1751 = vmatprep.subr.bf16.mxu0 0
        %1752 = vmatpush1.bf16.msra.mxu0 0
        %1753 = vmatprep.subr.bf16.mxu0 0
        %1754 = vmatpush1.bf16.msra.mxu0 0
        %1755 = vmatprep.subr.bf16.mxu0 0
        %1756 = vmatpush1.bf16.msra.mxu0 0
        %1757 = vmatprep.subr.bf16.mxu0 0
        %1758 = vmatpush1.bf16.msra.mxu0 0
        %1759 = vmatprep.subr.bf16.mxu0 0
        %1760 = vmatpush1.bf16.msra.mxu0 0
        %1761 = vmatprep.subr.bf16.mxu0 0
        %1762 = vmatpush1.bf16.msra.mxu0 0
        %1763 = vmatprep.mubr.bf16.mxu0 0
        %1764 = vmatmul.mubr.bf16.gmra.mrb[0].mxu0 %v1658
        %v1765 = vpop.f32.mrb[0].mxu0
        %v1766 = vadd.f32 %v1681, %v1765
        %v1767 = vpop.f32.mrb[0].mxu0
        %v1768 = vpop.f32.mrb[0].mxu0
        %v1769 = vadd.f32 %v1681, %v1768
        %v1770 = vpop.f32.mrb[0].mxu0
        %1771 = vmatprep.mubr.bf16.mxu0 0
        %1772 = vmatmul.mubr.bf16.gmra.mrb[0].mxu0 %v1659
        %v1773 = vpop.f32.mrb[0].mxu0
        %v1774 = vadd.f32 %v1681, %v1773
        %v1775 = vpop.f32.mrb[0].mxu0
        %v1776 = vpop.f32.mrb[0].mxu0
        %v1777 = vadd.f32 %v1681, %v1776
        %v1778 = vpop.f32.mrb[0].mxu0
        %1779 = vdwg.mxu0
        %v1780 = vld [vmem:[%s722] sm:$0x3]
        %v1781 = vadd.f32 %v1766, %v819
        %v1782 = vadd.f32 %v1769, %v820
        %v1783 = vadd.f32 %v1774, %v821
        %v1784 = vadd.f32 %v1777, %v822
        %1785 = vadd.xlane.f32.xlu0 %v1781
        %v1786 = vpop.xlane.xlu0 %1785
        %1787 = vadd.xlane.f32.xlu0 %v1782
        %v1788 = vpop.xlane.xlu0 %1787
        %1789 = vadd.xlane.f32.xlu0 %v1783
        %v1790 = vpop.xlane.xlu0 %1789
        %1791 = vadd.xlane.f32.xlu0 %v1784
        %v1792 = vpop.xlane.xlu0 %1791
        %v1793 = vrcp.pop 128.0
        %v1794 = vmul.f32 %v1786, %v1793
        %v1795 = vmul.f32 %v1788, %v1793
        %v1796 = vmul.f32 %v1790, %v1793
        %v1797 = vmul.f32 %v1792, %v1793
        %v1798 = vsub.f32 %v1781, %v1794
        %v1799 = vsub.f32 %v1782, %v1795
        %v1800 = vsub.f32 %v1783, %v1796
        %v1801 = vsub.f32 %v1784, %v1797
        %v1802 = vmul.f32 %v1798, %v1798
        %v1803 = vmul.f32 %v1799, %v1799
        %v1804 = vmul.f32 %v1800, %v1800
        %v1805 = vmul.f32 %v1801, %v1801
        %1806 = vadd.xlane.f32.xlu0 %v1802
        %v1807 = vpop.xlane.xlu0 %1806
        %1808 = vadd.xlane.f32.xlu0 %v1803
        %v1809 = vpop.xlane.xlu0 %1808
        %1810 = vadd.xlane.f32.xlu0 %v1804
        %v1811 = vpop.xlane.xlu0 %1810
        %1812 = vadd.xlane.f32.xlu0 %v1805
        %v1813 = vpop.xlane.xlu0 %1812
        %v1814 = vmul.f32 %v1807, %v1793
        %v1815 = vmul.f32 %v1809, %v1793
        %v1816 = vmul.f32 %v1811, %v1793
        %v1817 = vmul.f32 %v1813, %v1793
        %v1818 = vadd.f32 %v1814, 1e-12
        %v1819 = vadd.f32 %v1815, 1e-12
        %v1820 = vadd.f32 %v1816, 1e-12
        %v1821 = vadd.f32 %v1817, 1e-12
        %v1822 = vrsqrt.pop %v1818
        %v1823 = vrsqrt.pop %v1819
        %v1824 = vrsqrt.pop %v1820
        %v1825 = vrsqrt.pop %v1821
        %v1826 = vmul.f32 %v1798, %v1822
        %v1827 = vmul.f32 %v1799, %v1823
        %v1828 = vmul.f32 %v1800, %v1824
        %v1829 = vmul.f32 %v1801, %v1825
        %v1830 = vlaneseq
        %v1831 = vshrl.u32 %v1830, 7
        %v1832 = vsub.s32 0, %v1831
        %v1833 = vrot.slane %v1780, %v1832
        %v1834 = vmul.f32 %v1826, %v1833
        %v1835 = vmul.f32 %v1827, %v1833
        %v1836 = vmul.f32 %v1828, %v1833
        %v1837 = vmul.f32 %v1829, %v1833
        %v1838 = vlaneseq
        %v1839 = vshrl.u32 %v1838, 7
        %v1840 = vsub.s32 1, %v1839
        %v1841 = vrot.slane %v1780, %v1840
        %v1842 = vadd.f32 %v1834, %v1841
        %v1843 = vadd.f32 %v1835, %v1841
        %v1844 = vadd.f32 %v1836, %v1841
        %v1845 = vadd.f32 %v1837, %v1841
        %v1846 = vpack.c.bf16 %v1843, %v1842
        %v1847 = vpack.c.bf16 %v1845, %v1844
        %v1848 = vld [vmem:[%s727] sm:$0xff]
        %v1849 = vld [vmem:[%s727 + $0x8] sm:$0xff]
        %v1850 = vld [vmem:[%s727 + $0x10] sm:$0xff]
        %v1851 = vld [vmem:[%s727 + $0x18] sm:$0xff]
        %v1852 = vld [vmem:[%s727 + $0x20] sm:$0xff]
        %v1853 = vld [vmem:[%s727 + $0x28] sm:$0xff]
        %v1854 = vld [vmem:[%s727 + $0x30] sm:$0xff]
        %v1855 = vld [vmem:[%s727 + $0x38] sm:$0xff]
        %v1856 = vld [vmem:[%s727 + $0x40] sm:$0xff]
        %v1857 = vld [vmem:[%s727 + $0x48] sm:$0xff]
        %v1858 = vld [vmem:[%s727 + $0x50] sm:$0xff]
        %v1859 = vld [vmem:[%s727 + $0x58] sm:$0xff]
        %v1860 = vld [vmem:[%s727 + $0x60] sm:$0xff]
        %v1861 = vld [vmem:[%s727 + $0x68] sm:$0xff]
        %v1862 = vld [vmem:[%s727 + $0x70] sm:$0xff]
        %v1863 = vld [vmem:[%s727 + $0x78] sm:$0xff]
        %v1864 = vld [vmem:[%s731] sm:$0x3]
        %v1866 = vlaneseq
        %v1867 = vshrl.u32 %v1866, 7
        %v1868 = vsub.s32 0, %v1867
        %v1869 = vrot.slane %v1864, %v1868
        %v1870 = vlaneseq
        %v1871 = vshrl.u32 %v1870, 7
        %v1872 = vsub.s32 1, %v1871
        %v1873 = vrot.slane %v1864, %v1872
        %v1892 = vunpack.c.l.b16 %v1848
        %v1893 = vunpack.c.h.b16 %v1848
        %v1894 = vunpack.c.l.b16 %v1849
        %v1895 = vunpack.c.h.b16 %v1849
        %v1896 = vunpack.c.l.b16 %v1850
        %v1897 = vunpack.c.h.b16 %v1850
        %v1898 = vunpack.c.l.b16 %v1851
        %v1899 = vunpack.c.h.b16 %v1851
        %v1900 = vunpack.c.l.b16 %v1852
        %v1901 = vunpack.c.h.b16 %v1852
        %v1902 = vunpack.c.l.b16 %v1853
        %v1903 = vunpack.c.h.b16 %v1853
        %v1904 = vunpack.c.l.b16 %v1854
        %v1905 = vunpack.c.h.b16 %v1854
        %v1906 = vunpack.c.l.b16 %v1855
        %v1907 = vunpack.c.h.b16 %v1855
        %v1908 = vunpack.c.l.b16 %v1856
        %v1909 = vunpack.c.h.b16 %v1856
        %v1910 = vunpack.c.l.b16 %v1857
        %v1911 = vunpack.c.h.b16 %v1857
        %v1912 = vunpack.c.l.b16 %v1858
        %v1913 = vunpack.c.h.b16 %v1858
        %v1914 = vunpack.c.l.b16 %v1859
        %v1915 = vunpack.c.h.b16 %v1859
        %v1916 = vunpack.c.l.b16 %v1860
        %v1917 = vunpack.c.h.b16 %v1860
        %v1918 = vunpack.c.l.b16 %v1861
        %v1919 = vunpack.c.h.b16 %v1861
        %v1920 = vunpack.c.l.b16 %v1862
        %v1921 = vunpack.c.h.b16 %v1862
        %v1922 = vunpack.c.l.b16 %v1863
        %v1923 = vunpack.c.h.b16 %v1863
        %v1924 = vpack.c.b16 %v1894, %v1892
        %v1925 = vpack.c.b16 %v1895, %v1893
        %v1926 = vpack.c.b16 %v1898, %v1896
        %v1927 = vpack.c.b16 %v1899, %v1897
        %v1928 = vpack.c.b16 %v1902, %v1900
        %v1929 = vpack.c.b16 %v1903, %v1901
        %v1930 = vpack.c.b16 %v1906, %v1904
        %v1931 = vpack.c.b16 %v1907, %v1905
        %v1932 = vpack.c.b16 %v1910, %v1908
        %v1933 = vpack.c.b16 %v1911, %v1909
        %v1934 = vpack.c.b16 %v1914, %v1912
        %v1935 = vpack.c.b16 %v1915, %v1913
        %v1936 = vpack.c.b16 %v1918, %v1916
        %v1937 = vpack.c.b16 %v1919, %v1917
        %v1938 = vpack.c.b16 %v1922, %v1920
        %v1939 = vpack.c.b16 %v1923, %v1921
        %1956 = vmatprep.subr.bf16.mxu0 %v1925
        %1957 = vmatpush1.bf16.msra.mxu0 %v1924
        %1958 = vmatprep.subr.bf16.mxu0 %v1927
        %1959 = vmatpush1.bf16.msra.mxu0 %v1926
        %1960 = vmatprep.subr.bf16.mxu0 %v1929
        %1961 = vmatpush1.bf16.msra.mxu0 %v1928
        %1962 = vmatprep.subr.bf16.mxu0 %v1931
        %1963 = vmatpush1.bf16.msra.mxu0 %v1930
        %1964 = vmatprep.subr.bf16.mxu0 %v1933
        %1965 = vmatpush1.bf16.msra.mxu0 %v1932
        %1966 = vmatprep.subr.bf16.mxu0 %v1935
        %1967 = vmatpush1.bf16.msra.mxu0 %v1934
        %1968 = vmatprep.subr.bf16.mxu0 %v1937
        %1969 = vmatpush1.bf16.msra.mxu0 %v1936
        %1970 = vmatprep.subr.bf16.mxu0 %v1939
        %1971 = vmatpush1.bf16.msra.mxu0 %v1938
        %1972 = vmatprep.subr.bf16.mxu0 0
        %1973 = vmatpush1.bf16.msra.mxu0 0
        %1974 = vmatprep.subr.bf16.mxu0 0
        %1975 = vmatpush1.bf16.msra.mxu0 0
        %1976 = vmatprep.subr.bf16.mxu0 0
        %1977 = vmatpush1.bf16.msra.mxu0 0
        %1978 = vmatprep.subr.bf16.mxu0 0
        %1979 = vmatpush1.bf16.msra.mxu0 0
        %1980 = vmatprep.subr.bf16.mxu0 0
        %1981 = vmatpush1.bf16.msra.mxu0 0
        %1982 = vmatprep.subr.bf16.mxu0 0
        %1983 = vmatpush1.bf16.msra.mxu0 0
        %1984 = vmatprep.subr.bf16.mxu0 0
        %1985 = vmatpush1.bf16.msra.mxu0 0
        %1986 = vmatprep.subr.bf16.mxu0 0
        %1987 = vmatpush1.bf16.msra.mxu0 0
        %1988 = vmatprep.mubr.bf16.mxu0 0
        %1989 = vmatmul.mubr.bf16.gmra.mrb[0].mxu0 %v1846
        %v1990 = vpop.f32.mrb[0].mxu0
        %v1991 = vadd.f32 %v1869, %v1990
        %v1992 = vpop.f32.mrb[0].mxu0
        %v1993 = vadd.f32 %v1873, %v1992
        %v1994 = vpop.f32.mrb[0].mxu0
        %v1995 = vadd.f32 %v1869, %v1994
        %v1996 = vpop.f32.mrb[0].mxu0
        %v1997 = vadd.f32 %v1873, %v1996
        %1998 = vmatprep.mubr.bf16.mxu0 0
        %1999 = vmatmul.mubr.bf16.gmra.mrb[0].mxu0 %v1847
        %v2000 = vpop.f32.mrb[0].mxu0
        %v2001 = vadd.f32 %v1869, %v2000
        %v2002 = vpop.f32.mrb[0].mxu0
        %v2003 = vadd.f32 %v1873, %v2002
        %v2004 = vpop.f32.mrb[0].mxu0
        %v2005 = vadd.f32 %v1869, %v2004
        %v2006 = vpop.f32.mrb[0].mxu0
        %v2007 = vadd.f32 %v1873, %v2006
        %2008 = vdwg.mxu0
        %v2009 = vmul.f32 %v1991, 0.5
        %v2010 = vmul.f32 %v1993, 0.5
        %v2011 = vmul.f32 %v1995, 0.5
        %v2012 = vmul.f32 %v1997, 0.5
        %v2013 = vmul.f32 %v2001, 0.5
        %v2014 = vmul.f32 %v2003, 0.5
        %v2015 = vmul.f32 %v2005, 0.5
        %v2016 = vmul.f32 %v2007, 0.5
        %v2017 = vmul.f32 %v1991, 0.044715
        %v2018 = vmul.f32 %v1993, 0.044715
        %v2019 = vmul.f32 %v1995, 0.044715
        %v2020 = vmul.f32 %v1997, 0.044715
        %v2021 = vmul.f32 %v2001, 0.044715
        %v2022 = vmul.f32 %v2003, 0.044715
        %v2023 = vmul.f32 %v2005, 0.044715
        %v2024 = vmul.f32 %v2007, 0.044715
        %v2025 = vmul.f32 %v2017, %v1991
        %v2026 = vmul.f32 %v2018, %v1993
        %v2027 = vmul.f32 %v2019, %v1995
        %v2028 = vmul.f32 %v2020, %v1997
        %v2029 = vmul.f32 %v2021, %v2001
        %v2030 = vmul.f32 %v2022, %v2003
        %v2031 = vmul.f32 %v2023, %v2005
        %v2032 = vmul.f32 %v2024, %v2007
        %v2033 = vmul.f32 %v2025, %v1991
        %v2034 = vmul.f32 %v2026, %v1993
        %v2035 = vmul.f32 %v2027, %v1995
        %v2036 = vmul.f32 %v2028, %v1997
        %v2037 = vmul.f32 %v2029, %v2001
        %v2038 = vmul.f32 %v2030, %v2003
        %v2039 = vmul.f32 %v2031, %v2005
        %v2040 = vmul.f32 %v2032, %v2007
        %v2041 = vadd.f32 %v1991, %v2033
        %v2042 = vadd.f32 %v1993, %v2034
        %v2043 = vadd.f32 %v1995, %v2035
        %v2044 = vadd.f32 %v1997, %v2036
        %v2045 = vadd.f32 %v2001, %v2037
        %v2046 = vadd.f32 %v2003, %v2038
        %v2047 = vadd.f32 %v2005, %v2039
        %v2048 = vadd.f32 %v2007, %v2040
        %v2049 = vmul.f32 %v2041, 0.7978846
        %v2050 = vmul.f32 %v2042, 0.7978846
        %v2051 = vmul.f32 %v2043, 0.7978846
        %v2052 = vmul.f32 %v2044, 0.7978846
        %v2053 = vmul.f32 %v2045, 0.7978846
        %v2054 = vmul.f32 %v2046, 0.7978846
        %v2055 = vmul.f32 %v2047, 0.7978846
        %v2056 = vmul.f32 %v2048, 0.7978846
        %v2057 = vtanh.pop %v2049
        %v2058 = vtanh.pop %v2050
        %v2059 = vtanh.pop %v2051
        %v2060 = vtanh.pop %v2052
        %v2061 = vtanh.pop %v2053
        %v2062 = vtanh.pop %v2054
        %v2063 = vtanh.pop %v2055
        %v2064 = vtanh.pop %v2056
        %v2065 = vadd.f32 %v2057, 1.0
        %v2066 = vadd.f32 %v2058, 1.0
        %v2067 = vadd.f32 %v2059, 1.0
        %v2068 = vadd.f32 %v2060, 1.0
        %v2069 = vadd.f32 %v2061, 1.0
        %v2070 = vadd.f32 %v2062, 1.0
        %v2071 = vadd.f32 %v2063, 1.0
        %v2072 = vadd.f32 %v2064, 1.0
        %v2073 = vmul.f32 %v2009, %v2065
        %v2074 = vmul.f32 %v2010, %v2066
        %v2075 = vmul.f32 %v2011, %v2067
        %v2076 = vmul.f32 %v2012, %v2068
        %v2077 = vmul.f32 %v2013, %v2069
        %v2078 = vmul.f32 %v2014, %v2070
        %v2079 = vmul.f32 %v2015, %v2071
        %v2080 = vmul.f32 %v2016, %v2072
        %v2081 = vpack.c.bf16 %v2075, %v2073
        %v2082 = vpack.c.bf16 %v2076, %v2074
        %v2083 = vpack.c.bf16 %v2079, %v2077
        %v2084 = vpack.c.bf16 %v2080, %v2078
        %v2085 = vld [vmem:[%s736] sm:$0xf]
        %v2086 = vld [vmem:[%s736 + $0x4] sm:$0xf]
        %v2087 = vld [vmem:[%s736 + $0x8] sm:$0xf]
        %v2088 = vld [vmem:[%s736 + $0xc] sm:$0xf]
        %v2089 = vld [vmem:[%s736 + $0x10] sm:$0xf]
        %v2090 = vld [vmem:[%s736 + $0x14] sm:$0xf]
        %v2091 = vld [vmem:[%s736 + $0x18] sm:$0xf]
        %v2092 = vld [vmem:[%s736 + $0x1c] sm:$0xf]
        %v2093 = vld [vmem:[%s736 + $0x20] sm:$0xf]
        %v2094 = vld [vmem:[%s736 + $0x24] sm:$0xf]
        %v2095 = vld [vmem:[%s736 + $0x28] sm:$0xf]
        %v2096 = vld [vmem:[%s736 + $0x2c] sm:$0xf]
        %v2097 = vld [vmem:[%s736 + $0x30] sm:$0xf]
        %v2098 = vld [vmem:[%s736 + $0x34] sm:$0xf]
        %v2099 = vld [vmem:[%s736 + $0x38] sm:$0xf]
        %v2100 = vld [vmem:[%s736 + $0x3c] sm:$0xf]
        %v2101 = vld [vmem:[%s736 + $0x40] sm:$0xf]
        %v2102 = vld [vmem:[%s736 + $0x44] sm:$0xf]
        %v2103 = vld [vmem:[%s736 + $0x48] sm:$0xf]
        %v2104 = vld [vmem:[%s736 + $0x4c] sm:$0xf]
        %v2105 = vld [vmem:[%s736 + $0x50] sm:$0xf]
        %v2106 = vld [vmem:[%s736 + $0x54] sm:$0xf]
        %v2107 = vld [vmem:[%s736 + $0x58] sm:$0xf]
        %v2108 = vld [vmem:[%s736 + $0x5c] sm:$0xf]
        %v2109 = vld [vmem:[%s736 + $0x60] sm:$0xf]
        %v2110 = vld [vmem:[%s736 + $0x64] sm:$0xf]
        %v2111 = vld [vmem:[%s736 + $0x68] sm:$0xf]
        %v2112 = vld [vmem:[%s736 + $0x6c] sm:$0xf]
        %v2113 = vld [vmem:[%s736 + $0x70] sm:$0xf]
        %v2114 = vld [vmem:[%s736 + $0x74] sm:$0xf]
        %v2115 = vld [vmem:[%s736 + $0x78] sm:$0xf]
        %v2116 = vld [vmem:[%s736 + $0x7c] sm:$0xf]
        %v2117 = vld [vmem:[%s739] sm:$0x1]
        %v2119 = vlaneseq
        %v2120 = vshrl.u32 %v2119, 7
        %v2121 = vsub.s32 0, %v2120
        %v2122 = vrot.slane %v2117, %v2121
        %v2156 = vunpack.c.l.b16 %v2085
        %v2157 = vunpack.c.l.b16 %v2086
        %v2158 = vunpack.c.l.b16 %v2087
        %v2159 = vunpack.c.l.b16 %v2088
        %v2160 = vunpack.c.l.b16 %v2089
        %v2161 = vunpack.c.l.b16 %v2090
        %v2162 = vunpack.c.l.b16 %v2091
        %v2163 = vunpack.c.l.b16 %v2092
        %v2164 = vunpack.c.l.b16 %v2093
        %v2165 = vunpack.c.l.b16 %v2094
        %v2166 = vunpack.c.l.b16 %v2095
        %v2167 = vunpack.c.l.b16 %v2096
        %v2168 = vunpack.c.l.b16 %v2097
        %v2169 = vunpack.c.l.b16 %v2098
        %v2170 = vunpack.c.l.b16 %v2099
        %v2171 = vunpack.c.l.b16 %v2100
        %v2172 = vunpack.c.l.b16 %v2101
        %v2173 = vunpack.c.l.b16 %v2102
        %v2174 = vunpack.c.l.b16 %v2103
        %v2175 = vunpack.c.l.b16 %v2104
        %v2176 = vunpack.c.l.b16 %v2105
        %v2177 = vunpack.c.l.b16 %v2106
        %v2178 = vunpack.c.l.b16 %v2107
        %v2179 = vunpack.c.l.b16 %v2108
        %v2180 = vunpack.c.l.b16 %v2109
        %v2181 = vunpack.c.l.b16 %v2110
        %v2182 = vunpack.c.l.b16 %v2111
        %v2183 = vunpack.c.l.b16 %v2112
        %v2184 = vunpack.c.l.b16 %v2113
        %v2185 = vunpack.c.l.b16 %v2114
        %v2186 = vunpack.c.l.b16 %v2115
        %v2187 = vunpack.c.l.b16 %v2116
        %v2188 = vpack.c.b16 %v2157, %v2156
        %v2189 = vpack.c.b16 %v2159, %v2158
        %v2190 = vpack.c.b16 %v2161, %v2160
        %v2191 = vpack.c.b16 %v2163, %v2162
        %v2192 = vpack.c.b16 %v2165, %v2164
        %v2193 = vpack.c.b16 %v2167, %v2166
        %v2194 = vpack.c.b16 %v2169, %v2168
        %v2195 = vpack.c.b16 %v2171, %v2170
        %v2196 = vpack.c.b16 %v2173, %v2172
        %v2197 = vpack.c.b16 %v2175, %v2174
        %v2198 = vpack.c.b16 %v2177, %v2176
        %v2199 = vpack.c.b16 %v2179, %v2178
        %v2200 = vpack.c.b16 %v2181, %v2180
        %v2201 = vpack.c.b16 %v2183, %v2182
        %v2202 = vpack.c.b16 %v2185, %v2184
        %v2203 = vpack.c.b16 %v2187, %v2186
        %2220 = vmatprep.subr.bf16.mxu0 0
        %2221 = vmatpush1.bf16.msra.mxu0 %v2188
        %2222 = vmatprep.subr.bf16.mxu0 0
        %2223 = vmatpush1.bf16.msra.mxu0 %v2189
        %2224 = vmatprep.subr.bf16.mxu0 0
        %2225 = vmatpush1.bf16.msra.mxu0 %v2190
        %2226 = vmatprep.subr.bf16.mxu0 0
        %2227 = vmatpush1.bf16.msra.mxu0 %v2191
        %2228 = vmatprep.subr.bf16.mxu0 0
        %2229 = vmatpush1.bf16.msra.mxu0 %v2192
        %2230 = vmatprep.subr.bf16.mxu0 0
        %2231 = vmatpush1.bf16.msra.mxu0 %v2193
        %2232 = vmatprep.subr.bf16.mxu0 0
        %2233 = vmatpush1.bf16.msra.mxu0 %v2194
        %2234 = vmatprep.subr.bf16.mxu0 0
        %2235 = vmatpush1.bf16.msra.mxu0 %v2195
        %2236 = vmatprep.subr.bf16.mxu0 0
        %2237 = vmatpush1.bf16.msra.mxu0 %v2196
        %2238 = vmatprep.subr.bf16.mxu0 0
        %2239 = vmatpush1.bf16.msra.mxu0 %v2197
        %2240 = vmatprep.subr.bf16.mxu0 0
        %2241 = vmatpush1.bf16.msra.mxu0 %v2198
        %2242 = vmatprep.subr.bf16.mxu0 0
        %2243 = vmatpush1.bf16.msra.mxu0 %v2199
        %2244 = vmatprep.subr.bf16.mxu0 0
        %2245 = vmatpush1.bf16.msra.mxu0 %v2200
        %2246 = vmatprep.subr.bf16.mxu0 0
        %2247 = vmatpush1.bf16.msra.mxu0 %v2201
        %2248 = vmatprep.subr.bf16.mxu0 0
        %2249 = vmatpush1.bf16.msra.mxu0 %v2202
        %2250 = vmatprep.subr.bf16.mxu0 0
        %2251 = vmatpush1.bf16.msra.mxu0 %v2203
        %2252 = vmatprep.mubr.bf16.mxu0 %v2082
        %2253 = vmatmul.mubr.bf16.gmra.mrb[0].mxu0 %v2081
        %v2254 = vpop.f32.mrb[0].mxu0
        %v2255 = vadd.f32 %v2122, %v2254
        %v2256 = vpop.f32.mrb[0].mxu0
        %v2257 = vpop.f32.mrb[0].mxu0
        %v2258 = vadd.f32 %v2122, %v2257
        %v2259 = vpop.f32.mrb[0].mxu0
        %2260 = vmatprep.mubr.bf16.mxu0 %v2084
        %2261 = vmatmul.mubr.bf16.gmra.mrb[0].mxu0 %v2083
        %v2262 = vpop.f32.mrb[0].mxu0
        %v2263 = vadd.f32 %v2122, %v2262
        %v2264 = vpop.f32.mrb[0].mxu0
        %v2265 = vpop.f32.mrb[0].mxu0
        %v2266 = vadd.f32 %v2122, %v2265
        %v2267 = vpop.f32.mrb[0].mxu0
        %2268 = vdwg.mxu0
        %v2269 = vld [vmem:[%s743] sm:$0x3]
        %v2270 = vadd.f32 %v2255, %v1842
        %v2271 = vadd.f32 %v2258, %v1843
        %v2272 = vadd.f32 %v2263, %v1844
        %v2273 = vadd.f32 %v2266, %v1845
        %2274 = vadd.xlane.f32.xlu0 %v2270
        %v2275 = vpop.xlane.xlu0 %2274
        %2276 = vadd.xlane.f32.xlu0 %v2271
        %v2277 = vpop.xlane.xlu0 %2276
        %2278 = vadd.xlane.f32.xlu0 %v2272
        %v2279 = vpop.xlane.xlu0 %2278
        %2280 = vadd.xlane.f32.xlu0 %v2273
        %v2281 = vpop.xlane.xlu0 %2280
        %v2282 = vmul.f32 %v2275, %v1793
        %v2283 = vmul.f32 %v2277, %v1793
        %v2284 = vmul.f32 %v2279, %v1793
        %v2285 = vmul.f32 %v2281, %v1793
        %v2286 = vsub.f32 %v2270, %v2282
        %v2287 = vsub.f32 %v2271, %v2283
        %v2288 = vsub.f32 %v2272, %v2284
        %v2289 = vsub.f32 %v2273, %v2285
        %v2290 = vmul.f32 %v2286, %v2286
        %v2291 = vmul.f32 %v2287, %v2287
        %v2292 = vmul.f32 %v2288, %v2288
        %v2293 = vmul.f32 %v2289, %v2289
        %2294 = vadd.xlane.f32.xlu0 %v2290
        %v2295 = vpop.xlane.xlu0 %2294
        %2296 = vadd.xlane.f32.xlu0 %v2291
        %v2297 = vpop.xlane.xlu0 %2296
        %2298 = vadd.xlane.f32.xlu0 %v2292
        %v2299 = vpop.xlane.xlu0 %2298
        %2300 = vadd.xlane.f32.xlu0 %v2293
        %v2301 = vpop.xlane.xlu0 %2300
        %v2302 = vmul.f32 %v2295, %v1793
        %v2303 = vmul.f32 %v2297, %v1793
        %v2304 = vmul.f32 %v2299, %v1793
        %v2305 = vmul.f32 %v2301, %v1793
        %v2306 = vadd.f32 %v2302, 1e-12
        %v2307 = vadd.f32 %v2303, 1e-12
        %v2308 = vadd.f32 %v2304, 1e-12
        %v2309 = vadd.f32 %v2305, 1e-12
        %v2310 = vrsqrt.pop %v2306
        %v2311 = vrsqrt.pop %v2307
        %v2312 = vrsqrt.pop %v2308
        %v2313 = vrsqrt.pop %v2309
        %v2314 = vmul.f32 %v2286, %v2310
        %v2315 = vmul.f32 %v2287, %v2311
        %v2316 = vmul.f32 %v2288, %v2312
        %v2317 = vmul.f32 %v2289, %v2313
        %v2318 = vlaneseq
        %v2319 = vshrl.u32 %v2318, 7
        %v2320 = vsub.s32 0, %v2319
        %v2321 = vrot.slane %v2269, %v2320
        %v2322 = vmul.f32 %v2314, %v2321
        %v2323 = vmul.f32 %v2315, %v2321
        %v2324 = vmul.f32 %v2316, %v2321
        %v2325 = vmul.f32 %v2317, %v2321
        %v2326 = vlaneseq
        %v2327 = vshrl.u32 %v2326, 7
        %v2328 = vsub.s32 1, %v2327
        %v2329 = vrot.slane %v2269, %v2328
        %v2330 = vadd.f32 %v2322, %v2329
        %v2331 = vadd.f32 %v2323, %v2329
        %v2332 = vadd.f32 %v2324, %v2329
        %v2333 = vadd.f32 %v2325, %v2329
        %2334 = vst [vmem:[#allocation2] sm:$0xff] %v2330
        %2335 = vst [vmem:[#allocation2 + $0x8] sm:$0xff] %v2331
        %2336 = vst [vmem:[#allocation2 + $0x10] sm:$0xff] %v2332
        %2337 = vst [vmem:[#allocation2 + $0x18] sm:$0xff] %v2333
        %p2338 = scmp.eq.s32.totalorder %s33, 1
        // Predicated region
        $region97: #{bert_classifier_forward.1} parent=91 // pred_check
          %p2339 = pneg %p2338
        $region98: #{bert_classifier_forward.1} parent=91 // pred_check_branch
          %2341 = sbr.rel (%p2339) target = $region100
        $region99: #{bert_classifier_forward.1} parent=91 // pred_region
          %v2343 = vrot.slane %v2332, 7
          %vm2345 = vcmask 1040384
          %v2346 = vsel %vm2345, %v2330, %v2343
          %v2347 = vpack.c.bf16 %v2346, %v2346
          %v2348 = vld [vmem:[%s13] sm:$0xf]
          %v2349 = vld [vmem:[%s13 + $0x4] sm:$0xf]
          %v2350 = vld [vmem:[%s13 + $0x8] sm:$0xf]
          %v2351 = vld [vmem:[%s13 + $0xc] sm:$0xf]
          %v2352 = vld [vmem:[%s13 + $0x10] sm:$0xf]
          %v2353 = vld [vmem:[%s13 + $0x14] sm:$0xf]
          %v2354 = vld [vmem:[%s13 + $0x18] sm:$0xf]
          %v2355 = vld [vmem:[%s13 + $0x1c] sm:$0xf]
          %v2356 = vld [vmem:[%s13 + $0x20] sm:$0xf]
          %v2357 = vld [vmem:[%s13 + $0x24] sm:$0xf]
          %v2358 = vld [vmem:[%s13 + $0x28] sm:$0xf]
          %v2359 = vld [vmem:[%s13 + $0x2c] sm:$0xf]
          %v2360 = vld [vmem:[%s13 + $0x30] sm:$0xf]
          %v2361 = vld [vmem:[%s13 + $0x34] sm:$0xf]
          %v2362 = vld [vmem:[%s13 + $0x38] sm:$0xf]
          %v2363 = vld [vmem:[%s13 + $0x3c] sm:$0xf]
          %v2364 = vld [vmem:[%s14] sm:$0x1]
          %v2366 = vlaneseq
          %v2367 = vshrl.u32 %v2366, 7
          %v2368 = vsub.s32 0, %v2367
          %v2369 = vrot.slane %v2364, %v2368
          %v2387 = vunpack.c.l.b16 %v2348
          %v2388 = vunpack.c.l.b16 %v2349
          %v2389 = vunpack.c.l.b16 %v2350
          %v2390 = vunpack.c.l.b16 %v2351
          %v2391 = vunpack.c.l.b16 %v2352
          %v2392 = vunpack.c.l.b16 %v2353
          %v2393 = vunpack.c.l.b16 %v2354
          %v2394 = vunpack.c.l.b16 %v2355
          %v2395 = vunpack.c.l.b16 %v2356
          %v2396 = vunpack.c.l.b16 %v2357
          %v2397 = vunpack.c.l.b16 %v2358
          %v2398 = vunpack.c.l.b16 %v2359
          %v2399 = vunpack.c.l.b16 %v2360
          %v2400 = vunpack.c.l.b16 %v2361
          %v2401 = vunpack.c.l.b16 %v2362
          %v2402 = vunpack.c.l.b16 %v2363
          %v2403 = vpack.c.b16 %v2388, %v2387
          %v2404 = vpack.c.b16 %v2390, %v2389
          %v2405 = vpack.c.b16 %v2392, %v2391
          %v2406 = vpack.c.b16 %v2394, %v2393
          %v2407 = vpack.c.b16 %v2396, %v2395
          %v2408 = vpack.c.b16 %v2398, %v2397
          %v2409 = vpack.c.b16 %v2400, %v2399
          %v2410 = vpack.c.b16 %v2402, %v2401
          %2419 = vmatprep.subr.bf16.mxu0 0
          %2420 = vmatpush1.bf16.msra.mxu0 %v2403
          %2421 = vmatprep.subr.bf16.mxu0 0
          %2422 = vmatpush1.bf16.msra.mxu0 %v2404
          %2423 = vmatprep.subr.bf16.mxu0 0
          %2424 = vmatpush1.bf16.msra.mxu0 %v2405
          %2425 = vmatprep.subr.bf16.mxu0 0
          %2426 = vmatpush1.bf16.msra.mxu0 %v2406
          %2427 = vmatprep.subr.bf16.mxu0 0
          %2428 = vmatpush1.bf16.msra.mxu0 %v2407
          %2429 = vmatprep.subr.bf16.mxu0 0
          %2430 = vmatpush1.bf16.msra.mxu0 %v2408
          %2431 = vmatprep.subr.bf16.mxu0 0
          %2432 = vmatpush1.bf16.msra.mxu0 %v2409
          %2433 = vmatprep.subr.bf16.mxu0 0
          %2434 = vmatpush1.bf16.msra.mxu0 %v2410
          %2435 = vmatprep.subr.bf16.mxu0 0
          %2436 = vmatpush1.bf16.msra.mxu0 0
          %2437 = vmatprep.subr.bf16.mxu0 0
          %2438 = vmatpush1.bf16.msra.mxu0 0
          %2439 = vmatprep.subr.bf16.mxu0 0
          %2440 = vmatpush1.bf16.msra.mxu0 0
          %2441 = vmatprep.subr.bf16.mxu0 0
          %2442 = vmatpush1.bf16.msra.mxu0 0
          %2443 = vmatprep.subr.bf16.mxu0 0
          %2444 = vmatpush1.bf16.msra.mxu0 0
          %2445 = vmatprep.subr.bf16.mxu0 0
          %2446 = vmatpush1.bf16.msra.mxu0 0
          %2447 = vmatprep.subr.bf16.mxu0 0
          %2448 = vmatpush1.bf16.msra.mxu0 0
          %2449 = vmatprep.subr.bf16.mxu0 0
          %2450 = vmatpush1.bf16.msra.mxu0 0
          %2451 = vmatprep.mubr.bf16.mxu0 0
          %2452 = vmatmul.mubr.bf16.gmra.mrb[0].mxu0 %v2347
          %v2453 = vpop.f32.mrb[0].mxu0
          %v2454 = vadd.f32 %v2369, %v2453
          %v2455 = vpop.f32.mrb[0].mxu0
          %v2456 = vpop.f32.mrb[0].mxu0
          %v2457 = vpop.f32.mrb[0].mxu0
          %2458 = vdwg.mxu0
          %v2459 = vtanh.pop %v2454
          %v2460 = vld [vmem:[%s15] sm:$0xff]
          %v2461 = vld [vmem:[%s15 + $0x8] sm:$0xff]
          %v2462 = vld [vmem:[%s15 + $0x10] sm:$0xff]
          %v2463 = vld [vmem:[%s15 + $0x18] sm:$0xff]
          %v2464 = vld [vmem:[%s15 + $0x20] sm:$0xff]
          %v2465 = vld [vmem:[%s15 + $0x28] sm:$0xff]
          %v2466 = vld [vmem:[%s15 + $0x30] sm:$0xff]
          %v2467 = vld [vmem:[%s15 + $0x38] sm:$0xff]
          %v2468 = vld [vmem:[%s15 + $0x40] sm:$0xff]
          %v2469 = vld [vmem:[%s15 + $0x48] sm:$0xff]
          %v2470 = vld [vmem:[%s15 + $0x50] sm:$0xff]
          %v2471 = vld [vmem:[%s15 + $0x58] sm:$0xff]
          %v2472 = vld [vmem:[%s15 + $0x60] sm:$0xff]
          %v2473 = vld [vmem:[%s15 + $0x68] sm:$0xff]
          %v2474 = vld [vmem:[%s15 + $0x70] sm:$0xff]
          %v2475 = vld [vmem:[%s15 + $0x78] sm:$0xff]
          %v2476 = vld [vmem:[%s16] sm:$0x1]
          %v2478 = vlaneseq
          %v2479 = vshrl.u32 %v2478, 7
          %v2480 = vsub.s32 0, %v2479
          %v2481 = vrot.slane %v2476, %v2480
          %2483 = vmatprep.subr.mxu0 0.0
          %2484 = vmatpush1.msra.mxu0 %v2460
          %2485 = vmatprep.subr.mxu0 0.0
          %2486 = vmatpush1.msra.mxu0 %v2461
          %2487 = vmatprep.subr.mxu0 0.0
          %2488 = vmatpush1.msra.mxu0 %v2462
          %2489 = vmatprep.subr.mxu0 0.0
          %2490 = vmatpush1.msra.mxu0 %v2463
          %2491 = vmatprep.subr.mxu0 0.0
          %2492 = vmatpush1.msra.mxu0 %v2464
          %2493 = vmatprep.subr.mxu0 0.0
          %2494 = vmatpush1.msra.mxu0 %v2465
          %2495 = vmatprep.subr.mxu0 0.0
          %2496 = vmatpush1.msra.mxu0 %v2466
          %2497 = vmatprep.subr.mxu0 0.0
          %2498 = vmatpush1.msra.mxu0 %v2467
          %2499 = vmatprep.subr.mxu0 0.0
          %2500 = vmatpush1.msra.mxu0 %v2468
          %2501 = vmatprep.subr.mxu0 0.0
          %2502 = vmatpush1.msra.mxu0 %v2469
          %2503 = vmatprep.subr.mxu0 0.0
          %2504 = vmatpush1.msra.mxu0 %v2470
          %2505 = vmatprep.subr.mxu0 0.0
          %2506 = vmatpush1.msra.mxu0 %v2471
          %2507 = vmatprep.subr.mxu0 0.0
          %2508 = vmatpush1.msra.mxu0 %v2472
          %2509 = vmatprep.subr.mxu0 0.0
          %2510 = vmatpush1.msra.mxu0 %v2473
          %2511 = vmatprep.subr.mxu0 0.0
          %2512 = vmatpush1.msra.mxu0 %v2474
          %2513 = vmatprep.subr.mxu0 0.0
          %2514 = vmatpush1.msra.mxu0 %v2475
          %2515 = vmatprep.subr.mxu0 0.0
          %2516 = vmatpush1.msra.mxu0 0.0
          %2517 = vmatprep.subr.mxu0 0.0
          %2518 = vmatpush1.msra.mxu0 0.0
          %2519 = vmatprep.subr.mxu0 0.0
          %2520 = vmatpush1.msra.mxu0 0.0
          %2521 = vmatprep.subr.mxu0 0.0
          %2522 = vmatpush1.msra.mxu0 0.0
          %2523 = vmatprep.subr.mxu0 0.0
          %2524 = vmatpush1.msra.mxu0 0.0
          %2525 = vmatprep.subr.mxu0 0.0
          %2526 = vmatpush1.msra.mxu0 0.0
          %2527 = vmatprep.subr.mxu0 0.0
          %2528 = vmatpush1.msra.mxu0 0.0
          %2529 = vmatprep.subr.mxu0 0.0
          %2530 = vmatpush1.msra.mxu0 0.0
          %2531 = vmatprep.subr.mxu0 0.0
          %2532 = vmatpush1.msra.mxu0 0.0
          %2533 = vmatprep.subr.mxu0 0.0
          %2534 = vmatpush1.msra.mxu0 0.0
          %2535 = vmatprep.subr.mxu0 0.0
          %2536 = vmatpush1.msra.mxu0 0.0
          %2537 = vmatprep.subr.mxu0 0.0
          %2538 = vmatpush1.msra.mxu0 0.0
          %2539 = vmatprep.subr.mxu0 0.0
          %2540 = vmatpush1.msra.mxu0 0.0
          %2541 = vmatprep.subr.mxu0 0.0
          %2542 = vmatpush1.msra.mxu0 0.0
          %2543 = vmatprep.subr.mxu0 0.0
          %2544 = vmatpush1.msra.mxu0 0.0
          %2545 = vmatprep.subr.mxu0 0.0
          %2546 = vmatpush1.msra.mxu0 0.0
          %2547 = vmatprep.mubr.f32.mxu0 0.0
          %2548 = vmatmul.mubr.f32.gmra.mrb[0].mxu0 %v2459
          %v2549 = vpop.f32.mrb[0].mxu0
          %v2550 = vadd.f32 %v2481, %v2549
          %v2551 = vpop.f32.mrb[0].mxu0
          %2552 = vdwg.mxu0
          %vm2553 = vcmask 58368
          %2554 = vst.msk [vmem:[#allocation3] sm:$0x3] %vm2553, %v2550
          %v2555 = vsel %vm2553, %v2550, -inf
          %2556 = vmax.xlane.f32.xlu0 %v2555
          %v2557 = vpop.xlane.xlu0 %2556
          %v2558 = vsub.f32 %v2550, %v2557
          %v2559 = vmul.f32 %v2558, 1.442695
          %v2560 = vpow.pop %v2559
          %v2561 = vsel %vm2553, %v2560, 0.0
          %2562 = vadd.xlane.f32.xlu0 %v2561
          %v2563 = vpop.xlane.xlu0 %2562
          %v2564 = vlog2.pop %v2563
          %v2565 = vmul.f32 %v2564, 0.6931472
          %v2566 = vadd.f32 %v2557, %v2565
          %v2567 = vld [vmem:[%s17] sm:$0x3]
          %v2568 = vmul.f32 %v2567, %v2550
          %v2569 = vsel %vm2553, %v2568, 0.0
          %2570 = vadd.xlane.f32.xlu0 %v2569
          %v2571 = vpop.xlane.xlu0 %2570
          %v2572 = vsub.f32 %v2566, %v2571
          %vm2573 = vcmask 1041408
          %v2574 = vsel %vm2573, %v2572, 0.0
          %v2575 = vrot.slane %v2574, 4
          %v2576 = vadd.f32 %v2574, %v2575
          %v2577 = vrot.slane %v2576, 2
          %v2578 = vadd.f32 %v2576, %v2577
          %v2579 = vrot.slane %v2578, 1
          %v2580 = vadd.f32 %v2578, %v2579
          %v2581 = vmul.f32 %v2580, 0.5
          %vm2582 = vcmask 0
          %2583 = vst.msk [vmem:[#allocation5] sm:$0x1] %vm2582, %v2581
        $region100: #{bert_classifier_forward.1} parent=91 // pred_fallthru
          _
        // Predicated region
        $region101: #{bert_classifier_forward.1} parent=91 // pred_check
          %p2584 = pneg %p474
        $region102: #{bert_classifier_forward.1} parent=91 // pred_check_branch
          %2586 = sbr.rel (%p2584) target = $region104
        $region103: #{bert_classifier_forward.1} parent=91 // pred_region
          %s2588 = ssub.s32 32, 32
          %2589 = vsyncadd [#allocation4], %s2588
          %s2591 = sshll.u32 [#allocation3], 4
          %s2592 = int_to_ptr.vmem [resolvable:$true] %s2591
          %2594 = dma.vmem_to_hbm [thread:$0]  %s2592, 32, %s18, [#allocation4]
        $region104: #{bert_classifier_forward.1} parent=91 // pred_fallthru
          _
        // Predicated region
        $region105: #{bert_classifier_forward.1} parent=91 // pred_check
          %p2595 = pneg %p495
        $region106: #{bert_classifier_forward.1} parent=91 // pred_check_branch
          %2597 = sbr.rel (%p2595) target = $region108
        $region107: #{bert_classifier_forward.1} parent=91 // pred_region
          %s2599 = ssub.s32 16, 16
          %2600 = vsyncadd [#allocation6], %s2599
          %s2602 = sshll.u32 [#allocation5], 4
          %s2603 = int_to_ptr.vmem [resolvable:$true] %s2602
          %2605 = dma.vmem_to_hbm [thread:$0]  %s2603, 16, %s19, [#allocation6]
        $region108: #{bert_classifier_forward.1} parent=91 // pred_fallthru
          _
        // Predicated region
        $region109: #{bert_classifier_forward.1} parent=91 // pred_check
          %p2606 = pneg %p474
        $region110: #{bert_classifier_forward.1} parent=91 // pred_check_branch
          %2608 = sbr.rel (%p2606) target = $region112
        $region111: #{bert_classifier_forward.1} parent=91 // pred_region
          %2609 = dma.done [#allocation4], 32
        $region112: #{bert_classifier_forward.1} parent=91 // pred_fallthru
          _
        // Predicated region
        $region113: #{bert_classifier_forward.1} parent=91 // pred_check
          %p2610 = pneg %p495
        $region114: #{bert_classifier_forward.1} parent=91 // pred_check_branch
          %2612 = sbr.rel (%p2610) target = $region116
        $region115: #{bert_classifier_forward.1} parent=91 // pred_region
          %2613 = dma.done [#allocation6], 16
        $region116: #{bert_classifier_forward.1} parent=91 // pred_fallthru
          _
      $region92: #{bert_classifier_forward.1} parent=5 // pred_fallthru
        _
      %p2614 = scmp.le.s32.totalorder 2, %s28
      // Predicated region
      $region117: #{bert_classifier_forward.1} parent=5 // pred_check
        %p2615 = pneg %p2614
      $region118: #{bert_classifier_forward.1} parent=5 // pred_check_branch
        %2617 = sbr.rel (%p2615) target = $region120
      $region119: #{bert_classifier_forward.1} parent=5 // pred_region
        %s2618 = ssub.s32 %s28, 2
      $region120: #{bert_classifier_forward.1} parent=5 // pred_fallthru
        _
    $region6: #{bert_classifier_forward.1} parent=1 // loop_footer
      %s32 = sadd.s32 1, %s28
    $region7: #{bert_classifier_forward.1} parent=1 // loop_footer_branch
      %27 = sbr.rel target = $region3
    $region8: #{bert_classifier_forward.1} parent=1 // loop_exit
      _
    %2619 = vsyncpa [#allocation4], 1
    %s2620 = scalar_lea.sflag [#allocation4], 1
    %2621 = vsyncpa %s2620, 1
    %2622 = vsyncpa [#allocation6], 1

</llo_original>
